<compile_context>
chip_gen: v7x
topology: tpu7x:2x2x1
jax: 0.10.0
libtpu: 0.0.40
codegen_flags: <defaults>
</compile_context>

<pallas_src>
import math

import jax
import jax.numpy as jnp
from jax import lax
from jax.experimental import pallas as pl
from jax.experimental.pallas import tpu as pltpu

NUM_LSTM_LAYERS = 2
REG_HIDDEN = 128
NEG_SLOPE = 0.1
POSE_DIM = 6
POSE_PAD = 128          # lane-dense padded pose width


# ------------------------------- kernel ------------------------------------ #

def _fused_pose_rnn_kernel(x_ref,                       # (B, S, F)   batch-first input
                           h0_ref, c0_ref,              # (B, 2, H)   initial state
                           w_ih0_ref, w_hh0_ref, b0_ref,   # layer 0: (F,4H),(H,4H),(1,4H)
                           w1f_ref, b1_ref,             # layer 1 fused: (2H,4H),(1,4H)
                           rw1_ref, rb1_ref,            # fused reg layer 1: (H,256),(1,256)
                           rw2_ref, rb2_ref,            # fused reg layer 2 (padded): (256,128),(1,128)
                           pose_ref,                    # (B, S, 128) lane-dense pose slab
                           hN_ref, cN_ref,              # (B, 2, H)
                           xg_ref,                      # scratch (S, B, 4H): precomputed x-gates
                           hseq_ref):                   # scratch (S, B, H): layer-2 hidden per step
    B, S, F = x_ref.shape
    H = w_hh0_ref.shape[0]
    G = 4 * H

    # Weights resident in VMEM for the whole call.
    w_hh0 = w_hh0_ref[...]                               # (H, 4H)
    w1f = w1f_ref[...]                                   # (2H, 4H) = [W_ih1; W_hh1]
    b1 = jnp.broadcast_to(b1_ref[...], (B, G))           # hoisted bias broadcast (once)

    # --- Hoisted layer-0 input projection: one slab matmul, bias folded in. ---
    xg_all = (jnp.dot(x_ref[...].reshape(B * S, F), w_ih0_ref[...],
                      preferred_element_type=jnp.float32)
              + b0_ref[...])                              # (B*S, 4H), rows batch-major
    # Re-order rows to time-major (S, B, 4H) with value-level slices + one full store.
    xg_ref[...] = jnp.stack([xg_all[b * S:(b + 1) * S, :] for b in range(B)], axis=1)

    # Gate columns are packed [i, f, o, g]: one full-width masked activation.
    lane = lax.broadcasted_iota(jnp.int32, (B, G), 1)
    sig_mask = lane < 3 * H

    def gate_combine(g, c):
        act = jnp.where(sig_mask, jax.nn.sigmoid(g), jnp.tanh(g))
        i, f = act[:, 0:H], act[:, H:2 * H]
        o, gg = act[:, 2 * H:3 * H], act[:, 3 * H:4 * H]
        c_new = f * c + i * gg
        h_new = o * jnp.tanh(c_new)
        return h_new, c_new

    def step(t, carry):
        h1, c1, h2, c2 = carry
        # Layer 0: input part precomputed; only the recurrent matmul on the chain.
        g0 = xg_ref[t] + jnp.dot(h1, w_hh0, preferred_element_type=jnp.float32)
        h1, c1 = gate_combine(g0, c1)
        # TODO(synk): rnn_dropout_between / rnn_dropout_out are eval-mode identity.
        # Layer 1: single fused matmul over concat([h1_t, h2_{t-1}]).
        g1 = jnp.dot(jnp.concatenate([h1, h2], axis=1), w1f,
                     preferred_element_type=jnp.float32) + b1
        h2, c2 = gate_combine(g1, c2)
        hseq_ref[t] = h2                                  # layer-2 hidden per step
        return (h1, c1, h2, c2)

    h0 = h0_ref[...]
    c0 = c0_ref[...]
    init = (h0[:, 0, :], c0[:, 0, :], h0[:, 1, :], c0[:, 1, :])
    unroll = True if S <= 16 else 8                       # full unroll only for short seqs
    h1, c1, h2, c2 = lax.fori_loop(0, S, step, init, unroll=unroll)

    # Final states emitted batch-first directly (no wrapper transpose).
    hN_ref[...] = jnp.stack([h1, h2], axis=1)             # (B, 2, H)
    cN_ref[...] = jnp.stack([c1, c2], axis=1)

    # Fused regressor heads on all timesteps at once (batch-major slab),
    # lane-dense (…,128) pose writeback.
    hseq = hseq_ref[...]                                   # (S, B, H)
    hs = jnp.concatenate([hseq[:, b, :] for b in range(B)], axis=0)   # (B*S, H)
    z = jnp.dot(hs, rw1_ref[...], preferred_element_type=jnp.float32) + rb1_ref[...]
    z = jnp.where(z > 0, z, NEG_SLOPE * z)                 # LeakyReLU(0.1)
    pose = jnp.dot(z, rw2_ref[...], preferred_element_type=jnp.float32) + rb2_ref[...]
    pose_ref[...] = pose.reshape(B, S, POSE_PAD).astype(pose_ref.dtype)


# ------------------------------- wrapper ------------------------------------ #

def _reorder_gate_rows(w):
    """Reorder PyTorch LSTM gate-major rows [i,f,g,o] -> [i,f,o,g]."""
    H = w.shape[0] // 4
    return jnp.concatenate([w[:2 * H], w[3 * H:4 * H], w[2 * H:3 * H]], axis=0)


def _pack_params(p):
    """Pre-transpose / consolidate PyTorch-shaped params for the kernel."""
    R = p["rt_w1"].shape[0]                                # 128
    # Block-diagonal, lane-padded second regressor layer: cols 0:3 <- t head, 3:6 <- q head.
    rw2 = jnp.zeros((2 * R, POSE_PAD), jnp.float32)
    rw2 = rw2.at[:R, 0:3].set(p["rt_w2"].T)
    rw2 = rw2.at[R:, 3:6].set(p["rq_w2"].T)
    rb2 = jnp.zeros((1, POSE_PAD), jnp.float32)
    rb2 = rb2.at[0, 0:3].set(p["rt_b2"])
    rb2 = rb2.at[0, 3:6].set(p["rq_b2"])
    return dict(
        w_ih0_t=_reorder_gate_rows(p["w_ih0"]).T,                       # (F, 4H)
        w_hh0_t=_reorder_gate_rows(p["w_hh0"]).T,                       # (H, 4H)
        b0=_reorder_gate_rows(p["b_ih0"] + p["b_hh0"]).reshape(1, -1),  # (1, 4H)
        w1f=jnp.concatenate([_reorder_gate_rows(p["w_ih1"]).T,
                             _reorder_gate_rows(p["w_hh1"]).T], axis=0),  # (2H, 4H)
        b1=_reorder_gate_rows(p["b_ih1"] + p["b_hh1"]).reshape(1, -1),  # (1, 4H)
        rw1=jnp.concatenate([p["rt_w1"].T, p["rq_w1"].T], axis=1),      # (H, 256)
        rb1=jnp.concatenate([p["rt_b1"], p["rq_b1"]]).reshape(1, -1),   # (1, 256)
        rw2=rw2,                                                        # (256, 128)
        rb2=rb2,                                                        # (1, 128)
    )


def fused_pose_rnn(fused_f, params, prev=None):
    """fused_f: (B, S, F) batch-first. Returns (pose (B,S,6), (h (B,2,H), c (B,2,H)))."""
    B, S, F = fused_f.shape
    H = params["w_hh0"].shape[1]
    G = 4 * H
    kp = _pack_params(params)

    if prev is None:
        h0 = jnp.zeros((B, NUM_LSTM_LAYERS, H), jnp.float32)
        c0 = jnp.zeros((B, NUM_LSTM_LAYERS, H), jnp.float32)
    else:                                                  # batch-first, like the module
        h0, c0 = prev

    order = ("w_ih0_t", "w_hh0_t", "b0", "w1f", "b1", "rw1", "rb1", "rw2", "rb2")
    operands = [fused_f, h0, c0] + [kp[k] for k in order]

    def full(shape):
        # whole-array block, resident across the (single-step) grid
        return pl.BlockSpec(shape, lambda i, n=len(shape): (0,) * n)

    out_shapes = (jax.ShapeDtypeStruct((B, S, POSE_PAD), jnp.float32),
                  jax.ShapeDtypeStruct((B, NUM_LSTM_LAYERS, H), jnp.float32),
                  jax.ShapeDtypeStruct((B, NUM_LSTM_LAYERS, H), jnp.float32))

    flops = 2 * B * S * (F * G + H * G + 2 * H * G
                         + H * 2 * REG_HIDDEN + 2 * REG_HIDDEN * POSE_PAD)
    transcendentals = B * S * 2 * (2 * G + H)
    bytes_accessed = 4 * (sum(int(math.prod(op.shape)) for op in operands)
                          + sum(int(math.prod(s.shape)) for s in out_shapes))

    pose_pad, hN, cN = pl.pallas_call(
        _fused_pose_rnn_kernel,
        out_shape=out_shapes,
        grid=(1,),
        in_specs=[full(op.shape) for op in operands],
        out_specs=tuple(full(s.shape) for s in out_shapes),
        scratch_shapes=[pltpu.VMEM((S, B, G), jnp.float32),
                        pltpu.VMEM((S, B, H), jnp.float32)],
        compiler_params=pltpu.CompilerParams(
            dimension_semantics=("arbitrary",)),
        cost_estimate=pl.CostEstimate(flops=flops,
                                      transcendentals=transcendentals,
                                      bytes_accessed=bytes_accessed),
    )(*operands)

    pose = pose_pad[:, :, :POSE_DIM]                       # drop lane padding
    return pose, (hN, cN)


# ---------------------- deterministic parameters ---------------------------- #

def init_params(key, f_len, hidden):
    def unif(k, shape, fan_in):
        b = 1.0 / math.sqrt(fan_in)
        return jax.random.uniform(k, shape, jnp.float32, -b, b)

    ks = jax.random.split(key, 16)
    return dict(
        w_ih0=unif(ks[0], (4 * hidden, f_len), hidden),
        w_hh0=unif(ks[1], (4 * hidden, hidden), hidden),
        b_ih0=unif(ks[2], (4 * hidden,), hidden),
        b_hh0=unif(ks[3], (4 * hidden,), hidden),
        w_ih1=unif(ks[4], (4 * hidden, hidden), hidden),
        w_hh1=unif(ks[5], (4 * hidden, hidden), hidden),
        b_ih1=unif(ks[6], (4 * hidden,), hidden),
        b_hh1=unif(ks[7], (4 * hidden,), hidden),
        rt_w1=unif(ks[8], (REG_HIDDEN, hidden), hidden),
        rt_b1=unif(ks[9], (REG_HIDDEN,), hidden),
        rt_w2=unif(ks[10], (3, REG_HIDDEN), REG_HIDDEN),
        rt_b2=unif(ks[11], (3,), REG_HIDDEN),
        rq_w1=unif(ks[12], (REG_HIDDEN, hidden), hidden),
        rq_b1=unif(ks[13], (REG_HIDDEN,), hidden),
        rq_w2=unif(ks[14], (3, REG_HIDDEN), REG_HIDDEN),
        rq_b2=unif(ks[15], (3,), REG_HIDDEN),
    )


# ------------------------------- reference ---------------------------------- #

def _ref_forward(x, p, prev=None):
    B, S, F = x.shape
    H = p["w_hh0"].shape[1]

    def cell(xt, h, c, w_ih, w_hh, b_ih, b_hh):
        g = xt @ w_ih.T + b_ih + h @ w_hh.T + b_hh
        i = jax.nn.sigmoid(g[:, :H])
        f = jax.nn.sigmoid(g[:, H:2 * H])
        gg = jnp.tanh(g[:, 2 * H:3 * H])
        o = jax.nn.sigmoid(g[:, 3 * H:])
        c = f * c + i * gg
        h = o * jnp.tanh(c)
        return h, c

    if prev is None:
        h1 = c1 = h2 = c2 = jnp.zeros((B, H), jnp.float32)
    else:
        h1, h2 = prev[0][:, 0], prev[0][:, 1]
        c1, c2 = prev[1][:, 0], prev[1][:, 1]

    outs = []
    for t in range(S):
        xt = x[:, t]
        h1, c1 = cell(xt, h1, c1, p["w_ih0"], p["w_hh0"], p["b_ih0"], p["b_hh0"])
        h2, c2 = cell(h1, h2, c2, p["w_ih1"], p["w_hh1"], p["b_ih1"], p["b_hh1"])
        outs.append(h2)
    out = jnp.stack(outs, axis=1)                           # (B, S, H)

    def head(w1, b1, w2, b2):
        z = out @ w1.T + b1
        z = jnp.where(z > 0, z, NEG_SLOPE * z)
        return z @ w2.T + b2

    pose = jnp.concatenate(
        [head(p["rt_w1"], p["rt_b1"], p["rt_w2"], p["rt_b2"]),
         head(p["rq_w1"], p["rq_b1"], p["rq_w2"], p["rq_b2"])], axis=2)
    hN = jnp.stack([h1, h2], axis=1)                        # (B, 2, H)
    cN = jnp.stack([c1, c2], axis=1)
    return pose, (hN, cN)


# --------------------------------- main -------------------------------------- #

if __name__ == "__main__":
    key = jax.random.PRNGKey(0)
    B, S, F, H = 2, 8, 32, 32      # batch=2, seq=8, feature_channels=32, rnn_hidden=32

    x = jax.random.normal(jax.random.fold_in(key, 1), (B, S, F), jnp.float32)
    params = init_params(jax.random.fold_in(key, 2), F, H)

    pose, (h_out, c_out) = fused_pose_rnn(x, params)
    pose = jax.block_until_ready(pose)
    h_out = jax.block_until_ready(h_out)
    c_out = jax.block_until_ready(c_out)

    ref_pose, (ref_h, ref_c) = _ref_forward(x, params)

    assert pose.shape == (B, S, POSE_DIM)
    assert h_out.shape == (B, NUM_LSTM_LAYERS, H)
    assert c_out.shape == (B, NUM_LSTM_LAYERS, H)
    assert bool(jnp.all(jnp.isfinite(pose)))
    for got, ref in ((pose, ref_pose), (h_out, ref_h), (c_out, ref_c)):
        assert bool(jnp.allclose(got, ref, atol=5e-3, rtol=5e-3)), (
            float(jnp.max(jnp.abs(got - ref))))
    print("KERNEL_OK")
</pallas_src>

<mosaic_0001>
module attributes {stable_mosaic.version = 11 : i64} {
  func.func @_fused_pose_rnn_kernel(%arg0: i32, %arg1: memref<2x8x32xf32, #tpu.memory_space<vmem>>, %arg2: memref<2x2x32xf32, #tpu.memory_space<vmem>>, %arg3: memref<2x2x32xf32, #tpu.memory_space<vmem>>, %arg4: memref<32x128xf32, #tpu.memory_space<vmem>>, %arg5: memref<32x128xf32, #tpu.memory_space<vmem>>, %arg6: memref<1x128xf32, #tpu.memory_space<vmem>>, %arg7: memref<64x128xf32, #tpu.memory_space<vmem>>, %arg8: memref<1x128xf32, #tpu.memory_space<vmem>>, %arg9: memref<32x256xf32, #tpu.memory_space<vmem>>, %arg10: memref<1x256xf32, #tpu.memory_space<vmem>>, %arg11: memref<256x128xf32, #tpu.memory_space<vmem>>, %arg12: memref<1x128xf32, #tpu.memory_space<vmem>>, %arg13: memref<2x8x128xf32, #tpu.memory_space<vmem>>, %arg14: memref<2x2x32xf32, #tpu.memory_space<vmem>>, %arg15: memref<2x2x32xf32, #tpu.memory_space<vmem>>, %arg16: memref<8x2x128xf32, #tpu.memory_space<vmem>>, %arg17: memref<8x2x32xf32, #tpu.memory_space<vmem>>) attributes {dimension_semantics = [#tpu.dimension_semantics<arbitrary>], iteration_bounds = array<i64: 1>, scalar_prefetch = 0 : i64, scratch_operands = 2 : i64, tpu.core_type = #tpu.core_type<tc>, window_params = [{pipeline_mode = #tpu.pipeline_mode<synchronous>, transform_indices = @transform_0, window_bounds = array<i64: 2, 8, 32>}, {pipeline_mode = #tpu.pipeline_mode<synchronous>, transform_indices = @transform_1, window_bounds = array<i64: 2, 2, 32>}, {pipeline_mode = #tpu.pipeline_mode<synchronous>, transform_indices = @transform_2, window_bounds = array<i64: 2, 2, 32>}, {pipeline_mode = #tpu.pipeline_mode<synchronous>, transform_indices = @transform_3, window_bounds = array<i64: 32, 128>}, {pipeline_mode = #tpu.pipeline_mode<synchronous>, transform_indices = @transform_4, window_bounds = array<i64: 32, 128>}, {pipeline_mode = #tpu.pipeline_mode<synchronous>, transform_indices = @transform_5, window_bounds = array<i64: 1, 128>}, {pipeline_mode = #tpu.pipeline_mode<synchronous>, transform_indices = @transform_6, window_bounds = array<i64: 64, 128>}, {pipeline_mode = #tpu.pipeline_mode<synchronous>, transform_indices = @transform_7, window_bounds = array<i64: 1, 128>}, {pipeline_mode = #tpu.pipeline_mode<synchronous>, transform_indices = @transform_8, window_bounds = array<i64: 32, 256>}, {pipeline_mode = #tpu.pipeline_mode<synchronous>, transform_indices = @transform_9, window_bounds = array<i64: 1, 256>}, {pipeline_mode = #tpu.pipeline_mode<synchronous>, transform_indices = @transform_10, window_bounds = array<i64: 256, 128>}, {pipeline_mode = #tpu.pipeline_mode<synchronous>, transform_indices = @transform_11, window_bounds = array<i64: 1, 128>}, {pipeline_mode = #tpu.pipeline_mode<synchronous>, transform_indices = @transform_12, window_bounds = array<i64: 2, 8, 128>}, {pipeline_mode = #tpu.pipeline_mode<synchronous>, transform_indices = @transform_13, window_bounds = array<i64: 2, 2, 32>}, {pipeline_mode = #tpu.pipeline_mode<synchronous>, transform_indices = @transform_14, window_bounds = array<i64: 2, 2, 32>}]} {
    %c0 = arith.constant 0 : index
    %c0_0 = arith.constant 0 : index
    %0 = vector.load %arg5[%c0, %c0_0] : memref<32x128xf32, #tpu.memory_space<vmem>>, vector<32x128xf32>
    %c0_1 = arith.constant 0 : index
    %c0_2 = arith.constant 0 : index
    %1 = vector.load %arg7[%c0_1, %c0_2] : memref<64x128xf32, #tpu.memory_space<vmem>>, vector<64x128xf32>
    %c0_3 = arith.constant 0 : index
    %c0_4 = arith.constant 0 : index
    %2 = vector.load %arg8[%c0_3, %c0_4] : memref<1x128xf32, #tpu.memory_space<vmem>>, vector<1x128xf32>
    %3 = vector.shape_cast %2 : vector<1x128xf32> to vector<1x128xf32>
    %4 = vector.broadcast %3 : vector<1x128xf32> to vector<2x128xf32>
    %c0_5 = arith.constant 0 : index
    %c0_6 = arith.constant 0 : index
    %c0_7 = arith.constant 0 : index
    %5 = vector.load %arg1[%c0_5, %c0_6, %c0_7] : memref<2x8x32xf32, #tpu.memory_space<vmem>>, vector<2x8x32xf32>
    %6 = vector.shape_cast %5 : vector<2x8x32xf32> to vector<16x32xf32>
    %c0_8 = arith.constant 0 : index
    %c0_9 = arith.constant 0 : index
    %7 = vector.load %arg4[%c0_8, %c0_9] : memref<32x128xf32, #tpu.memory_space<vmem>>, vector<32x128xf32>
    %cst = arith.constant dense<0.000000e+00> : vector<16x128xf32>
    %8 = tpu.matmul %6, %7, %cst {dimension_numbers = #tpu.dot_dimension_numbers<[1], [0], [0], [1], [0, 0, 1, 1], [], []>} : vector<16x32xf32>, vector<32x128xf32>, vector<16x128xf32> -> vector<16x128xf32>
    %c0_10 = arith.constant 0 : index
    %c0_11 = arith.constant 0 : index
    %9 = vector.load %arg6[%c0_10, %c0_11] : memref<1x128xf32, #tpu.memory_space<vmem>>, vector<1x128xf32>
    %10 = vector.broadcast %9 : vector<1x128xf32> to vector<16x128xf32>
    %11 = arith.addf %8, %10 : vector<16x128xf32>
    %12 = vector.extract_strided_slice %11 {offsets = [0, 0], sizes = [8, 128], strides = [1, 1]} : vector<16x128xf32> to vector<8x128xf32>
    %13 = vector.extract_strided_slice %11 {offsets = [8, 0], sizes = [8, 128], strides = [1, 1]} : vector<16x128xf32> to vector<8x128xf32>
    %14 = vector.shape_cast %12 : vector<8x128xf32> to vector<8x1x128xf32>
    %15 = vector.shape_cast %13 : vector<8x128xf32> to vector<8x1x128xf32>
    %16 = tpu.concatenate %14, %15 in 1 : vector<8x1x128xf32>, vector<8x1x128xf32> -> vector<8x2x128xf32>
    %c0_12 = arith.constant 0 : index
    %c0_13 = arith.constant 0 : index
    %c0_14 = arith.constant 0 : index
    %17 = vector.load %arg16[%c0_12, %c0_13, %c0_14] : memref<8x2x128xf32, #tpu.memory_space<vmem>>, vector<8x2x128xf32>
    tpu.vector_store %arg16[%c0_12, %c0_13, %c0_14], %16 {strides = array<i32>} : memref<8x2x128xf32, #tpu.memory_space<vmem>>, vector<8x2x128xf32>,
    %18 = tpu.iota {dimensions = array<i32: 1>} : vector<2x128xi32>
    %c96_i32 = arith.constant 96 : i32
    %19 = vector.broadcast %c96_i32 : i32 to vector<2x128xi32>
    %20 = arith.cmpi slt, %18, %19 : vector<2x128xi32>
    %c0_15 = arith.constant 0 : index
    %c0_16 = arith.constant 0 : index
    %c0_17 = arith.constant 0 : index
    %21 = vector.load %arg2[%c0_15, %c0_16, %c0_17] : memref<2x2x32xf32, #tpu.memory_space<vmem>>, vector<2x2x32xf32>
    %c0_18 = arith.constant 0 : index
    %c0_19 = arith.constant 0 : index
    %c0_20 = arith.constant 0 : index
    %22 = vector.load %arg3[%c0_18, %c0_19, %c0_20] : memref<2x2x32xf32, #tpu.memory_space<vmem>>, vector<2x2x32xf32>
    %23 = vector.extract_strided_slice %21 {offsets = [0, 0, 0], sizes = [2, 1, 32], strides = [1, 1, 1]} : vector<2x2x32xf32> to vector<2x1x32xf32>
    %24 = vector.shape_cast %23 : vector<2x1x32xf32> to vector<2x32xf32>
    %25 = vector.extract_strided_slice %22 {offsets = [0, 0, 0], sizes = [2, 1, 32], strides = [1, 1, 1]} : vector<2x2x32xf32> to vector<2x1x32xf32>
    %26 = vector.shape_cast %25 : vector<2x1x32xf32> to vector<2x32xf32>
    %27 = vector.extract_strided_slice %21 {offsets = [0, 1, 0], sizes = [2, 1, 32], strides = [1, 1, 1]} : vector<2x2x32xf32> to vector<2x1x32xf32>
    %28 = vector.shape_cast %27 : vector<2x1x32xf32> to vector<2x32xf32>
    %29 = vector.extract_strided_slice %22 {offsets = [0, 1, 0], sizes = [2, 1, 32], strides = [1, 1, 1]} : vector<2x2x32xf32> to vector<2x1x32xf32>
    %30 = vector.shape_cast %29 : vector<2x1x32xf32> to vector<2x32xf32>
    %c0_i32 = arith.constant 0 : i32
    %31 = arith.index_cast %c0_i32 : i32 to index
    %c0_21 = arith.constant 0 : index
    %c0_22 = arith.constant 0 : index
    %32 = vector.load %arg16[%31, %c0_21, %c0_22] : memref<8x2x128xf32, #tpu.memory_space<vmem>>, vector<1x2x128xf32>
    %33 = vector.shape_cast %32 : vector<1x2x128xf32> to vector<2x128xf32>
    %cst_23 = arith.constant dense<0.000000e+00> : vector<2x128xf32>
    %34 = tpu.matmul %24, %0, %cst_23 {dimension_numbers = #tpu.dot_dimension_numbers<[1], [0], [0], [1], [0, 0, 1, 1], [], []>} : vector<2x32xf32>, vector<32x128xf32>, vector<2x128xf32> -> vector<2x128xf32>
    %35 = arith.addf %33, %34 : vector<2x128xf32>
    %36 = arith.negf %35 : vector<2x128xf32>
    %37 = math.exp %36 : vector<2x128xf32>
    %cst_24 = arith.constant 1.000000e+00 : f32
    %38 = vector.broadcast %cst_24 : f32 to vector<2x128xf32>
    %39 = arith.addf %38, %37 : vector<2x128xf32>
    %40 = arith.divf %38, %39 : vector<2x128xf32>
    %41 = math.tanh %35 : vector<2x128xf32>
    %42 = arith.select %20, %40, %41 : vector<2x128xi1>, vector<2x128xf32>
    %43 = vector.extract_strided_slice %42 {offsets = [0, 0], sizes = [2, 32], strides = [1, 1]} : vector<2x128xf32> to vector<2x32xf32>
    %44 = vector.extract_strided_slice %42 {offsets = [0, 32], sizes = [2, 32], strides = [1, 1]} : vector<2x128xf32> to vector<2x32xf32>
    %45 = vector.extract_strided_slice %42 {offsets = [0, 64], sizes = [2, 32], strides = [1, 1]} : vector<2x128xf32> to vector<2x32xf32>
    %46 = vector.extract_strided_slice %42 {offsets = [0, 96], sizes = [2, 32], strides = [1, 1]} : vector<2x128xf32> to vector<2x32xf32>
    %47 = arith.mulf %44, %26 : vector<2x32xf32>
    %48 = arith.mulf %43, %46 : vector<2x32xf32>
    %49 = arith.addf %47, %48 : vector<2x32xf32>
    %50 = math.tanh %49 : vector<2x32xf32>
    %51 = arith.mulf %45, %50 : vector<2x32xf32>
    %52 = tpu.concatenate %51, %28 in 1 : vector<2x32xf32>, vector<2x32xf32> -> vector<2x64xf32>
    %cst_25 = arith.constant dense<0.000000e+00> : vector<2x128xf32>
    %53 = tpu.matmul %52, %1, %cst_25 {dimension_numbers = #tpu.dot_dimension_numbers<[1], [0], [0], [1], [0, 0, 1, 1], [], []>} : vector<2x64xf32>, vector<64x128xf32>, vector<2x128xf32> -> vector<2x128xf32>
    %54 = arith.addf %53, %4 : vector<2x128xf32>
    %55 = arith.negf %54 : vector<2x128xf32>
    %56 = math.exp %55 : vector<2x128xf32>
    %cst_26 = arith.constant 1.000000e+00 : f32
    %57 = vector.broadcast %cst_26 : f32 to vector<2x128xf32>
    %58 = arith.addf %57, %56 : vector<2x128xf32>
    %59 = arith.divf %57, %58 : vector<2x128xf32>
    %60 = math.tanh %54 : vector<2x128xf32>
    %61 = arith.select %20, %59, %60 : vector<2x128xi1>, vector<2x128xf32>
    %62 = vector.extract_strided_slice %61 {offsets = [0, 0], sizes = [2, 32], strides = [1, 1]} : vector<2x128xf32> to vector<2x32xf32>
    %63 = vector.extract_strided_slice %61 {offsets = [0, 32], sizes = [2, 32], strides = [1, 1]} : vector<2x128xf32> to vector<2x32xf32>
    %64 = vector.extract_strided_slice %61 {offsets = [0, 64], sizes = [2, 32], strides = [1, 1]} : vector<2x128xf32> to vector<2x32xf32>
    %65 = vector.extract_strided_slice %61 {offsets = [0, 96], sizes = [2, 32], strides = [1, 1]} : vector<2x128xf32> to vector<2x32xf32>
    %66 = arith.mulf %63, %30 : vector<2x32xf32>
    %67 = arith.mulf %62, %65 : vector<2x32xf32>
    %68 = arith.addf %66, %67 : vector<2x32xf32>
    %69 = math.tanh %68 : vector<2x32xf32>
    %70 = arith.mulf %64, %69 : vector<2x32xf32>
    %71 = arith.index_cast %c0_i32 : i32 to index
    %c0_27 = arith.constant 0 : index
    %c0_28 = arith.constant 0 : index
    %72 = vector.load %arg17[%71, %c0_27, %c0_28] : memref<8x2x32xf32, #tpu.memory_space<vmem>>, vector<1x2x32xf32>
    %73 = vector.shape_cast %72 : vector<1x2x32xf32> to vector<2x32xf32>
    %74 = vector.shape_cast %70 : vector<2x32xf32> to vector<1x2x32xf32>
    tpu.vector_store %arg17[%71, %c0_27, %c0_28], %74 {strides = array<i32>} : memref<8x2x32xf32, #tpu.memory_space<vmem>>, vector<1x2x32xf32>,
    %c1_i32 = arith.constant 1 : i32
    %75 = arith.index_cast %c1_i32 : i32 to index
    %c0_29 = arith.constant 0 : index
    %c0_30 = arith.constant 0 : index
    %76 = vector.load %arg16[%75, %c0_29, %c0_30] : memref<8x2x128xf32, #tpu.memory_space<vmem>>, vector<1x2x128xf32>
    %77 = vector.shape_cast %76 : vector<1x2x128xf32> to vector<2x128xf32>
    %cst_31 = arith.constant dense<0.000000e+00> : vector<2x128xf32>
    %78 = tpu.matmul %51, %0, %cst_31 {dimension_numbers = #tpu.dot_dimension_numbers<[1], [0], [0], [1], [0, 0, 1, 1], [], []>} : vector<2x32xf32>, vector<32x128xf32>, vector<2x128xf32> -> vector<2x128xf32>
    %79 = arith.addf %77, %78 : vector<2x128xf32>
    %80 = arith.negf %79 : vector<2x128xf32>
    %81 = math.exp %80 : vector<2x128xf32>
    %cst_32 = arith.constant 1.000000e+00 : f32
    %82 = vector.broadcast %cst_32 : f32 to vector<2x128xf32>
    %83 = arith.addf %82, %81 : vector<2x128xf32>
    %84 = arith.divf %82, %83 : vector<2x128xf32>
    %85 = math.tanh %79 : vector<2x128xf32>
    %86 = arith.select %20, %84, %85 : vector<2x128xi1>, vector<2x128xf32>
    %87 = vector.extract_strided_slice %86 {offsets = [0, 0], sizes = [2, 32], strides = [1, 1]} : vector<2x128xf32> to vector<2x32xf32>
    %88 = vector.extract_strided_slice %86 {offsets = [0, 32], sizes = [2, 32], strides = [1, 1]} : vector<2x128xf32> to vector<2x32xf32>
    %89 = vector.extract_strided_slice %86 {offsets = [0, 64], sizes = [2, 32], strides = [1, 1]} : vector<2x128xf32> to vector<2x32xf32>
    %90 = vector.extract_strided_slice %86 {offsets = [0, 96], sizes = [2, 32], strides = [1, 1]} : vector<2x128xf32> to vector<2x32xf32>
    %91 = arith.mulf %88, %49 : vector<2x32xf32>
    %92 = arith.mulf %87, %90 : vector<2x32xf32>
    %93 = arith.addf %91, %92 : vector<2x32xf32>
    %94 = math.tanh %93 : vector<2x32xf32>
    %95 = arith.mulf %89, %94 : vector<2x32xf32>
    %96 = tpu.concatenate %95, %70 in 1 : vector<2x32xf32>, vector<2x32xf32> -> vector<2x64xf32>
    %cst_33 = arith.constant dense<0.000000e+00> : vector<2x128xf32>
    %97 = tpu.matmul %96, %1, %cst_33 {dimension_numbers = #tpu.dot_dimension_numbers<[1], [0], [0], [1], [0, 0, 1, 1], [], []>} : vector<2x64xf32>, vector<64x128xf32>, vector<2x128xf32> -> vector<2x128xf32>
    %98 = arith.addf %97, %4 : vector<2x128xf32>
    %99 = arith.negf %98 : vector<2x128xf32>
    %100 = math.exp %99 : vector<2x128xf32>
    %cst_34 = arith.constant 1.000000e+00 : f32
    %101 = vector.broadcast %cst_34 : f32 to vector<2x128xf32>
    %102 = arith.addf %101, %100 : vector<2x128xf32>
    %103 = arith.divf %101, %102 : vector<2x128xf32>
    %104 = math.tanh %98 : vector<2x128xf32>
    %105 = arith.select %20, %103, %104 : vector<2x128xi1>, vector<2x128xf32>
    %106 = vector.extract_strided_slice %105 {offsets = [0, 0], sizes = [2, 32], strides = [1, 1]} : vector<2x128xf32> to vector<2x32xf32>
    %107 = vector.extract_strided_slice %105 {offsets = [0, 32], sizes = [2, 32], strides = [1, 1]} : vector<2x128xf32> to vector<2x32xf32>
    %108 = vector.extract_strided_slice %105 {offsets = [0, 64], sizes = [2, 32], strides = [1, 1]} : vector<2x128xf32> to vector<2x32xf32>
    %109 = vector.extract_strided_slice %105 {offsets = [0, 96], sizes = [2, 32], strides = [1, 1]} : vector<2x128xf32> to vector<2x32xf32>
    %110 = arith.mulf %107, %68 : vector<2x32xf32>
    %111 = arith.mulf %106, %109 : vector<2x32xf32>
    %112 = arith.addf %110, %111 : vector<2x32xf32>
    %113 = math.tanh %112 : vector<2x32xf32>
    %114 = arith.mulf %108, %113 : vector<2x32xf32>
    %115 = arith.index_cast %c1_i32 : i32 to index
    %c0_35 = arith.constant 0 : index
    %c0_36 = arith.constant 0 : index
    %116 = vector.load %arg17[%115, %c0_35, %c0_36] : memref<8x2x32xf32, #tpu.memory_space<vmem>>, vector<1x2x32xf32>
    %117 = vector.shape_cast %116 : vector<1x2x32xf32> to vector<2x32xf32>
    %118 = vector.shape_cast %114 : vector<2x32xf32> to vector<1x2x32xf32>
    tpu.vector_store %arg17[%115, %c0_35, %c0_36], %118 {strides = array<i32>} : memref<8x2x32xf32, #tpu.memory_space<vmem>>, vector<1x2x32xf32>,
    %c2_i32 = arith.constant 2 : i32
    %119 = arith.index_cast %c2_i32 : i32 to index
    %c0_37 = arith.constant 0 : index
    %c0_38 = arith.constant 0 : index
    %120 = vector.load %arg16[%119, %c0_37, %c0_38] : memref<8x2x128xf32, #tpu.memory_space<vmem>>, vector<1x2x128xf32>
    %121 = vector.shape_cast %120 : vector<1x2x128xf32> to vector<2x128xf32>
    %cst_39 = arith.constant dense<0.000000e+00> : vector<2x128xf32>
    %122 = tpu.matmul %95, %0, %cst_39 {dimension_numbers = #tpu.dot_dimension_numbers<[1], [0], [0], [1], [0, 0, 1, 1], [], []>} : vector<2x32xf32>, vector<32x128xf32>, vector<2x128xf32> -> vector<2x128xf32>
    %123 = arith.addf %121, %122 : vector<2x128xf32>
    %124 = arith.negf %123 : vector<2x128xf32>
    %125 = math.exp %124 : vector<2x128xf32>
    %cst_40 = arith.constant 1.000000e+00 : f32
    %126 = vector.broadcast %cst_40 : f32 to vector<2x128xf32>
    %127 = arith.addf %126, %125 : vector<2x128xf32>
    %128 = arith.divf %126, %127 : vector<2x128xf32>
    %129 = math.tanh %123 : vector<2x128xf32>
    %130 = arith.select %20, %128, %129 : vector<2x128xi1>, vector<2x128xf32>
    %131 = vector.extract_strided_slice %130 {offsets = [0, 0], sizes = [2, 32], strides = [1, 1]} : vector<2x128xf32> to vector<2x32xf32>
    %132 = vector.extract_strided_slice %130 {offsets = [0, 32], sizes = [2, 32], strides = [1, 1]} : vector<2x128xf32> to vector<2x32xf32>
    %133 = vector.extract_strided_slice %130 {offsets = [0, 64], sizes = [2, 32], strides = [1, 1]} : vector<2x128xf32> to vector<2x32xf32>
    %134 = vector.extract_strided_slice %130 {offsets = [0, 96], sizes = [2, 32], strides = [1, 1]} : vector<2x128xf32> to vector<2x32xf32>
    %135 = arith.mulf %132, %93 : vector<2x32xf32>
    %136 = arith.mulf %131, %134 : vector<2x32xf32>
    %137 = arith.addf %135, %136 : vector<2x32xf32>
    %138 = math.tanh %137 : vector<2x32xf32>
    %139 = arith.mulf %133, %138 : vector<2x32xf32>
    %140 = tpu.concatenate %139, %114 in 1 : vector<2x32xf32>, vector<2x32xf32> -> vector<2x64xf32>
    %cst_41 = arith.constant dense<0.000000e+00> : vector<2x128xf32>
    %141 = tpu.matmul %140, %1, %cst_41 {dimension_numbers = #tpu.dot_dimension_numbers<[1], [0], [0], [1], [0, 0, 1, 1], [], []>} : vector<2x64xf32>, vector<64x128xf32>, vector<2x128xf32> -> vector<2x128xf32>
    %142 = arith.addf %141, %4 : vector<2x128xf32>
    %143 = arith.negf %142 : vector<2x128xf32>
    %144 = math.exp %143 : vector<2x128xf32>
    %cst_42 = arith.constant 1.000000e+00 : f32
    %145 = vector.broadcast %cst_42 : f32 to vector<2x128xf32>
    %146 = arith.addf %145, %144 : vector<2x128xf32>
    %147 = arith.divf %145, %146 : vector<2x128xf32>
    %148 = math.tanh %142 : vector<2x128xf32>
    %149 = arith.select %20, %147, %148 : vector<2x128xi1>, vector<2x128xf32>
    %150 = vector.extract_strided_slice %149 {offsets = [0, 0], sizes = [2, 32], strides = [1, 1]} : vector<2x128xf32> to vector<2x32xf32>
    %151 = vector.extract_strided_slice %149 {offsets = [0, 32], sizes = [2, 32], strides = [1, 1]} : vector<2x128xf32> to vector<2x32xf32>
    %152 = vector.extract_strided_slice %149 {offsets = [0, 64], sizes = [2, 32], strides = [1, 1]} : vector<2x128xf32> to vector<2x32xf32>
    %153 = vector.extract_strided_slice %149 {offsets = [0, 96], sizes = [2, 32], strides = [1, 1]} : vector<2x128xf32> to vector<2x32xf32>
    %154 = arith.mulf %151, %112 : vector<2x32xf32>
    %155 = arith.mulf %150, %153 : vector<2x32xf32>
    %156 = arith.addf %154, %155 : vector<2x32xf32>
    %157 = math.tanh %156 : vector<2x32xf32>
    %158 = arith.mulf %152, %157 : vector<2x32xf32>
    %159 = arith.index_cast %c2_i32 : i32 to index
    %c0_43 = arith.constant 0 : index
    %c0_44 = arith.constant 0 : index
    %160 = vector.load %arg17[%159, %c0_43, %c0_44] : memref<8x2x32xf32, #tpu.memory_space<vmem>>, vector<1x2x32xf32>
    %161 = vector.shape_cast %160 : vector<1x2x32xf32> to vector<2x32xf32>
    %162 = vector.shape_cast %158 : vector<2x32xf32> to vector<1x2x32xf32>
    tpu.vector_store %arg17[%159, %c0_43, %c0_44], %162 {strides = array<i32>} : memref<8x2x32xf32, #tpu.memory_space<vmem>>, vector<1x2x32xf32>,
    %c3_i32 = arith.constant 3 : i32
    %163 = arith.index_cast %c3_i32 : i32 to index
    %c0_45 = arith.constant 0 : index
    %c0_46 = arith.constant 0 : index
    %164 = vector.load %arg16[%163, %c0_45, %c0_46] : memref<8x2x128xf32, #tpu.memory_space<vmem>>, vector<1x2x128xf32>
    %165 = vector.shape_cast %164 : vector<1x2x128xf32> to vector<2x128xf32>
    %cst_47 = arith.constant dense<0.000000e+00> : vector<2x128xf32>
    %166 = tpu.matmul %139, %0, %cst_47 {dimension_numbers = #tpu.dot_dimension_numbers<[1], [0], [0], [1], [0, 0, 1, 1], [], []>} : vector<2x32xf32>, vector<32x128xf32>, vector<2x128xf32> -> vector<2x128xf32>
    %167 = arith.addf %165, %166 : vector<2x128xf32>
    %168 = arith.negf %167 : vector<2x128xf32>
    %169 = math.exp %168 : vector<2x128xf32>
    %cst_48 = arith.constant 1.000000e+00 : f32
    %170 = vector.broadcast %cst_48 : f32 to vector<2x128xf32>
    %171 = arith.addf %170, %169 : vector<2x128xf32>
    %172 = arith.divf %170, %171 : vector<2x128xf32>
    %173 = math.tanh %167 : vector<2x128xf32>
    %174 = arith.select %20, %172, %173 : vector<2x128xi1>, vector<2x128xf32>
    %175 = vector.extract_strided_slice %174 {offsets = [0, 0], sizes = [2, 32], strides = [1, 1]} : vector<2x128xf32> to vector<2x32xf32>
    %176 = vector.extract_strided_slice %174 {offsets = [0, 32], sizes = [2, 32], strides = [1, 1]} : vector<2x128xf32> to vector<2x32xf32>
    %177 = vector.extract_strided_slice %174 {offsets = [0, 64], sizes = [2, 32], strides = [1, 1]} : vector<2x128xf32> to vector<2x32xf32>
    %178 = vector.extract_strided_slice %174 {offsets = [0, 96], sizes = [2, 32], strides = [1, 1]} : vector<2x128xf32> to vector<2x32xf32>
    %179 = arith.mulf %176, %137 : vector<2x32xf32>
    %180 = arith.mulf %175, %178 : vector<2x32xf32>
    %181 = arith.addf %179, %180 : vector<2x32xf32>
    %182 = math.tanh %181 : vector<2x32xf32>
    %183 = arith.mulf %177, %182 : vector<2x32xf32>
    %184 = tpu.concatenate %183, %158 in 1 : vector<2x32xf32>, vector<2x32xf32> -> vector<2x64xf32>
    %cst_49 = arith.constant dense<0.000000e+00> : vector<2x128xf32>
    %185 = tpu.matmul %184, %1, %cst_49 {dimension_numbers = #tpu.dot_dimension_numbers<[1], [0], [0], [1], [0, 0, 1, 1], [], []>} : vector<2x64xf32>, vector<64x128xf32>, vector<2x128xf32> -> vector<2x128xf32>
    %186 = arith.addf %185, %4 : vector<2x128xf32>
    %187 = arith.negf %186 : vector<2x128xf32>
    %188 = math.exp %187 : vector<2x128xf32>
    %cst_50 = arith.constant 1.000000e+00 : f32
    %189 = vector.broadcast %cst_50 : f32 to vector<2x128xf32>
    %190 = arith.addf %189, %188 : vector<2x128xf32>
    %191 = arith.divf %189, %190 : vector<2x128xf32>
    %192 = math.tanh %186 : vector<2x128xf32>
    %193 = arith.select %20, %191, %192 : vector<2x128xi1>, vector<2x128xf32>
    %194 = vector.extract_strided_slice %193 {offsets = [0, 0], sizes = [2, 32], strides = [1, 1]} : vector<2x128xf32> to vector<2x32xf32>
    %195 = vector.extract_strided_slice %193 {offsets = [0, 32], sizes = [2, 32], strides = [1, 1]} : vector<2x128xf32> to vector<2x32xf32>
    %196 = vector.extract_strided_slice %193 {offsets = [0, 64], sizes = [2, 32], strides = [1, 1]} : vector<2x128xf32> to vector<2x32xf32>
    %197 = vector.extract_strided_slice %193 {offsets = [0, 96], sizes = [2, 32], strides = [1, 1]} : vector<2x128xf32> to vector<2x32xf32>
    %198 = arith.mulf %195, %156 : vector<2x32xf32>
    %199 = arith.mulf %194, %197 : vector<2x32xf32>
    %200 = arith.addf %198, %199 : vector<2x32xf32>
    %201 = math.tanh %200 : vector<2x32xf32>
    %202 = arith.mulf %196, %201 : vector<2x32xf32>
    %203 = arith.index_cast %c3_i32 : i32 to index
    %c0_51 = arith.constant 0 : index
    %c0_52 = arith.constant 0 : index
    %204 = vector.load %arg17[%203, %c0_51, %c0_52] : memref<8x2x32xf32, #tpu.memory_space<vmem>>, vector<1x2x32xf32>
    %205 = vector.shape_cast %204 : vector<1x2x32xf32> to vector<2x32xf32>
    %206 = vector.shape_cast %202 : vector<2x32xf32> to vector<1x2x32xf32>
    tpu.vector_store %arg17[%203, %c0_51, %c0_52], %206 {strides = array<i32>} : memref<8x2x32xf32, #tpu.memory_space<vmem>>, vector<1x2x32xf32>,
    %c4_i32 = arith.constant 4 : i32
    %207 = arith.index_cast %c4_i32 : i32 to index
    %c0_53 = arith.constant 0 : index
    %c0_54 = arith.constant 0 : index
    %208 = vector.load %arg16[%207, %c0_53, %c0_54] : memref<8x2x128xf32, #tpu.memory_space<vmem>>, vector<1x2x128xf32>
    %209 = vector.shape_cast %208 : vector<1x2x128xf32> to vector<2x128xf32>
    %cst_55 = arith.constant dense<0.000000e+00> : vector<2x128xf32>
    %210 = tpu.matmul %183, %0, %cst_55 {dimension_numbers = #tpu.dot_dimension_numbers<[1], [0], [0], [1], [0, 0, 1, 1], [], []>} : vector<2x32xf32>, vector<32x128xf32>, vector<2x128xf32> -> vector<2x128xf32>
    %211 = arith.addf %209, %210 : vector<2x128xf32>
    %212 = arith.negf %211 : vector<2x128xf32>
    %213 = math.exp %212 : vector<2x128xf32>
    %cst_56 = arith.constant 1.000000e+00 : f32
    %214 = vector.broadcast %cst_56 : f32 to vector<2x128xf32>
    %215 = arith.addf %214, %213 : vector<2x128xf32>
    %216 = arith.divf %214, %215 : vector<2x128xf32>
    %217 = math.tanh %211 : vector<2x128xf32>
    %218 = arith.select %20, %216, %217 : vector<2x128xi1>, vector<2x128xf32>
    %219 = vector.extract_strided_slice %218 {offsets = [0, 0], sizes = [2, 32], strides = [1, 1]} : vector<2x128xf32> to vector<2x32xf32>
    %220 = vector.extract_strided_slice %218 {offsets = [0, 32], sizes = [2, 32], strides = [1, 1]} : vector<2x128xf32> to vector<2x32xf32>
    %221 = vector.extract_strided_slice %218 {offsets = [0, 64], sizes = [2, 32], strides = [1, 1]} : vector<2x128xf32> to vector<2x32xf32>
    %222 = vector.extract_strided_slice %218 {offsets = [0, 96], sizes = [2, 32], strides = [1, 1]} : vector<2x128xf32> to vector<2x32xf32>
    %223 = arith.mulf %220, %181 : vector<2x32xf32>
    %224 = arith.mulf %219, %222 : vector<2x32xf32>
    %225 = arith.addf %223, %224 : vector<2x32xf32>
    %226 = math.tanh %225 : vector<2x32xf32>
    %227 = arith.mulf %221, %226 : vector<2x32xf32>
    %228 = tpu.concatenate %227, %202 in 1 : vector<2x32xf32>, vector<2x32xf32> -> vector<2x64xf32>
    %cst_57 = arith.constant dense<0.000000e+00> : vector<2x128xf32>
    %229 = tpu.matmul %228, %1, %cst_57 {dimension_numbers = #tpu.dot_dimension_numbers<[1], [0], [0], [1], [0, 0, 1, 1], [], []>} : vector<2x64xf32>, vector<64x128xf32>, vector<2x128xf32> -> vector<2x128xf32>
    %230 = arith.addf %229, %4 : vector<2x128xf32>
    %231 = arith.negf %230 : vector<2x128xf32>
    %232 = math.exp %231 : vector<2x128xf32>
    %cst_58 = arith.constant 1.000000e+00 : f32
    %233 = vector.broadcast %cst_58 : f32 to vector<2x128xf32>
    %234 = arith.addf %233, %232 : vector<2x128xf32>
    %235 = arith.divf %233, %234 : vector<2x128xf32>
    %236 = math.tanh %230 : vector<2x128xf32>
    %237 = arith.select %20, %235, %236 : vector<2x128xi1>, vector<2x128xf32>
    %238 = vector.extract_strided_slice %237 {offsets = [0, 0], sizes = [2, 32], strides = [1, 1]} : vector<2x128xf32> to vector<2x32xf32>
    %239 = vector.extract_strided_slice %237 {offsets = [0, 32], sizes = [2, 32], strides = [1, 1]} : vector<2x128xf32> to vector<2x32xf32>
    %240 = vector.extract_strided_slice %237 {offsets = [0, 64], sizes = [2, 32], strides = [1, 1]} : vector<2x128xf32> to vector<2x32xf32>
    %241 = vector.extract_strided_slice %237 {offsets = [0, 96], sizes = [2, 32], strides = [1, 1]} : vector<2x128xf32> to vector<2x32xf32>
    %242 = arith.mulf %239, %200 : vector<2x32xf32>
    %243 = arith.mulf %238, %241 : vector<2x32xf32>
    %244 = arith.addf %242, %243 : vector<2x32xf32>
    %245 = math.tanh %244 : vector<2x32xf32>
    %246 = arith.mulf %240, %245 : vector<2x32xf32>
    %247 = arith.index_cast %c4_i32 : i32 to index
    %c0_59 = arith.constant 0 : index
    %c0_60 = arith.constant 0 : index
    %248 = vector.load %arg17[%247, %c0_59, %c0_60] : memref<8x2x32xf32, #tpu.memory_space<vmem>>, vector<1x2x32xf32>
    %249 = vector.shape_cast %248 : vector<1x2x32xf32> to vector<2x32xf32>
    %250 = vector.shape_cast %246 : vector<2x32xf32> to vector<1x2x32xf32>
    tpu.vector_store %arg17[%247, %c0_59, %c0_60], %250 {strides = array<i32>} : memref<8x2x32xf32, #tpu.memory_space<vmem>>, vector<1x2x32xf32>,
    %c5_i32 = arith.constant 5 : i32
    %251 = arith.index_cast %c5_i32 : i32 to index
    %c0_61 = arith.constant 0 : index
    %c0_62 = arith.constant 0 : index
    %252 = vector.load %arg16[%251, %c0_61, %c0_62] : memref<8x2x128xf32, #tpu.memory_space<vmem>>, vector<1x2x128xf32>
    %253 = vector.shape_cast %252 : vector<1x2x128xf32> to vector<2x128xf32>
    %cst_63 = arith.constant dense<0.000000e+00> : vector<2x128xf32>
    %254 = tpu.matmul %227, %0, %cst_63 {dimension_numbers = #tpu.dot_dimension_numbers<[1], [0], [0], [1], [0, 0, 1, 1], [], []>} : vector<2x32xf32>, vector<32x128xf32>, vector<2x128xf32> -> vector<2x128xf32>
    %255 = arith.addf %253, %254 : vector<2x128xf32>
    %256 = arith.negf %255 : vector<2x128xf32>
    %257 = math.exp %256 : vector<2x128xf32>
    %cst_64 = arith.constant 1.000000e+00 : f32
    %258 = vector.broadcast %cst_64 : f32 to vector<2x128xf32>
    %259 = arith.addf %258, %257 : vector<2x128xf32>
    %260 = arith.divf %258, %259 : vector<2x128xf32>
    %261 = math.tanh %255 : vector<2x128xf32>
    %262 = arith.select %20, %260, %261 : vector<2x128xi1>, vector<2x128xf32>
    %263 = vector.extract_strided_slice %262 {offsets = [0, 0], sizes = [2, 32], strides = [1, 1]} : vector<2x128xf32> to vector<2x32xf32>
    %264 = vector.extract_strided_slice %262 {offsets = [0, 32], sizes = [2, 32], strides = [1, 1]} : vector<2x128xf32> to vector<2x32xf32>
    %265 = vector.extract_strided_slice %262 {offsets = [0, 64], sizes = [2, 32], strides = [1, 1]} : vector<2x128xf32> to vector<2x32xf32>
    %266 = vector.extract_strided_slice %262 {offsets = [0, 96], sizes = [2, 32], strides = [1, 1]} : vector<2x128xf32> to vector<2x32xf32>
    %267 = arith.mulf %264, %225 : vector<2x32xf32>
    %268 = arith.mulf %263, %266 : vector<2x32xf32>
    %269 = arith.addf %267, %268 : vector<2x32xf32>
    %270 = math.tanh %269 : vector<2x32xf32>
    %271 = arith.mulf %265, %270 : vector<2x32xf32>
    %272 = tpu.concatenate %271, %246 in 1 : vector<2x32xf32>, vector<2x32xf32> -> vector<2x64xf32>
    %cst_65 = arith.constant dense<0.000000e+00> : vector<2x128xf32>
    %273 = tpu.matmul %272, %1, %cst_65 {dimension_numbers = #tpu.dot_dimension_numbers<[1], [0], [0], [1], [0, 0, 1, 1], [], []>} : vector<2x64xf32>, vector<64x128xf32>, vector<2x128xf32> -> vector<2x128xf32>
    %274 = arith.addf %273, %4 : vector<2x128xf32>
    %275 = arith.negf %274 : vector<2x128xf32>
    %276 = math.exp %275 : vector<2x128xf32>
    %cst_66 = arith.constant 1.000000e+00 : f32
    %277 = vector.broadcast %cst_66 : f32 to vector<2x128xf32>
    %278 = arith.addf %277, %276 : vector<2x128xf32>
    %279 = arith.divf %277, %278 : vector<2x128xf32>
    %280 = math.tanh %274 : vector<2x128xf32>
    %281 = arith.select %20, %279, %280 : vector<2x128xi1>, vector<2x128xf32>
    %282 = vector.extract_strided_slice %281 {offsets = [0, 0], sizes = [2, 32], strides = [1, 1]} : vector<2x128xf32> to vector<2x32xf32>
    %283 = vector.extract_strided_slice %281 {offsets = [0, 32], sizes = [2, 32], strides = [1, 1]} : vector<2x128xf32> to vector<2x32xf32>
    %284 = vector.extract_strided_slice %281 {offsets = [0, 64], sizes = [2, 32], strides = [1, 1]} : vector<2x128xf32> to vector<2x32xf32>
    %285 = vector.extract_strided_slice %281 {offsets = [0, 96], sizes = [2, 32], strides = [1, 1]} : vector<2x128xf32> to vector<2x32xf32>
    %286 = arith.mulf %283, %244 : vector<2x32xf32>
    %287 = arith.mulf %282, %285 : vector<2x32xf32>
    %288 = arith.addf %286, %287 : vector<2x32xf32>
    %289 = math.tanh %288 : vector<2x32xf32>
    %290 = arith.mulf %284, %289 : vector<2x32xf32>
    %291 = arith.index_cast %c5_i32 : i32 to index
    %c0_67 = arith.constant 0 : index
    %c0_68 = arith.constant 0 : index
    %292 = vector.load %arg17[%291, %c0_67, %c0_68] : memref<8x2x32xf32, #tpu.memory_space<vmem>>, vector<1x2x32xf32>
    %293 = vector.shape_cast %292 : vector<1x2x32xf32> to vector<2x32xf32>
    %294 = vector.shape_cast %290 : vector<2x32xf32> to vector<1x2x32xf32>
    tpu.vector_store %arg17[%291, %c0_67, %c0_68], %294 {strides = array<i32>} : memref<8x2x32xf32, #tpu.memory_space<vmem>>, vector<1x2x32xf32>,
    %c6_i32 = arith.constant 6 : i32
    %295 = arith.index_cast %c6_i32 : i32 to index
    %c0_69 = arith.constant 0 : index
    %c0_70 = arith.constant 0 : index
    %296 = vector.load %arg16[%295, %c0_69, %c0_70] : memref<8x2x128xf32, #tpu.memory_space<vmem>>, vector<1x2x128xf32>
    %297 = vector.shape_cast %296 : vector<1x2x128xf32> to vector<2x128xf32>
    %cst_71 = arith.constant dense<0.000000e+00> : vector<2x128xf32>
    %298 = tpu.matmul %271, %0, %cst_71 {dimension_numbers = #tpu.dot_dimension_numbers<[1], [0], [0], [1], [0, 0, 1, 1], [], []>} : vector<2x32xf32>, vector<32x128xf32>, vector<2x128xf32> -> vector<2x128xf32>
    %299 = arith.addf %297, %298 : vector<2x128xf32>
    %300 = arith.negf %299 : vector<2x128xf32>
    %301 = math.exp %300 : vector<2x128xf32>
    %cst_72 = arith.constant 1.000000e+00 : f32
    %302 = vector.broadcast %cst_72 : f32 to vector<2x128xf32>
    %303 = arith.addf %302, %301 : vector<2x128xf32>
    %304 = arith.divf %302, %303 : vector<2x128xf32>
    %305 = math.tanh %299 : vector<2x128xf32>
    %306 = arith.select %20, %304, %305 : vector<2x128xi1>, vector<2x128xf32>
    %307 = vector.extract_strided_slice %306 {offsets = [0, 0], sizes = [2, 32], strides = [1, 1]} : vector<2x128xf32> to vector<2x32xf32>
    %308 = vector.extract_strided_slice %306 {offsets = [0, 32], sizes = [2, 32], strides = [1, 1]} : vector<2x128xf32> to vector<2x32xf32>
    %309 = vector.extract_strided_slice %306 {offsets = [0, 64], sizes = [2, 32], strides = [1, 1]} : vector<2x128xf32> to vector<2x32xf32>
    %310 = vector.extract_strided_slice %306 {offsets = [0, 96], sizes = [2, 32], strides = [1, 1]} : vector<2x128xf32> to vector<2x32xf32>
    %311 = arith.mulf %308, %269 : vector<2x32xf32>
    %312 = arith.mulf %307, %310 : vector<2x32xf32>
    %313 = arith.addf %311, %312 : vector<2x32xf32>
    %314 = math.tanh %313 : vector<2x32xf32>
    %315 = arith.mulf %309, %314 : vector<2x32xf32>
    %316 = tpu.concatenate %315, %290 in 1 : vector<2x32xf32>, vector<2x32xf32> -> vector<2x64xf32>
    %cst_73 = arith.constant dense<0.000000e+00> : vector<2x128xf32>
    %317 = tpu.matmul %316, %1, %cst_73 {dimension_numbers = #tpu.dot_dimension_numbers<[1], [0], [0], [1], [0, 0, 1, 1], [], []>} : vector<2x64xf32>, vector<64x128xf32>, vector<2x128xf32> -> vector<2x128xf32>
    %318 = arith.addf %317, %4 : vector<2x128xf32>
    %319 = arith.negf %318 : vector<2x128xf32>
    %320 = math.exp %319 : vector<2x128xf32>
    %cst_74 = arith.constant 1.000000e+00 : f32
    %321 = vector.broadcast %cst_74 : f32 to vector<2x128xf32>
    %322 = arith.addf %321, %320 : vector<2x128xf32>
    %323 = arith.divf %321, %322 : vector<2x128xf32>
    %324 = math.tanh %318 : vector<2x128xf32>
    %325 = arith.select %20, %323, %324 : vector<2x128xi1>, vector<2x128xf32>
    %326 = vector.extract_strided_slice %325 {offsets = [0, 0], sizes = [2, 32], strides = [1, 1]} : vector<2x128xf32> to vector<2x32xf32>
    %327 = vector.extract_strided_slice %325 {offsets = [0, 32], sizes = [2, 32], strides = [1, 1]} : vector<2x128xf32> to vector<2x32xf32>
    %328 = vector.extract_strided_slice %325 {offsets = [0, 64], sizes = [2, 32], strides = [1, 1]} : vector<2x128xf32> to vector<2x32xf32>
    %329 = vector.extract_strided_slice %325 {offsets = [0, 96], sizes = [2, 32], strides = [1, 1]} : vector<2x128xf32> to vector<2x32xf32>
    %330 = arith.mulf %327, %288 : vector<2x32xf32>
    %331 = arith.mulf %326, %329 : vector<2x32xf32>
    %332 = arith.addf %330, %331 : vector<2x32xf32>
    %333 = math.tanh %332 : vector<2x32xf32>
    %334 = arith.mulf %328, %333 : vector<2x32xf32>
    %335 = arith.index_cast %c6_i32 : i32 to index
    %c0_75 = arith.constant 0 : index
    %c0_76 = arith.constant 0 : index
    %336 = vector.load %arg17[%335, %c0_75, %c0_76] : memref<8x2x32xf32, #tpu.memory_space<vmem>>, vector<1x2x32xf32>
    %337 = vector.shape_cast %336 : vector<1x2x32xf32> to vector<2x32xf32>
    %338 = vector.shape_cast %334 : vector<2x32xf32> to vector<1x2x32xf32>
    tpu.vector_store %arg17[%335, %c0_75, %c0_76], %338 {strides = array<i32>} : memref<8x2x32xf32, #tpu.memory_space<vmem>>, vector<1x2x32xf32>,
    %c7_i32 = arith.constant 7 : i32
    %339 = arith.index_cast %c7_i32 : i32 to index
    %c0_77 = arith.constant 0 : index
    %c0_78 = arith.constant 0 : index
    %340 = vector.load %arg16[%339, %c0_77, %c0_78] : memref<8x2x128xf32, #tpu.memory_space<vmem>>, vector<1x2x128xf32>
    %341 = vector.shape_cast %340 : vector<1x2x128xf32> to vector<2x128xf32>
    %cst_79 = arith.constant dense<0.000000e+00> : vector<2x128xf32>
    %342 = tpu.matmul %315, %0, %cst_79 {dimension_numbers = #tpu.dot_dimension_numbers<[1], [0], [0], [1], [0, 0, 1, 1], [], []>} : vector<2x32xf32>, vector<32x128xf32>, vector<2x128xf32> -> vector<2x128xf32>
    %343 = arith.addf %341, %342 : vector<2x128xf32>
    %344 = arith.negf %343 : vector<2x128xf32>
    %345 = math.exp %344 : vector<2x128xf32>
    %cst_80 = arith.constant 1.000000e+00 : f32
    %346 = vector.broadcast %cst_80 : f32 to vector<2x128xf32>
    %347 = arith.addf %346, %345 : vector<2x128xf32>
    %348 = arith.divf %346, %347 : vector<2x128xf32>
    %349 = math.tanh %343 : vector<2x128xf32>
    %350 = arith.select %20, %348, %349 : vector<2x128xi1>, vector<2x128xf32>
    %351 = vector.extract_strided_slice %350 {offsets = [0, 0], sizes = [2, 32], strides = [1, 1]} : vector<2x128xf32> to vector<2x32xf32>
    %352 = vector.extract_strided_slice %350 {offsets = [0, 32], sizes = [2, 32], strides = [1, 1]} : vector<2x128xf32> to vector<2x32xf32>
    %353 = vector.extract_strided_slice %350 {offsets = [0, 64], sizes = [2, 32], strides = [1, 1]} : vector<2x128xf32> to vector<2x32xf32>
    %354 = vector.extract_strided_slice %350 {offsets = [0, 96], sizes = [2, 32], strides = [1, 1]} : vector<2x128xf32> to vector<2x32xf32>
    %355 = arith.mulf %352, %313 : vector<2x32xf32>
    %356 = arith.mulf %351, %354 : vector<2x32xf32>
    %357 = arith.addf %355, %356 : vector<2x32xf32>
    %358 = math.tanh %357 : vector<2x32xf32>
    %359 = arith.mulf %353, %358 : vector<2x32xf32>
    %360 = tpu.concatenate %359, %334 in 1 : vector<2x32xf32>, vector<2x32xf32> -> vector<2x64xf32>
    %cst_81 = arith.constant dense<0.000000e+00> : vector<2x128xf32>
    %361 = tpu.matmul %360, %1, %cst_81 {dimension_numbers = #tpu.dot_dimension_numbers<[1], [0], [0], [1], [0, 0, 1, 1], [], []>} : vector<2x64xf32>, vector<64x128xf32>, vector<2x128xf32> -> vector<2x128xf32>
    %362 = arith.addf %361, %4 : vector<2x128xf32>
    %363 = arith.negf %362 : vector<2x128xf32>
    %364 = math.exp %363 : vector<2x128xf32>
    %cst_82 = arith.constant 1.000000e+00 : f32
    %365 = vector.broadcast %cst_82 : f32 to vector<2x128xf32>
    %366 = arith.addf %365, %364 : vector<2x128xf32>
    %367 = arith.divf %365, %366 : vector<2x128xf32>
    %368 = math.tanh %362 : vector<2x128xf32>
    %369 = arith.select %20, %367, %368 : vector<2x128xi1>, vector<2x128xf32>
    %370 = vector.extract_strided_slice %369 {offsets = [0, 0], sizes = [2, 32], strides = [1, 1]} : vector<2x128xf32> to vector<2x32xf32>
    %371 = vector.extract_strided_slice %369 {offsets = [0, 32], sizes = [2, 32], strides = [1, 1]} : vector<2x128xf32> to vector<2x32xf32>
    %372 = vector.extract_strided_slice %369 {offsets = [0, 64], sizes = [2, 32], strides = [1, 1]} : vector<2x128xf32> to vector<2x32xf32>
    %373 = vector.extract_strided_slice %369 {offsets = [0, 96], sizes = [2, 32], strides = [1, 1]} : vector<2x128xf32> to vector<2x32xf32>
    %374 = arith.mulf %371, %332 : vector<2x32xf32>
    %375 = arith.mulf %370, %373 : vector<2x32xf32>
    %376 = arith.addf %374, %375 : vector<2x32xf32>
    %377 = math.tanh %376 : vector<2x32xf32>
    %378 = arith.mulf %372, %377 : vector<2x32xf32>
    %379 = arith.index_cast %c7_i32 : i32 to index
    %c0_83 = arith.constant 0 : index
    %c0_84 = arith.constant 0 : index
    %380 = vector.load %arg17[%379, %c0_83, %c0_84] : memref<8x2x32xf32, #tpu.memory_space<vmem>>, vector<1x2x32xf32>
    %381 = vector.shape_cast %380 : vector<1x2x32xf32> to vector<2x32xf32>
    %382 = vector.shape_cast %378 : vector<2x32xf32> to vector<1x2x32xf32>
    tpu.vector_store %arg17[%379, %c0_83, %c0_84], %382 {strides = array<i32>} : memref<8x2x32xf32, #tpu.memory_space<vmem>>, vector<1x2x32xf32>,
    %c8_i32 = arith.constant 8 : i32
    %383 = vector.shape_cast %359 : vector<2x32xf32> to vector<2x1x32xf32>
    %384 = vector.shape_cast %378 : vector<2x32xf32> to vector<2x1x32xf32>
    %385 = tpu.concatenate %383, %384 in 1 : vector<2x1x32xf32>, vector<2x1x32xf32> -> vector<2x2x32xf32>
    %c0_85 = arith.constant 0 : index
    %c0_86 = arith.constant 0 : index
    %c0_87 = arith.constant 0 : index
    %386 = vector.load %arg14[%c0_85, %c0_86, %c0_87] : memref<2x2x32xf32, #tpu.memory_space<vmem>>, vector<2x2x32xf32>
    tpu.vector_store %arg14[%c0_85, %c0_86, %c0_87], %385 {strides = array<i32>} : memref<2x2x32xf32, #tpu.memory_space<vmem>>, vector<2x2x32xf32>,
    %387 = vector.shape_cast %357 : vector<2x32xf32> to vector<2x1x32xf32>
    %388 = vector.shape_cast %376 : vector<2x32xf32> to vector<2x1x32xf32>
    %389 = tpu.concatenate %387, %388 in 1 : vector<2x1x32xf32>, vector<2x1x32xf32> -> vector<2x2x32xf32>
    %c0_88 = arith.constant 0 : index
    %c0_89 = arith.constant 0 : index
    %c0_90 = arith.constant 0 : index
    %390 = vector.load %arg15[%c0_88, %c0_89, %c0_90] : memref<2x2x32xf32, #tpu.memory_space<vmem>>, vector<2x2x32xf32>
    tpu.vector_store %arg15[%c0_88, %c0_89, %c0_90], %389 {strides = array<i32>} : memref<2x2x32xf32, #tpu.memory_space<vmem>>, vector<2x2x32xf32>,
    %c0_91 = arith.constant 0 : index
    %c0_92 = arith.constant 0 : index
    %c0_93 = arith.constant 0 : index
    %391 = vector.load %arg17[%c0_91, %c0_92, %c0_93] : memref<8x2x32xf32, #tpu.memory_space<vmem>>, vector<8x2x32xf32>
    %392 = vector.extract_strided_slice %391 {offsets = [0, 0, 0], sizes = [8, 1, 32], strides = [1, 1, 1]} : vector<8x2x32xf32> to vector<8x1x32xf32>
    %393 = vector.shape_cast %392 : vector<8x1x32xf32> to vector<8x32xf32>
    %394 = vector.extract_strided_slice %391 {offsets = [0, 1, 0], sizes = [8, 1, 32], strides = [1, 1, 1]} : vector<8x2x32xf32> to vector<8x1x32xf32>
    %395 = vector.shape_cast %394 : vector<8x1x32xf32> to vector<8x32xf32>
    %396 = tpu.concatenate %393, %395 in 0 : vector<8x32xf32>, vector<8x32xf32> -> vector<16x32xf32>
    %c0_94 = arith.constant 0 : index
    %c0_95 = arith.constant 0 : index
    %397 = vector.load %arg9[%c0_94, %c0_95] : memref<32x256xf32, #tpu.memory_space<vmem>>, vector<32x256xf32>
    %cst_96 = arith.constant dense<0.000000e+00> : vector<16x256xf32>
    %398 = tpu.matmul %396, %397, %cst_96 {dimension_numbers = #tpu.dot_dimension_numbers<[1], [0], [0], [1], [0, 0, 1, 1], [], []>} : vector<16x32xf32>, vector<32x256xf32>, vector<16x256xf32> -> vector<16x256xf32>
    %c0_97 = arith.constant 0 : index
    %c0_98 = arith.constant 0 : index
    %399 = vector.load %arg10[%c0_97, %c0_98] : memref<1x256xf32, #tpu.memory_space<vmem>>, vector<1x256xf32>
    %400 = vector.broadcast %399 : vector<1x256xf32> to vector<16x256xf32>
    %401 = arith.addf %398, %400 : vector<16x256xf32>
    %cst_99 = arith.constant 0.000000e+00 : f32
    %402 = vector.broadcast %cst_99 : f32 to vector<16x256xf32>
    %403 = arith.cmpf ogt, %401, %402 : vector<16x256xf32>
    %cst_100 = arith.constant 1.000000e-01 : f32
    %404 = vector.broadcast %cst_100 : f32 to vector<16x256xf32>
    %405 = arith.mulf %404, %401 : vector<16x256xf32>
    %406 = arith.select %403, %401, %405 : vector<16x256xi1>, vector<16x256xf32>
    %c0_101 = arith.constant 0 : index
    %c0_102 = arith.constant 0 : index
    %407 = vector.load %arg11[%c0_101, %c0_102] : memref<256x128xf32, #tpu.memory_space<vmem>>, vector<256x128xf32>
    %cst_103 = arith.constant dense<0.000000e+00> : vector<16x128xf32>
    %408 = tpu.matmul %406, %407, %cst_103 {dimension_numbers = #tpu.dot_dimension_numbers<[1], [0], [0], [1], [0, 0, 1, 1], [], []>} : vector<16x256xf32>, vector<256x128xf32>, vector<16x128xf32> -> vector<16x128xf32>
    %c0_104 = arith.constant 0 : index
    %c0_105 = arith.constant 0 : index
    %409 = vector.load %arg12[%c0_104, %c0_105] : memref<1x128xf32, #tpu.memory_space<vmem>>, vector<1x128xf32>
    %410 = vector.broadcast %409 : vector<1x128xf32> to vector<16x128xf32>
    %411 = arith.addf %408, %410 : vector<16x128xf32>
    %412 = vector.shape_cast %411 : vector<16x128xf32> to vector<2x8x128xf32>
    %c0_106 = arith.constant 0 : index
    %c0_107 = arith.constant 0 : index
    %c0_108 = arith.constant 0 : index
    %413 = vector.load %arg13[%c0_106, %c0_107, %c0_108] : memref<2x8x128xf32, #tpu.memory_space<vmem>>, vector<2x8x128xf32>
    tpu.vector_store %arg13[%c0_106, %c0_107, %c0_108], %412 {strides = array<i32>} : memref<2x8x128xf32, #tpu.memory_space<vmem>>, vector<2x8x128xf32>,
    return
  }
  func.func @transform_0(%arg0: i32) -> (i32, i32, i32) {
    %c0_i32 = arith.constant 0 : i32
    %c0_i32_0 = arith.constant 0 : i32
    %c0_i32_1 = arith.constant 0 : i32
    %c0_i32_2 = arith.constant 0 : i32
    return %c0_i32, %c0_i32_0, %c0_i32_1 : i32, i32, i32
  }
  func.func @transform_1(%arg0: i32) -> (i32, i32, i32) {
    %c0_i32 = arith.constant 0 : i32
    %c0_i32_0 = arith.constant 0 : i32
    %c0_i32_1 = arith.constant 0 : i32
    %c0_i32_2 = arith.constant 0 : i32
    return %c0_i32, %c0_i32_0, %c0_i32_1 : i32, i32, i32
  }
  func.func @transform_2(%arg0: i32) -> (i32, i32, i32) {
    %c0_i32 = arith.constant 0 : i32
    %c0_i32_0 = arith.constant 0 : i32
    %c0_i32_1 = arith.constant 0 : i32
    %c0_i32_2 = arith.constant 0 : i32
    return %c0_i32, %c0_i32_0, %c0_i32_1 : i32, i32, i32
  }
  func.func @transform_3(%arg0: i32) -> (i32, i32) {
    %c0_i32 = arith.constant 0 : i32
    %c0_i32_0 = arith.constant 0 : i32
    %c0_i32_1 = arith.constant 0 : i32
    return %c0_i32, %c0_i32_0 : i32, i32
  }
  func.func @transform_4(%arg0: i32) -> (i32, i32) {
    %c0_i32 = arith.constant 0 : i32
    %c0_i32_0 = arith.constant 0 : i32
    %c0_i32_1 = arith.constant 0 : i32
    return %c0_i32, %c0_i32_0 : i32, i32
  }
  func.func @transform_5(%arg0: i32) -> (i32, i32) {
    %c0_i32 = arith.constant 0 : i32
    %c0_i32_0 = arith.constant 0 : i32
    %c0_i32_1 = arith.constant 0 : i32
    return %c0_i32, %c0_i32_0 : i32, i32
  }
  func.func @transform_6(%arg0: i32) -> (i32, i32) {
    %c0_i32 = arith.constant 0 : i32
    %c0_i32_0 = arith.constant 0 : i32
    %c0_i32_1 = arith.constant 0 : i32
    return %c0_i32, %c0_i32_0 : i32, i32
  }
  func.func @transform_7(%arg0: i32) -> (i32, i32) {
    %c0_i32 = arith.constant 0 : i32
    %c0_i32_0 = arith.constant 0 : i32
    %c0_i32_1 = arith.constant 0 : i32
    return %c0_i32, %c0_i32_0 : i32, i32
  }
  func.func @transform_8(%arg0: i32) -> (i32, i32) {
    %c0_i32 = arith.constant 0 : i32
    %c0_i32_0 = arith.constant 0 : i32
    %c0_i32_1 = arith.constant 0 : i32
    return %c0_i32, %c0_i32_0 : i32, i32
  }
  func.func @transform_9(%arg0: i32) -> (i32, i32) {
    %c0_i32 = arith.constant 0 : i32
    %c0_i32_0 = arith.constant 0 : i32
    %c0_i32_1 = arith.constant 0 : i32
    return %c0_i32, %c0_i32_0 : i32, i32
  }
  func.func @transform_10(%arg0: i32) -> (i32, i32) {
    %c0_i32 = arith.constant 0 : i32
    %c0_i32_0 = arith.constant 0 : i32
    %c0_i32_1 = arith.constant 0 : i32
    return %c0_i32, %c0_i32_0 : i32, i32
  }
  func.func @transform_11(%arg0: i32) -> (i32, i32) {
    %c0_i32 = arith.constant 0 : i32
    %c0_i32_0 = arith.constant 0 : i32
    %c0_i32_1 = arith.constant 0 : i32
    return %c0_i32, %c0_i32_0 : i32, i32
  }
  func.func @transform_12(%arg0: i32) -> (i32, i32, i32) {
    %c0_i32 = arith.constant 0 : i32
    %c0_i32_0 = arith.constant 0 : i32
    %c0_i32_1 = arith.constant 0 : i32
    %c0_i32_2 = arith.constant 0 : i32
    return %c0_i32, %c0_i32_0, %c0_i32_1 : i32, i32, i32
  }
  func.func @transform_13(%arg0: i32) -> (i32, i32, i32) {
    %c0_i32 = arith.constant 0 : i32
    %c0_i32_0 = arith.constant 0 : i32
    %c0_i32_1 = arith.constant 0 : i32
    %c0_i32_2 = arith.constant 0 : i32
    return %c0_i32, %c0_i32_0, %c0_i32_1 : i32, i32, i32
  }
  func.func @transform_14(%arg0: i32) -> (i32, i32, i32) {
    %c0_i32 = arith.constant 0 : i32
    %c0_i32_0 = arith.constant 0 : i32
    %c0_i32_1 = arith.constant 0 : i32
    %c0_i32_2 = arith.constant 0 : i32
    return %c0_i32, %c0_i32_0, %c0_i32_1 : i32, i32, i32
  }
}

</mosaic_0001>

<llo_original>
// kernel: tpu_custom_call.1
$region0: #{tpu_custom_call.1}
  #allocation0 [shape = 'u32[]', space=smem, size = 0x4, offset = 0x4, fixed_abs, tag = 'smem constant byte address 0x4 - core index']
  #allocation1 [shape = 'u32[144,128]{1,0:T(1,128)}', space=vmem, size = 0x12000, scoped, tag = 'internal scratch']
  #allocation2 [shape = 'f32[8,2,128]{2,1,0:T(2,128)}', space=vmem, size = 0x2000, scoped, tag = 'scratch operand']
  #allocation3 [shape = 'f32[8,2,32]{2,1,0:T(2,128)}', space=vmem, size = 0x2000, scoped, tag = 'scratch operand']
  %s0 = inlined_call_operand.hbm [shape: f32[2,8,32], index: 0, kind: input, shape index: {}]
  %s1 = inlined_call_operand.hbm [shape: f32[2,2,32], index: 1, kind: input, shape index: {}]
  %s2 = inlined_call_operand.vmem [shape: f32[2,2,32], index: 2, kind: input, shape index: {}]
  %s3 = inlined_call_operand.hbm [shape: f32[32,128], index: 3, kind: input, shape index: {}]
  %s4 = inlined_call_operand.hbm [shape: f32[32,128], index: 4, kind: input, shape index: {}]
  %s5 = inlined_call_operand.vmem [shape: f32[1,128], index: 5, kind: input, shape index: {}]
  %s6 = inlined_call_operand.hbm [shape: f32[64,128], index: 6, kind: input, shape index: {}]
  %s7 = inlined_call_operand.vmem [shape: f32[1,128], index: 7, kind: input, shape index: {}]
  %s8 = inlined_call_operand.hbm [shape: f32[32,256], index: 8, kind: input, shape index: {}]
  %s9 = inlined_call_operand.vmem [shape: f32[1,256], index: 9, kind: input, shape index: {}]
  %s10 = inlined_call_operand.hbm [shape: f32[256,128], index: 10, kind: input, shape index: {}]
  %s11 = inlined_call_operand.vmem [shape: f32[1,128], index: 11, kind: input, shape index: {}]
  %s12 = inlined_call_operand.hbm [shape: f32[2,8,128], index: 12, kind: output, shape index: {0}]
  %s13 = inlined_call_operand.hbm [shape: f32[2,2,32], index: 13, kind: output, shape index: {1}]
  %s14 = inlined_call_operand.hbm [shape: f32[2,2,32], index: 14, kind: output, shape index: {2}]
  %15 = xla_tuple %s12, %s13, %s14
  %s16 = sld [smem:[#allocation0]]
  $region102: #{tpu_custom_call.1} parent=0
    _
  %s18 = ssub.s32 1, %s16
  %s19 = scalar_select 0, %s18, %s16
  $region1: #{tpu_custom_call.1} parent=0
    #allocation4 [shape = 'u8[8192]{0}', space=vmem, size = 0x2000, scoped, tag = 'input window, operand 0, single buffered']
    #allocation5 [shape = 's32[1]{0}', space=sflag, size = 0x4, scoped, tag = 'scoped memory for tpu_custom_call.1']
    #allocation6 [shape = 's32[1]{0}', space=sflag, size = 0x4, scoped, tag = 'scoped memory for tpu_custom_call.1']
    #allocation7 [shape = 'u8[2048]{0}', space=vmem, size = 0x800, scoped, tag = 'input window, operand 1, single buffered']
    #allocation8 [shape = 's32[1]{0}', space=sflag, size = 0x4, scoped, tag = 'scoped memory for tpu_custom_call.1']
    #allocation9 [shape = 'u8[16384]{0}', space=vmem, size = 0x4000, scoped, tag = 'input window, operand 3, single buffered']
    #allocation10 [shape = 'u8[16384]{0}', space=vmem, size = 0x4000, scoped, tag = 'input window, operand 4, single buffered']
    #allocation11 [shape = 's32[1]{0}', space=sflag, size = 0x4, scoped, tag = 'scoped memory for tpu_custom_call.1']
    #allocation12 [shape = 'u8[32768]{0}', space=vmem, size = 0x8000, scoped, tag = 'input window, operand 6, single buffered']
    #allocation13 [shape = 'u8[32768]{0}', space=vmem, size = 0x8000, scoped, tag = 'input window, operand 8, single buffered']
    #allocation14 [shape = 's32[1]{0}', space=sflag, size = 0x4, scoped, tag = 'scoped memory for tpu_custom_call.1']
    #allocation15 [shape = 'u8[131072]{0}', space=vmem, size = 0x20000, scoped, tag = 'input window, operand 10, single buffered']
    #allocation16 [shape = 'u8[8192]{0}', space=vmem, size = 0x2000, scoped, tag = 'output window, operand 0, single buffered']
    #allocation17 [shape = 'u8[2048]{0}', space=vmem, size = 0x800, scoped, tag = 'output window, operand 1, single buffered']
    #allocation18 [shape = 's32[1]{0}', space=sflag, size = 0x4, scoped, tag = 'scoped memory for tpu_custom_call.1']
    #allocation19 [shape = 'u8[2048]{0}', space=vmem, size = 0x800, scoped, tag = 'output window, operand 2, single buffered']
    %20 = vsyncpa [#allocation5], 0
    %21 = vsyncpa [#allocation8], 0
    %22 = vsyncpa [#allocation11], 0
    %23 = vsyncpa [#allocation14], 0
    %24 = vsyncpa [#allocation6], 0
    %25 = vsyncpa [#allocation18], 0
    // Predicated region
    $region2: #{tpu_custom_call.1} parent=1 // pred_check
      _
    $region3: #{tpu_custom_call.1} parent=1 // pred_check_branch
      %27 = sbr.rel (0) target = $region5
    $region4: #{tpu_custom_call.1} parent=1 // pred_region
      %s29 = ssub.s32 256, 256
      %30 = vsyncadd [#allocation5], %s29
      %s31 = sshll.u32 [#allocation4], 4
      %s32 = int_to_ptr.vmem [resolvable:$true] %s31
      %37 = dma.hbm_to_vmem [thread:$0]  %s0, 256, %s32, [#allocation5], 128, 128, 8
    $region5: #{tpu_custom_call.1} parent=1 // pred_fallthru
      _
    // Predicated region
    $region6: #{tpu_custom_call.1} parent=1 // pred_check
      _
    $region7: #{tpu_custom_call.1} parent=1 // pred_check_branch
      %39 = sbr.rel (0) target = $region9
    $region8: #{tpu_custom_call.1} parent=1 // pred_region
      %s41 = ssub.s32 64, 64
      %42 = vsyncadd [#allocation8], %s41
      %s43 = sshll.u32 [#allocation7], 4
      %s44 = int_to_ptr.vmem [resolvable:$true] %s43
      %49 = dma.hbm_to_vmem [thread:$0]  %s1, 64, %s44, [#allocation8], 32, 32, 2
    $region9: #{tpu_custom_call.1} parent=1 // pred_fallthru
      _
    // Predicated region
    $region10: #{tpu_custom_call.1} parent=1 // pred_check
      _
    $region11: #{tpu_custom_call.1} parent=1 // pred_check_branch
      %51 = sbr.rel (0) target = $region13
    $region12: #{tpu_custom_call.1} parent=1 // pred_region
      _
    $region13: #{tpu_custom_call.1} parent=1 // pred_fallthru
      _
    // Predicated region
    $region14: #{tpu_custom_call.1} parent=1 // pred_check
      _
    $region15: #{tpu_custom_call.1} parent=1 // pred_check_branch
      %53 = sbr.rel (0) target = $region17
    $region16: #{tpu_custom_call.1} parent=1 // pred_region
      %s55 = ssub.s32 512, 512
      %56 = vsyncadd [#allocation8], %s55
      %s57 = sshll.u32 [#allocation9], 4
      %s58 = int_to_ptr.vmem [resolvable:$true] %s57
      %63 = dma.hbm_to_vmem [thread:$0]  %s3, 512, %s58, [#allocation8], 128, 128, 8
    $region17: #{tpu_custom_call.1} parent=1 // pred_fallthru
      _
    // Predicated region
    $region18: #{tpu_custom_call.1} parent=1 // pred_check
      _
    $region19: #{tpu_custom_call.1} parent=1 // pred_check_branch
      %65 = sbr.rel (0) target = $region21
    $region20: #{tpu_custom_call.1} parent=1 // pred_region
      %s67 = ssub.s32 512, 512
      %68 = vsyncadd [#allocation11], %s67
      %s69 = sshll.u32 [#allocation10], 4
      %s70 = int_to_ptr.vmem [resolvable:$true] %s69
      %75 = dma.hbm_to_vmem [thread:$0]  %s4, 512, %s70, [#allocation11], 128, 128, 8
    $region21: #{tpu_custom_call.1} parent=1 // pred_fallthru
      _
    // Predicated region
    $region22: #{tpu_custom_call.1} parent=1 // pred_check
      _
    $region23: #{tpu_custom_call.1} parent=1 // pred_check_branch
      %77 = sbr.rel (0) target = $region25
    $region24: #{tpu_custom_call.1} parent=1 // pred_region
      _
    $region25: #{tpu_custom_call.1} parent=1 // pred_fallthru
      _
    // Predicated region
    $region26: #{tpu_custom_call.1} parent=1 // pred_check
      _
    $region27: #{tpu_custom_call.1} parent=1 // pred_check_branch
      %79 = sbr.rel (0) target = $region29
    $region28: #{tpu_custom_call.1} parent=1 // pred_region
      %s81 = ssub.s32 1024, 1024
      %82 = vsyncadd [#allocation11], %s81
      %s83 = sshll.u32 [#allocation12], 4
      %s84 = int_to_ptr.vmem [resolvable:$true] %s83
      %89 = dma.hbm_to_vmem [thread:$0]  %s6, 1024, %s84, [#allocation11], 128, 128, 8
    $region29: #{tpu_custom_call.1} parent=1 // pred_fallthru
      _
    // Predicated region
    $region30: #{tpu_custom_call.1} parent=1 // pred_check
      _
    $region31: #{tpu_custom_call.1} parent=1 // pred_check_branch
      %91 = sbr.rel (0) target = $region33
    $region32: #{tpu_custom_call.1} parent=1 // pred_region
      _
    $region33: #{tpu_custom_call.1} parent=1 // pred_fallthru
      _
    // Predicated region
    $region34: #{tpu_custom_call.1} parent=1 // pred_check
      _
    $region35: #{tpu_custom_call.1} parent=1 // pred_check_branch
      %93 = sbr.rel (0) target = $region37
    $region36: #{tpu_custom_call.1} parent=1 // pred_region
      %s95 = ssub.s32 1024, 1024
      %96 = vsyncadd [#allocation14], %s95
      %s97 = sshll.u32 [#allocation13], 4
      %s98 = int_to_ptr.vmem [resolvable:$true] %s97
      %103 = dma.hbm_to_vmem [thread:$0]  %s8, 1024, %s98, [#allocation14], 256, 256, 16
    $region37: #{tpu_custom_call.1} parent=1 // pred_fallthru
      _
    // Predicated region
    $region38: #{tpu_custom_call.1} parent=1 // pred_check
      _
    $region39: #{tpu_custom_call.1} parent=1 // pred_check_branch
      %105 = sbr.rel (0) target = $region41
    $region40: #{tpu_custom_call.1} parent=1 // pred_region
      _
    $region41: #{tpu_custom_call.1} parent=1 // pred_fallthru
      _
    // Predicated region
    $region42: #{tpu_custom_call.1} parent=1 // pred_check
      _
    $region43: #{tpu_custom_call.1} parent=1 // pred_check_branch
      %107 = sbr.rel (0) target = $region45
    $region44: #{tpu_custom_call.1} parent=1 // pred_region
      %s109 = ssub.s32 4096, 4096
      %110 = vsyncadd [#allocation14], %s109
      %s111 = sshll.u32 [#allocation15], 4
      %s112 = int_to_ptr.vmem [resolvable:$true] %s111
      %117 = dma.hbm_to_vmem [thread:$0]  %s10, 4096, %s112, [#allocation14], 128, 128, 8
    $region45: #{tpu_custom_call.1} parent=1 // pred_fallthru
      _
    // Predicated region
    $region46: #{tpu_custom_call.1} parent=1 // pred_check
      _
    $region47: #{tpu_custom_call.1} parent=1 // pred_check_branch
      %119 = sbr.rel (0) target = $region49
    $region48: #{tpu_custom_call.1} parent=1 // pred_region
      _
    $region49: #{tpu_custom_call.1} parent=1 // pred_fallthru
      _
    // Predicated region
    $region50: #{tpu_custom_call.1} parent=1 // pred_check
      _
    $region51: #{tpu_custom_call.1} parent=1 // pred_check_branch
      %121 = sbr.rel (0) target = $region53
    $region52: #{tpu_custom_call.1} parent=1 // pred_region
      %122 = dma.done [#allocation5], 256
    $region53: #{tpu_custom_call.1} parent=1 // pred_fallthru
      _
    // Predicated region
    $region54: #{tpu_custom_call.1} parent=1 // pred_check
      _
    $region55: #{tpu_custom_call.1} parent=1 // pred_check_branch
      %124 = sbr.rel (0) target = $region57
    $region56: #{tpu_custom_call.1} parent=1 // pred_region
      %125 = dma.done [#allocation8], 64
    $region57: #{tpu_custom_call.1} parent=1 // pred_fallthru
      _
    // Predicated region
    $region58: #{tpu_custom_call.1} parent=1 // pred_check
      _
    $region59: #{tpu_custom_call.1} parent=1 // pred_check_branch
      %127 = sbr.rel (0) target = $region61
    $region60: #{tpu_custom_call.1} parent=1 // pred_region
      %128 = dma.done [#allocation8], 512
    $region61: #{tpu_custom_call.1} parent=1 // pred_fallthru
      _
    // Predicated region
    $region62: #{tpu_custom_call.1} parent=1 // pred_check
      _
    $region63: #{tpu_custom_call.1} parent=1 // pred_check_branch
      %130 = sbr.rel (0) target = $region65
    $region64: #{tpu_custom_call.1} parent=1 // pred_region
      %131 = dma.done [#allocation11], 512
    $region65: #{tpu_custom_call.1} parent=1 // pred_fallthru
      _
    // Predicated region
    $region66: #{tpu_custom_call.1} parent=1 // pred_check
      _
    $region67: #{tpu_custom_call.1} parent=1 // pred_check_branch
      %133 = sbr.rel (0) target = $region69
    $region68: #{tpu_custom_call.1} parent=1 // pred_region
      %134 = dma.done [#allocation11], 1024
    $region69: #{tpu_custom_call.1} parent=1 // pred_fallthru
      _
    // Predicated region
    $region70: #{tpu_custom_call.1} parent=1 // pred_check
      _
    $region71: #{tpu_custom_call.1} parent=1 // pred_check_branch
      %136 = sbr.rel (0) target = $region73
    $region72: #{tpu_custom_call.1} parent=1 // pred_region
      %137 = dma.done [#allocation14], 1024
    $region73: #{tpu_custom_call.1} parent=1 // pred_fallthru
      _
    // Predicated region
    $region74: #{tpu_custom_call.1} parent=1 // pred_check
      _
    $region75: #{tpu_custom_call.1} parent=1 // pred_check_branch
      %139 = sbr.rel (0) target = $region77
    $region76: #{tpu_custom_call.1} parent=1 // pred_region
      %140 = dma.done [#allocation14], 4096
    $region77: #{tpu_custom_call.1} parent=1 // pred_fallthru
      _
    %v141 = vld [vmem:[#allocation10] sm:$0xff]
    %v142 = vld [vmem:[#allocation10 + $0x8] sm:$0xff]
    %v143 = vld [vmem:[#allocation10 + $0x10] sm:$0xff]
    %v144 = vld [vmem:[#allocation10 + $0x18] sm:$0xff]
    %v145 = vld [vmem:[#allocation12] sm:$0xff]
    %v146 = vld [vmem:[#allocation12 + $0x8] sm:$0xff]
    %v147 = vld [vmem:[#allocation12 + $0x10] sm:$0xff]
    %v148 = vld [vmem:[#allocation12 + $0x18] sm:$0xff]
    %v149 = vld [vmem:[#allocation12 + $0x20] sm:$0xff]
    %v150 = vld [vmem:[#allocation12 + $0x28] sm:$0xff]
    %v151 = vld [vmem:[#allocation12 + $0x30] sm:$0xff]
    %v152 = vld [vmem:[#allocation12 + $0x38] sm:$0xff]
    %v153 = vld [vmem:[%s7] sm:$0x1]
    %v155 = vlaneseq
    %v156 = vshrl.u32 %v155, 7
    %v157 = vsub.s32 0, %v156
    %v158 = vrot.slane %v153, %v157
    %v160 = vld [vmem:[#allocation4] sm:$0xff]
    %v161 = vld [vmem:[#allocation4 + $0x8] sm:$0xff]
    %v162 = vld [vmem:[#allocation9] sm:$0xff]
    %v163 = vld [vmem:[#allocation9 + $0x8] sm:$0xff]
    %v164 = vld [vmem:[#allocation9 + $0x10] sm:$0xff]
    %v165 = vld [vmem:[#allocation9 + $0x18] sm:$0xff]
    %v166 = vld [vmem:[%s5] sm:$0x1]
    %v168 = vlaneseq
    %v169 = vshrl.u32 %v168, 7
    %v170 = vsub.s32 0, %v169
    %v171 = vrot.slane %v166, %v170
    %vm173 = vcmask 261120
    %v175 = vsel %vm173, %v160, 0
    %v178 = vsel %vm173, %v161, 0
    %180 = vmatprep.subr.mxu0 0.0
    %181 = vmatpush1.msra.mxu0 %v162
    %182 = vmatprep.subr.mxu0 0.0
    %183 = vmatpush1.msra.mxu0 %v163
    %184 = vmatprep.subr.mxu0 0.0
    %185 = vmatpush1.msra.mxu0 %v164
    %186 = vmatprep.subr.mxu0 0.0
    %187 = vmatpush1.msra.mxu0 %v165
    %188 = vmatprep.subr.mxu0 0.0
    %189 = vmatpush1.msra.mxu0 0.0
    %190 = vmatprep.subr.mxu0 0.0
    %191 = vmatpush1.msra.mxu0 0.0
    %192 = vmatprep.subr.mxu0 0.0
    %193 = vmatpush1.msra.mxu0 0.0
    %194 = vmatprep.subr.mxu0 0.0
    %195 = vmatpush1.msra.mxu0 0.0
    %196 = vmatprep.subr.mxu0 0.0
    %197 = vmatpush1.msra.mxu0 0.0
    %198 = vmatprep.subr.mxu0 0.0
    %199 = vmatpush1.msra.mxu0 0.0
    %200 = vmatprep.subr.mxu0 0.0
    %201 = vmatpush1.msra.mxu0 0.0
    %202 = vmatprep.subr.mxu0 0.0
    %203 = vmatpush1.msra.mxu0 0.0
    %204 = vmatprep.subr.mxu0 0.0
    %205 = vmatpush1.msra.mxu0 0.0
    %206 = vmatprep.subr.mxu0 0.0
    %207 = vmatpush1.msra.mxu0 0.0
    %208 = vmatprep.subr.mxu0 0.0
    %209 = vmatpush1.msra.mxu0 0.0
    %210 = vmatprep.subr.mxu0 0.0
    %211 = vmatpush1.msra.mxu0 0.0
    %212 = vmatprep.subr.mxu0 0.0
    %213 = vmatpush1.msra.mxu0 0.0
    %214 = vmatprep.subr.mxu0 0.0
    %215 = vmatpush1.msra.mxu0 0.0
    %216 = vmatprep.subr.mxu0 0.0
    %217 = vmatpush1.msra.mxu0 0.0
    %218 = vmatprep.subr.mxu0 0.0
    %219 = vmatpush1.msra.mxu0 0.0
    %220 = vmatprep.subr.mxu0 0.0
    %221 = vmatpush1.msra.mxu0 0.0
    %222 = vmatprep.subr.mxu0 0.0
    %223 = vmatpush1.msra.mxu0 0.0
    %224 = vmatprep.subr.mxu0 0.0
    %225 = vmatpush1.msra.mxu0 0.0
    %226 = vmatprep.subr.mxu0 0.0
    %227 = vmatpush1.msra.mxu0 0.0
    %228 = vmatprep.subr.mxu0 0.0
    %229 = vmatpush1.msra.mxu0 0.0
    %230 = vmatprep.subr.mxu0 0.0
    %231 = vmatpush1.msra.mxu0 0.0
    %232 = vmatprep.subr.mxu0 0.0
    %233 = vmatpush1.msra.mxu0 0.0
    %234 = vmatprep.subr.mxu0 0.0
    %235 = vmatpush1.msra.mxu0 0.0
    %236 = vmatprep.subr.mxu0 0.0
    %237 = vmatpush1.msra.mxu0 0.0
    %238 = vmatprep.subr.mxu0 0.0
    %239 = vmatpush1.msra.mxu0 0.0
    %240 = vmatprep.subr.mxu0 0.0
    %241 = vmatpush1.msra.mxu0 0.0
    %242 = vmatprep.subr.mxu0 0.0
    %243 = vmatpush1.msra.mxu0 0.0
    %244 = vmatprep.mubr.f32.mxu0 0.0
    %245 = vmatmul.mubr.f32.gmra.mrb[0].mxu0 %v175
    %v246 = vpop.f32.mrb[0].mxu0
    %v247 = vadd.f32 %v171, %v246
    %v248 = vpop.f32.mrb[0].mxu0
    %249 = vmatprep.mubr.f32.mxu0 0.0
    %250 = vmatmul.mubr.f32.gmra.mrb[0].mxu0 %v178
    %v251 = vpop.f32.mrb[0].mxu0
    %v252 = vadd.f32 %v171, %v251
    %v253 = vpop.f32.mrb[0].mxu0
    %254 = vdwg.mxu0
    %v256 = vcombine.high %v247, %v247
    %v258 = vunpack.c.l.s4 1966171168
    %v259 = vunpack.c.0.s8 %v258
    %v260 = vlaneseq
    %v261 = vshrl.u32 %v260, 7
    %v262 = vsub.s32 %v259, %v261
    %v263 = vrot.slane %v247, %v262
    %v265 = vunpack.c.l.s4 1966171168
    %v266 = vunpack.c.0.s8 %v265
    %v267 = vlaneseq
    %v268 = vshrl.u32 %v267, 7
    %v269 = vsub.s32 %v266, %v268
    %v270 = vrot.slane %v256, %v269
    %v271 = vcombine.high %v263, %v263
    %v272 = vcombine.high %v270, %v270
    %v274 = vunpack.c.l.s4 1966171168
    %v275 = vunpack.c.0.s8 %v274
    %v276 = vlaneseq
    %v277 = vshrl.u32 %v276, 7
    %v278 = vsub.s32 %v275, %v277
    %v279 = vrot.slane %v263, %v278
    %v281 = vunpack.c.l.s4 1966171168
    %v282 = vunpack.c.0.s8 %v281
    %v283 = vlaneseq
    %v284 = vshrl.u32 %v283, 7
    %v285 = vsub.s32 %v282, %v284
    %v286 = vrot.slane %v270, %v285
    %v288 = vunpack.c.l.s4 1966171168
    %v289 = vunpack.c.0.s8 %v288
    %v290 = vlaneseq
    %v291 = vshrl.u32 %v290, 7
    %v292 = vsub.s32 %v289, %v291
    %v293 = vrot.slane %v271, %v292
    %v295 = vunpack.c.l.s4 1966171168
    %v296 = vunpack.c.0.s8 %v295
    %v297 = vlaneseq
    %v298 = vshrl.u32 %v297, 7
    %v299 = vsub.s32 %v296, %v298
    %v300 = vrot.slane %v272, %v299
    %v301 = vcombine.high %v279, %v279
    %v302 = vcombine.high %v286, %v286
    %v303 = vcombine.high %v293, %v293
    %v304 = vcombine.high %v300, %v300
    %v314 = vcombine.high %v252, %v252
    %v316 = vunpack.c.l.s4 1966171168
    %v317 = vunpack.c.0.s8 %v316
    %v318 = vlaneseq
    %v319 = vshrl.u32 %v318, 7
    %v320 = vsub.s32 %v317, %v319
    %v321 = vrot.slane %v252, %v320
    %v323 = vunpack.c.l.s4 1966171168
    %v324 = vunpack.c.0.s8 %v323
    %v325 = vlaneseq
    %v326 = vshrl.u32 %v325, 7
    %v327 = vsub.s32 %v324, %v326
    %v328 = vrot.slane %v314, %v327
    %v329 = vcombine.high %v321, %v321
    %v330 = vcombine.high %v328, %v328
    %v332 = vunpack.c.l.s4 1966171168
    %v333 = vunpack.c.0.s8 %v332
    %v334 = vlaneseq
    %v335 = vshrl.u32 %v334, 7
    %v336 = vsub.s32 %v333, %v335
    %v337 = vrot.slane %v321, %v336
    %v339 = vunpack.c.l.s4 1966171168
    %v340 = vunpack.c.0.s8 %v339
    %v341 = vlaneseq
    %v342 = vshrl.u32 %v341, 7
    %v343 = vsub.s32 %v340, %v342
    %v344 = vrot.slane %v328, %v343
    %v346 = vunpack.c.l.s4 1966171168
    %v347 = vunpack.c.0.s8 %v346
    %v348 = vlaneseq
    %v349 = vshrl.u32 %v348, 7
    %v350 = vsub.s32 %v347, %v349
    %v351 = vrot.slane %v329, %v350
    %v353 = vunpack.c.l.s4 1966171168
    %v354 = vunpack.c.0.s8 %v353
    %v355 = vlaneseq
    %v356 = vshrl.u32 %v355, 7
    %v357 = vsub.s32 %v354, %v356
    %v358 = vrot.slane %v330, %v357
    %v359 = vcombine.high %v337, %v337
    %v360 = vcombine.high %v344, %v344
    %v361 = vcombine.high %v351, %v351
    %v362 = vcombine.high %v358, %v358
    %v363 = vlaneseq
    %v364 = vshrl.u32 %v363, 7
    %v365 = vsub.s32 0, %v364
    %v366 = vrot.slane %v337, %v365
    %v367 = vlaneseq
    %v368 = vshrl.u32 %v367, 7
    %v369 = vsub.s32 0, %v368
    %v370 = vrot.slane %v351, %v369
    %v371 = vlaneseq
    %v372 = vshrl.u32 %v371, 7
    %v373 = vsub.s32 0, %v372
    %v374 = vrot.slane %v359, %v373
    %v375 = vlaneseq
    %v376 = vshrl.u32 %v375, 7
    %v377 = vsub.s32 0, %v376
    %v378 = vrot.slane %v361, %v377
    %v379 = vlaneseq
    %v380 = vshrl.u32 %v379, 7
    %v381 = vsub.s32 0, %v380
    %v382 = vrot.slane %v344, %v381
    %v383 = vlaneseq
    %v384 = vshrl.u32 %v383, 7
    %v385 = vsub.s32 0, %v384
    %v386 = vrot.slane %v358, %v385
    %v387 = vlaneseq
    %v388 = vshrl.u32 %v387, 7
    %v389 = vsub.s32 0, %v388
    %v390 = vrot.slane %v360, %v389
    %v391 = vlaneseq
    %v392 = vshrl.u32 %v391, 7
    %v393 = vsub.s32 0, %v392
    %v394 = vrot.slane %v362, %v393
    %vm403 = vcmask 1040384
    %v404 = vsel %vm403, %v279, %v366
    %v405 = vsel %vm403, %v293, %v370
    %v406 = vsel %vm403, %v301, %v374
    %v407 = vsel %vm403, %v303, %v378
    %v408 = vsel %vm403, %v286, %v382
    %v409 = vsel %vm403, %v300, %v386
    %v410 = vsel %vm403, %v302, %v390
    %v411 = vsel %vm403, %v304, %v394
    %412 = vst [vmem:[#allocation2] sm:$0x3] %v404
    %413 = vst [vmem:[#allocation2 + $0x2] sm:$0x3] %v405
    %414 = vst [vmem:[#allocation2 + $0x4] sm:$0x3] %v406
    %415 = vst [vmem:[#allocation2 + $0x6] sm:$0x3] %v407
    %416 = vst [vmem:[#allocation2 + $0x8] sm:$0x3] %v408
    %417 = vst [vmem:[#allocation2 + $0xa] sm:$0x3] %v409
    %418 = vst [vmem:[#allocation2 + $0xc] sm:$0x3] %v410
    %419 = vst [vmem:[#allocation2 + $0xe] sm:$0x3] %v411
    %v420 = vlaneseq
    %v421 = vand.u32 %v420, 127
    %vm422 = vcmp.lt.s32.totalorder %v421, 96
    %v423 = vld [vmem:[#allocation7] sm:$0x3]
    %v424 = vld [vmem:[#allocation7 + $0x2] sm:$0x3]
    %v425 = vld [vmem:[%s2] sm:$0x3]
    %v426 = vld [vmem:[%s2 + $0x2] sm:$0x3]
    %v427 = vld [vmem:[#allocation2] sm:$0x3]
    %v430 = vrot.slane %v424, 7
    %vm431 = vcmask 1041409
    %v432 = vsel %vm431, %v430, %v423
    %v433 = vsel %vm173, %v432, 0
    %435 = vmatprep.subr.mxu0 0.0
    %436 = vmatpush1.msra.mxu0 %v141
    %437 = vmatprep.subr.mxu0 0.0
    %438 = vmatpush1.msra.mxu0 %v142
    %439 = vmatprep.subr.mxu0 0.0
    %440 = vmatpush1.msra.mxu0 %v143
    %441 = vmatprep.subr.mxu0 0.0
    %442 = vmatpush1.msra.mxu0 %v144
    %443 = vmatprep.subr.mxu0 0.0
    %444 = vmatpush1.msra.mxu0 0.0
    %445 = vmatprep.subr.mxu0 0.0
    %446 = vmatpush1.msra.mxu0 0.0
    %447 = vmatprep.subr.mxu0 0.0
    %448 = vmatpush1.msra.mxu0 0.0
    %449 = vmatprep.subr.mxu0 0.0
    %450 = vmatpush1.msra.mxu0 0.0
    %451 = vmatprep.subr.mxu0 0.0
    %452 = vmatpush1.msra.mxu0 0.0
    %453 = vmatprep.subr.mxu0 0.0
    %454 = vmatpush1.msra.mxu0 0.0
    %455 = vmatprep.subr.mxu0 0.0
    %456 = vmatpush1.msra.mxu0 0.0
    %457 = vmatprep.subr.mxu0 0.0
    %458 = vmatpush1.msra.mxu0 0.0
    %459 = vmatprep.subr.mxu0 0.0
    %460 = vmatpush1.msra.mxu0 0.0
    %461 = vmatprep.subr.mxu0 0.0
    %462 = vmatpush1.msra.mxu0 0.0
    %463 = vmatprep.subr.mxu0 0.0
    %464 = vmatpush1.msra.mxu0 0.0
    %465 = vmatprep.subr.mxu0 0.0
    %466 = vmatpush1.msra.mxu0 0.0
    %467 = vmatprep.subr.mxu0 0.0
    %468 = vmatpush1.msra.mxu0 0.0
    %469 = vmatprep.subr.mxu0 0.0
    %470 = vmatpush1.msra.mxu0 0.0
    %471 = vmatprep.subr.mxu0 0.0
    %472 = vmatpush1.msra.mxu0 0.0
    %473 = vmatprep.subr.mxu0 0.0
    %474 = vmatpush1.msra.mxu0 0.0
    %475 = vmatprep.subr.mxu0 0.0
    %476 = vmatpush1.msra.mxu0 0.0
    %477 = vmatprep.subr.mxu0 0.0
    %478 = vmatpush1.msra.mxu0 0.0
    %479 = vmatprep.subr.mxu0 0.0
    %480 = vmatpush1.msra.mxu0 0.0
    %481 = vmatprep.subr.mxu0 0.0
    %482 = vmatpush1.msra.mxu0 0.0
    %483 = vmatprep.subr.mxu0 0.0
    %484 = vmatpush1.msra.mxu0 0.0
    %485 = vmatprep.subr.mxu0 0.0
    %486 = vmatpush1.msra.mxu0 0.0
    %487 = vmatprep.subr.mxu0 0.0
    %488 = vmatpush1.msra.mxu0 0.0
    %489 = vmatprep.subr.mxu0 0.0
    %490 = vmatpush1.msra.mxu0 0.0
    %491 = vmatprep.subr.mxu0 0.0
    %492 = vmatpush1.msra.mxu0 0.0
    %493 = vmatprep.subr.mxu0 0.0
    %494 = vmatpush1.msra.mxu0 0.0
    %495 = vmatprep.subr.mxu0 0.0
    %496 = vmatpush1.msra.mxu0 0.0
    %497 = vmatprep.subr.mxu0 0.0
    %498 = vmatpush1.msra.mxu0 0.0
    %499 = vmatprep.mubr.f32.mxu0 0.0
    %500 = vmatmul.mubr.f32.gmra.mrb[0].mxu0 %v433
    %v501 = vpop.f32.mrb[0].mxu0
    %v502 = vadd.f32 0.0, %v501
    %v503 = vpop.f32.mrb[0].mxu0
    %504 = vdwg.mxu0
    %v505 = vadd.f32 %v427, %v502
    %v506 = vxor.u32 %v505, 2147483648
    %v507 = vmul.f32 %v506, 1.442695
    %v508 = vpow.pop %v507
    %v509 = vadd.f32 %v508, 1.0
    %v510 = vrcp.pop %v509
    %v511 = vmul.f32 1.0, %v510
    %v512 = vtanh.pop %v505
    %v513 = vsel %vm422, %v511, %v512
    %v516 = vrot.slane %v426, 7
    %v517 = vsel %vm431, %v516, %v425
    %518 = vrot.lane.b32.xlu0 %v517, 32
    %v519 = vpop.permute.xlu0 %518
    %v521 = vmul.f32 %v513, %v519
    %523 = vrot.lane.b32.xlu0 %v513, 32
    %v524 = vpop.permute.xlu0 %523
    %v526 = vmul.f32 %v513, %v524
    %528 = vrot.lane.b32.xlu0 %v526, 32
    %v529 = vpop.permute.xlu0 %528
    %v531 = vadd.f32 %v521, %v529
    %v532 = vtanh.pop %v531
    %534 = vrot.lane.b32.xlu0 %v532, 32
    %v535 = vpop.permute.xlu0 %534
    %v537 = vmul.f32 %v513, %v535
    %539 = vrot.lane.b32.xlu0 %v537, 64
    %v540 = vpop.permute.xlu0 %539
    %v542 = vrot.slane %v423, 1
    %v543 = vsel %vm431, %v424, %v542
    %544 = vrot.lane.b32.xlu0 %v543, 32
    %v545 = vpop.permute.xlu0 %544
    %v547 = vsel %vm173, %v540, %v545
    %vm548 = vcmask 523264
    %v550 = vsel %vm548, %v547, 0
    %552 = vmatprep.subr.mxu0 0.0
    %553 = vmatpush1.msra.mxu0 %v145
    %554 = vmatprep.subr.mxu0 0.0
    %555 = vmatpush1.msra.mxu0 %v146
    %556 = vmatprep.subr.mxu0 0.0
    %557 = vmatpush1.msra.mxu0 %v147
    %558 = vmatprep.subr.mxu0 0.0
    %559 = vmatpush1.msra.mxu0 %v148
    %560 = vmatprep.subr.mxu0 0.0
    %561 = vmatpush1.msra.mxu0 %v149
    %562 = vmatprep.subr.mxu0 0.0
    %563 = vmatpush1.msra.mxu0 %v150
    %564 = vmatprep.subr.mxu0 0.0
    %565 = vmatpush1.msra.mxu0 %v151
    %566 = vmatprep.subr.mxu0 0.0
    %567 = vmatpush1.msra.mxu0 %v152
    %568 = vmatprep.subr.mxu0 0.0
    %569 = vmatpush1.msra.mxu0 0.0
    %570 = vmatprep.subr.mxu0 0.0
    %571 = vmatpush1.msra.mxu0 0.0
    %572 = vmatprep.subr.mxu0 0.0
    %573 = vmatpush1.msra.mxu0 0.0
    %574 = vmatprep.subr.mxu0 0.0
    %575 = vmatpush1.msra.mxu0 0.0
    %576 = vmatprep.subr.mxu0 0.0
    %577 = vmatpush1.msra.mxu0 0.0
    %578 = vmatprep.subr.mxu0 0.0
    %579 = vmatpush1.msra.mxu0 0.0
    %580 = vmatprep.subr.mxu0 0.0
    %581 = vmatpush1.msra.mxu0 0.0
    %582 = vmatprep.subr.mxu0 0.0
    %583 = vmatpush1.msra.mxu0 0.0
    %584 = vmatprep.subr.mxu0 0.0
    %585 = vmatpush1.msra.mxu0 0.0
    %586 = vmatprep.subr.mxu0 0.0
    %587 = vmatpush1.msra.mxu0 0.0
    %588 = vmatprep.subr.mxu0 0.0
    %589 = vmatpush1.msra.mxu0 0.0
    %590 = vmatprep.subr.mxu0 0.0
    %591 = vmatpush1.msra.mxu0 0.0
    %592 = vmatprep.subr.mxu0 0.0
    %593 = vmatpush1.msra.mxu0 0.0
    %594 = vmatprep.subr.mxu0 0.0
    %595 = vmatpush1.msra.mxu0 0.0
    %596 = vmatprep.subr.mxu0 0.0
    %597 = vmatpush1.msra.mxu0 0.0
    %598 = vmatprep.subr.mxu0 0.0
    %599 = vmatpush1.msra.mxu0 0.0
    %600 = vmatprep.subr.mxu0 0.0
    %601 = vmatpush1.msra.mxu0 0.0
    %602 = vmatprep.subr.mxu0 0.0
    %603 = vmatpush1.msra.mxu0 0.0
    %604 = vmatprep.subr.mxu0 0.0
    %605 = vmatpush1.msra.mxu0 0.0
    %606 = vmatprep.subr.mxu0 0.0
    %607 = vmatpush1.msra.mxu0 0.0
    %608 = vmatprep.subr.mxu0 0.0
    %609 = vmatpush1.msra.mxu0 0.0
    %610 = vmatprep.subr.mxu0 0.0
    %611 = vmatpush1.msra.mxu0 0.0
    %612 = vmatprep.subr.mxu0 0.0
    %613 = vmatpush1.msra.mxu0 0.0
    %614 = vmatprep.subr.mxu0 0.0
    %615 = vmatpush1.msra.mxu0 0.0
    %616 = vmatprep.mubr.f32.mxu0 0.0
    %617 = vmatmul.mubr.f32.gmra.mrb[0].mxu0 %v550
    %v618 = vpop.f32.mrb[0].mxu0
    %v619 = vadd.f32 %v158, %v618
    %v620 = vpop.f32.mrb[0].mxu0
    %621 = vdwg.mxu0
    %v622 = vxor.u32 %v619, 2147483648
    %v623 = vmul.f32 %v622, 1.442695
    %v624 = vpow.pop %v623
    %v625 = vadd.f32 %v624, 1.0
    %v626 = vrcp.pop %v625
    %v627 = vmul.f32 1.0, %v626
    %v628 = vtanh.pop %v619
    %v629 = vsel %vm422, %v627, %v628
    %v630 = vrot.slane %v425, 1
    %v631 = vsel %vm431, %v426, %v630
    %632 = vrot.lane.b32.xlu0 %v631, 32
    %v633 = vpop.permute.xlu0 %632
    %v635 = vmul.f32 %v629, %v633
    %637 = vrot.lane.b32.xlu0 %v629, 32
    %v638 = vpop.permute.xlu0 %637
    %v640 = vmul.f32 %v629, %v638
    %642 = vrot.lane.b32.xlu0 %v640, 32
    %v643 = vpop.permute.xlu0 %642
    %v645 = vadd.f32 %v635, %v643
    %v646 = vtanh.pop %v645
    %648 = vrot.lane.b32.xlu0 %v646, 32
    %v649 = vpop.permute.xlu0 %648
    %v651 = vmul.f32 %v629, %v649
    %653 = vrot.lane.b32.xlu0 %v651, 64
    %v654 = vpop.permute.xlu0 %653
    %vm656 = vcmask 254976
    %657 = vst.msk [vmem:[#allocation3] sm:$0x3] %vm656, %v654
    %s658 = scalar_lea.vmem [#allocation2], 2
    %v659 = vld [vmem:[%s658] sm:$0x3]
    %v660 = vsel %vm173, %v540, 0
    %662 = vmatprep.subr.mxu0 0.0
    %663 = vmatpush1.msra.mxu0 %v141
    %664 = vmatprep.subr.mxu0 0.0
    %665 = vmatpush1.msra.mxu0 %v142
    %666 = vmatprep.subr.mxu0 0.0
    %667 = vmatpush1.msra.mxu0 %v143
    %668 = vmatprep.subr.mxu0 0.0
    %669 = vmatpush1.msra.mxu0 %v144
    %670 = vmatprep.subr.mxu0 0.0
    %671 = vmatpush1.msra.mxu0 0.0
    %672 = vmatprep.subr.mxu0 0.0
    %673 = vmatpush1.msra.mxu0 0.0
    %674 = vmatprep.subr.mxu0 0.0
    %675 = vmatpush1.msra.mxu0 0.0
    %676 = vmatprep.subr.mxu0 0.0
    %677 = vmatpush1.msra.mxu0 0.0
    %678 = vmatprep.subr.mxu0 0.0
    %679 = vmatpush1.msra.mxu0 0.0
    %680 = vmatprep.subr.mxu0 0.0
    %681 = vmatpush1.msra.mxu0 0.0
    %682 = vmatprep.subr.mxu0 0.0
    %683 = vmatpush1.msra.mxu0 0.0
    %684 = vmatprep.subr.mxu0 0.0
    %685 = vmatpush1.msra.mxu0 0.0
    %686 = vmatprep.subr.mxu0 0.0
    %687 = vmatpush1.msra.mxu0 0.0
    %688 = vmatprep.subr.mxu0 0.0
    %689 = vmatpush1.msra.mxu0 0.0
    %690 = vmatprep.subr.mxu0 0.0
    %691 = vmatpush1.msra.mxu0 0.0
    %692 = vmatprep.subr.mxu0 0.0
    %693 = vmatpush1.msra.mxu0 0.0
    %694 = vmatprep.subr.mxu0 0.0
    %695 = vmatpush1.msra.mxu0 0.0
    %696 = vmatprep.subr.mxu0 0.0
    %697 = vmatpush1.msra.mxu0 0.0
    %698 = vmatprep.subr.mxu0 0.0
    %699 = vmatpush1.msra.mxu0 0.0
    %700 = vmatprep.subr.mxu0 0.0
    %701 = vmatpush1.msra.mxu0 0.0
    %702 = vmatprep.subr.mxu0 0.0
    %703 = vmatpush1.msra.mxu0 0.0
    %704 = vmatprep.subr.mxu0 0.0
    %705 = vmatpush1.msra.mxu0 0.0
    %706 = vmatprep.subr.mxu0 0.0
    %707 = vmatpush1.msra.mxu0 0.0
    %708 = vmatprep.subr.mxu0 0.0
    %709 = vmatpush1.msra.mxu0 0.0
    %710 = vmatprep.subr.mxu0 0.0
    %711 = vmatpush1.msra.mxu0 0.0
    %712 = vmatprep.subr.mxu0 0.0
    %713 = vmatpush1.msra.mxu0 0.0
    %714 = vmatprep.subr.mxu0 0.0
    %715 = vmatpush1.msra.mxu0 0.0
    %716 = vmatprep.subr.mxu0 0.0
    %717 = vmatpush1.msra.mxu0 0.0
    %718 = vmatprep.subr.mxu0 0.0
    %719 = vmatpush1.msra.mxu0 0.0
    %720 = vmatprep.subr.mxu0 0.0
    %721 = vmatpush1.msra.mxu0 0.0
    %722 = vmatprep.subr.mxu0 0.0
    %723 = vmatpush1.msra.mxu0 0.0
    %724 = vmatprep.subr.mxu0 0.0
    %725 = vmatpush1.msra.mxu0 0.0
    %726 = vmatprep.mubr.f32.mxu0 0.0
    %727 = vmatmul.mubr.f32.gmra.mrb[0].mxu0 %v660
    %v728 = vpop.f32.mrb[0].mxu0
    %v729 = vadd.f32 0.0, %v728
    %v730 = vpop.f32.mrb[0].mxu0
    %731 = vdwg.mxu0
    %v732 = vadd.f32 %v659, %v729
    %v733 = vxor.u32 %v732, 2147483648
    %v734 = vmul.f32 %v733, 1.442695
    %v735 = vpow.pop %v734
    %v736 = vadd.f32 %v735, 1.0
    %v737 = vrcp.pop %v736
    %v738 = vmul.f32 1.0, %v737
    %v739 = vtanh.pop %v732
    %v740 = vsel %vm422, %v738, %v739
    %v741 = vmul.f32 %v740, %v531
    %743 = vrot.lane.b32.xlu0 %v740, 32
    %v744 = vpop.permute.xlu0 %743
    %v746 = vmul.f32 %v740, %v744
    %748 = vrot.lane.b32.xlu0 %v746, 32
    %v749 = vpop.permute.xlu0 %748
    %v751 = vadd.f32 %v741, %v749
    %v752 = vtanh.pop %v751
    %754 = vrot.lane.b32.xlu0 %v752, 32
    %v755 = vpop.permute.xlu0 %754
    %v757 = vmul.f32 %v740, %v755
    %759 = vrot.lane.b32.xlu0 %v757, 64
    %v760 = vpop.permute.xlu0 %759
    %762 = vrot.lane.b32.xlu0 %v651, 96
    %v763 = vpop.permute.xlu0 %762
    %v765 = vsel %vm173, %v760, %v763
    %v767 = vsel %vm548, %v765, 0
    %769 = vmatprep.subr.mxu0 0.0
    %770 = vmatpush1.msra.mxu0 %v145
    %771 = vmatprep.subr.mxu0 0.0
    %772 = vmatpush1.msra.mxu0 %v146
    %773 = vmatprep.subr.mxu0 0.0
    %774 = vmatpush1.msra.mxu0 %v147
    %775 = vmatprep.subr.mxu0 0.0
    %776 = vmatpush1.msra.mxu0 %v148
    %777 = vmatprep.subr.mxu0 0.0
    %778 = vmatpush1.msra.mxu0 %v149
    %779 = vmatprep.subr.mxu0 0.0
    %780 = vmatpush1.msra.mxu0 %v150
    %781 = vmatprep.subr.mxu0 0.0
    %782 = vmatpush1.msra.mxu0 %v151
    %783 = vmatprep.subr.mxu0 0.0
    %784 = vmatpush1.msra.mxu0 %v152
    %785 = vmatprep.subr.mxu0 0.0
    %786 = vmatpush1.msra.mxu0 0.0
    %787 = vmatprep.subr.mxu0 0.0
    %788 = vmatpush1.msra.mxu0 0.0
    %789 = vmatprep.subr.mxu0 0.0
    %790 = vmatpush1.msra.mxu0 0.0
    %791 = vmatprep.subr.mxu0 0.0
    %792 = vmatpush1.msra.mxu0 0.0
    %793 = vmatprep.subr.mxu0 0.0
    %794 = vmatpush1.msra.mxu0 0.0
    %795 = vmatprep.subr.mxu0 0.0
    %796 = vmatpush1.msra.mxu0 0.0
    %797 = vmatprep.subr.mxu0 0.0
    %798 = vmatpush1.msra.mxu0 0.0
    %799 = vmatprep.subr.mxu0 0.0
    %800 = vmatpush1.msra.mxu0 0.0
    %801 = vmatprep.subr.mxu0 0.0
    %802 = vmatpush1.msra.mxu0 0.0
    %803 = vmatprep.subr.mxu0 0.0
    %804 = vmatpush1.msra.mxu0 0.0
    %805 = vmatprep.subr.mxu0 0.0
    %806 = vmatpush1.msra.mxu0 0.0
    %807 = vmatprep.subr.mxu0 0.0
    %808 = vmatpush1.msra.mxu0 0.0
    %809 = vmatprep.subr.mxu0 0.0
    %810 = vmatpush1.msra.mxu0 0.0
    %811 = vmatprep.subr.mxu0 0.0
    %812 = vmatpush1.msra.mxu0 0.0
    %813 = vmatprep.subr.mxu0 0.0
    %814 = vmatpush1.msra.mxu0 0.0
    %815 = vmatprep.subr.mxu0 0.0
    %816 = vmatpush1.msra.mxu0 0.0
    %817 = vmatprep.subr.mxu0 0.0
    %818 = vmatpush1.msra.mxu0 0.0
    %819 = vmatprep.subr.mxu0 0.0
    %820 = vmatpush1.msra.mxu0 0.0
    %821 = vmatprep.subr.mxu0 0.0
    %822 = vmatpush1.msra.mxu0 0.0
    %823 = vmatprep.subr.mxu0 0.0
    %824 = vmatpush1.msra.mxu0 0.0
    %825 = vmatprep.subr.mxu0 0.0
    %826 = vmatpush1.msra.mxu0 0.0
    %827 = vmatprep.subr.mxu0 0.0
    %828 = vmatpush1.msra.mxu0 0.0
    %829 = vmatprep.subr.mxu0 0.0
    %830 = vmatpush1.msra.mxu0 0.0
    %831 = vmatprep.subr.mxu0 0.0
    %832 = vmatpush1.msra.mxu0 0.0
    %833 = vmatprep.mubr.f32.mxu0 0.0
    %834 = vmatmul.mubr.f32.gmra.mrb[0].mxu0 %v767
    %v835 = vpop.f32.mrb[0].mxu0
    %v836 = vadd.f32 %v158, %v835
    %v837 = vpop.f32.mrb[0].mxu0
    %838 = vdwg.mxu0
    %v839 = vxor.u32 %v836, 2147483648
    %v840 = vmul.f32 %v839, 1.442695
    %v841 = vpow.pop %v840
    %v842 = vadd.f32 %v841, 1.0
    %v843 = vrcp.pop %v842
    %v844 = vmul.f32 1.0, %v843
    %v845 = vtanh.pop %v836
    %v846 = vsel %vm422, %v844, %v845
    %v847 = vmul.f32 %v846, %v645
    %849 = vrot.lane.b32.xlu0 %v846, 32
    %v850 = vpop.permute.xlu0 %849
    %v852 = vmul.f32 %v846, %v850
    %854 = vrot.lane.b32.xlu0 %v852, 32
    %v855 = vpop.permute.xlu0 %854
    %v857 = vadd.f32 %v847, %v855
    %v858 = vtanh.pop %v857
    %860 = vrot.lane.b32.xlu0 %v858, 32
    %v861 = vpop.permute.xlu0 %860
    %v863 = vmul.f32 %v846, %v861
    %865 = vrot.lane.b32.xlu0 %v863, 64
    %v866 = vpop.permute.xlu0 %865
    %s868 = scalar_lea.vmem [#allocation3], 2
    %869 = vst.msk [vmem:[%s868] sm:$0x3] %vm656, %v866
    %s870 = scalar_lea.vmem [#allocation2], 4
    %v871 = vld [vmem:[%s870] sm:$0x3]
    %v872 = vsel %vm173, %v760, 0
    %874 = vmatprep.subr.mxu0 0.0
    %875 = vmatpush1.msra.mxu0 %v141
    %876 = vmatprep.subr.mxu0 0.0
    %877 = vmatpush1.msra.mxu0 %v142
    %878 = vmatprep.subr.mxu0 0.0
    %879 = vmatpush1.msra.mxu0 %v143
    %880 = vmatprep.subr.mxu0 0.0
    %881 = vmatpush1.msra.mxu0 %v144
    %882 = vmatprep.subr.mxu0 0.0
    %883 = vmatpush1.msra.mxu0 0.0
    %884 = vmatprep.subr.mxu0 0.0
    %885 = vmatpush1.msra.mxu0 0.0
    %886 = vmatprep.subr.mxu0 0.0
    %887 = vmatpush1.msra.mxu0 0.0
    %888 = vmatprep.subr.mxu0 0.0
    %889 = vmatpush1.msra.mxu0 0.0
    %890 = vmatprep.subr.mxu0 0.0
    %891 = vmatpush1.msra.mxu0 0.0
    %892 = vmatprep.subr.mxu0 0.0
    %893 = vmatpush1.msra.mxu0 0.0
    %894 = vmatprep.subr.mxu0 0.0
    %895 = vmatpush1.msra.mxu0 0.0
    %896 = vmatprep.subr.mxu0 0.0
    %897 = vmatpush1.msra.mxu0 0.0
    %898 = vmatprep.subr.mxu0 0.0
    %899 = vmatpush1.msra.mxu0 0.0
    %900 = vmatprep.subr.mxu0 0.0
    %901 = vmatpush1.msra.mxu0 0.0
    %902 = vmatprep.subr.mxu0 0.0
    %903 = vmatpush1.msra.mxu0 0.0
    %904 = vmatprep.subr.mxu0 0.0
    %905 = vmatpush1.msra.mxu0 0.0
    %906 = vmatprep.subr.mxu0 0.0
    %907 = vmatpush1.msra.mxu0 0.0
    %908 = vmatprep.subr.mxu0 0.0
    %909 = vmatpush1.msra.mxu0 0.0
    %910 = vmatprep.subr.mxu0 0.0
    %911 = vmatpush1.msra.mxu0 0.0
    %912 = vmatprep.subr.mxu0 0.0
    %913 = vmatpush1.msra.mxu0 0.0
    %914 = vmatprep.subr.mxu0 0.0
    %915 = vmatpush1.msra.mxu0 0.0
    %916 = vmatprep.subr.mxu0 0.0
    %917 = vmatpush1.msra.mxu0 0.0
    %918 = vmatprep.subr.mxu0 0.0
    %919 = vmatpush1.msra.mxu0 0.0
    %920 = vmatprep.subr.mxu0 0.0
    %921 = vmatpush1.msra.mxu0 0.0
    %922 = vmatprep.subr.mxu0 0.0
    %923 = vmatpush1.msra.mxu0 0.0
    %924 = vmatprep.subr.mxu0 0.0
    %925 = vmatpush1.msra.mxu0 0.0
    %926 = vmatprep.subr.mxu0 0.0
    %927 = vmatpush1.msra.mxu0 0.0
    %928 = vmatprep.subr.mxu0 0.0
    %929 = vmatpush1.msra.mxu0 0.0
    %930 = vmatprep.subr.mxu0 0.0
    %931 = vmatpush1.msra.mxu0 0.0
    %932 = vmatprep.subr.mxu0 0.0
    %933 = vmatpush1.msra.mxu0 0.0
    %934 = vmatprep.subr.mxu0 0.0
    %935 = vmatpush1.msra.mxu0 0.0
    %936 = vmatprep.subr.mxu0 0.0
    %937 = vmatpush1.msra.mxu0 0.0
    %938 = vmatprep.mubr.f32.mxu0 0.0
    %939 = vmatmul.mubr.f32.gmra.mrb[0].mxu0 %v872
    %v940 = vpop.f32.mrb[0].mxu0
    %v941 = vadd.f32 0.0, %v940
    %v942 = vpop.f32.mrb[0].mxu0
    %943 = vdwg.mxu0
    %v944 = vadd.f32 %v871, %v941
    %v945 = vxor.u32 %v944, 2147483648
    %v946 = vmul.f32 %v945, 1.442695
    %v947 = vpow.pop %v946
    %v948 = vadd.f32 %v947, 1.0
    %v949 = vrcp.pop %v948
    %v950 = vmul.f32 1.0, %v949
    %v951 = vtanh.pop %v944
    %v952 = vsel %vm422, %v950, %v951
    %v953 = vmul.f32 %v952, %v751
    %955 = vrot.lane.b32.xlu0 %v952, 32
    %v956 = vpop.permute.xlu0 %955
    %v958 = vmul.f32 %v952, %v956
    %960 = vrot.lane.b32.xlu0 %v958, 32
    %v961 = vpop.permute.xlu0 %960
    %v963 = vadd.f32 %v953, %v961
    %v964 = vtanh.pop %v963
    %966 = vrot.lane.b32.xlu0 %v964, 32
    %v967 = vpop.permute.xlu0 %966
    %v969 = vmul.f32 %v952, %v967
    %971 = vrot.lane.b32.xlu0 %v969, 64
    %v972 = vpop.permute.xlu0 %971
    %974 = vrot.lane.b32.xlu0 %v863, 96
    %v975 = vpop.permute.xlu0 %974
    %v977 = vsel %vm173, %v972, %v975
    %v979 = vsel %vm548, %v977, 0
    %981 = vmatprep.subr.mxu0 0.0
    %982 = vmatpush1.msra.mxu0 %v145
    %983 = vmatprep.subr.mxu0 0.0
    %984 = vmatpush1.msra.mxu0 %v146
    %985 = vmatprep.subr.mxu0 0.0
    %986 = vmatpush1.msra.mxu0 %v147
    %987 = vmatprep.subr.mxu0 0.0
    %988 = vmatpush1.msra.mxu0 %v148
    %989 = vmatprep.subr.mxu0 0.0
    %990 = vmatpush1.msra.mxu0 %v149
    %991 = vmatprep.subr.mxu0 0.0
    %992 = vmatpush1.msra.mxu0 %v150
    %993 = vmatprep.subr.mxu0 0.0
    %994 = vmatpush1.msra.mxu0 %v151
    %995 = vmatprep.subr.mxu0 0.0
    %996 = vmatpush1.msra.mxu0 %v152
    %997 = vmatprep.subr.mxu0 0.0
    %998 = vmatpush1.msra.mxu0 0.0
    %999 = vmatprep.subr.mxu0 0.0
    %1000 = vmatpush1.msra.mxu0 0.0
    %1001 = vmatprep.subr.mxu0 0.0
    %1002 = vmatpush1.msra.mxu0 0.0
    %1003 = vmatprep.subr.mxu0 0.0
    %1004 = vmatpush1.msra.mxu0 0.0
    %1005 = vmatprep.subr.mxu0 0.0
    %1006 = vmatpush1.msra.mxu0 0.0
    %1007 = vmatprep.subr.mxu0 0.0
    %1008 = vmatpush1.msra.mxu0 0.0
    %1009 = vmatprep.subr.mxu0 0.0
    %1010 = vmatpush1.msra.mxu0 0.0
    %1011 = vmatprep.subr.mxu0 0.0
    %1012 = vmatpush1.msra.mxu0 0.0
    %1013 = vmatprep.subr.mxu0 0.0
    %1014 = vmatpush1.msra.mxu0 0.0
    %1015 = vmatprep.subr.mxu0 0.0
    %1016 = vmatpush1.msra.mxu0 0.0
    %1017 = vmatprep.subr.mxu0 0.0
    %1018 = vmatpush1.msra.mxu0 0.0
    %1019 = vmatprep.subr.mxu0 0.0
    %1020 = vmatpush1.msra.mxu0 0.0
    %1021 = vmatprep.subr.mxu0 0.0
    %1022 = vmatpush1.msra.mxu0 0.0
    %1023 = vmatprep.subr.mxu0 0.0
    %1024 = vmatpush1.msra.mxu0 0.0
    %1025 = vmatprep.subr.mxu0 0.0
    %1026 = vmatpush1.msra.mxu0 0.0
    %1027 = vmatprep.subr.mxu0 0.0
    %1028 = vmatpush1.msra.mxu0 0.0
    %1029 = vmatprep.subr.mxu0 0.0
    %1030 = vmatpush1.msra.mxu0 0.0
    %1031 = vmatprep.subr.mxu0 0.0
    %1032 = vmatpush1.msra.mxu0 0.0
    %1033 = vmatprep.subr.mxu0 0.0
    %1034 = vmatpush1.msra.mxu0 0.0
    %1035 = vmatprep.subr.mxu0 0.0
    %1036 = vmatpush1.msra.mxu0 0.0
    %1037 = vmatprep.subr.mxu0 0.0
    %1038 = vmatpush1.msra.mxu0 0.0
    %1039 = vmatprep.subr.mxu0 0.0
    %1040 = vmatpush1.msra.mxu0 0.0
    %1041 = vmatprep.subr.mxu0 0.0
    %1042 = vmatpush1.msra.mxu0 0.0
    %1043 = vmatprep.subr.mxu0 0.0
    %1044 = vmatpush1.msra.mxu0 0.0
    %1045 = vmatprep.mubr.f32.mxu0 0.0
    %1046 = vmatmul.mubr.f32.gmra.mrb[0].mxu0 %v979
    %v1047 = vpop.f32.mrb[0].mxu0
    %v1048 = vadd.f32 %v158, %v1047
    %v1049 = vpop.f32.mrb[0].mxu0
    %1050 = vdwg.mxu0
    %v1051 = vxor.u32 %v1048, 2147483648
    %v1052 = vmul.f32 %v1051, 1.442695
    %v1053 = vpow.pop %v1052
    %v1054 = vadd.f32 %v1053, 1.0
    %v1055 = vrcp.pop %v1054
    %v1056 = vmul.f32 1.0, %v1055
    %v1057 = vtanh.pop %v1048
    %v1058 = vsel %vm422, %v1056, %v1057
    %v1059 = vmul.f32 %v1058, %v857
    %1061 = vrot.lane.b32.xlu0 %v1058, 32
    %v1062 = vpop.permute.xlu0 %1061
    %v1064 = vmul.f32 %v1058, %v1062
    %1066 = vrot.lane.b32.xlu0 %v1064, 32
    %v1067 = vpop.permute.xlu0 %1066
    %v1069 = vadd.f32 %v1059, %v1067
    %v1070 = vtanh.pop %v1069
    %1072 = vrot.lane.b32.xlu0 %v1070, 32
    %v1073 = vpop.permute.xlu0 %1072
    %v1075 = vmul.f32 %v1058, %v1073
    %1077 = vrot.lane.b32.xlu0 %v1075, 64
    %v1078 = vpop.permute.xlu0 %1077
    %s1080 = scalar_lea.vmem [#allocation3], 4
    %1081 = vst.msk [vmem:[%s1080] sm:$0x3] %vm656, %v1078
    %s1082 = scalar_lea.vmem [#allocation2], 6
    %v1083 = vld [vmem:[%s1082] sm:$0x3]
    %v1084 = vsel %vm173, %v972, 0
    %1086 = vmatprep.subr.mxu0 0.0
    %1087 = vmatpush1.msra.mxu0 %v141
    %1088 = vmatprep.subr.mxu0 0.0
    %1089 = vmatpush1.msra.mxu0 %v142
    %1090 = vmatprep.subr.mxu0 0.0
    %1091 = vmatpush1.msra.mxu0 %v143
    %1092 = vmatprep.subr.mxu0 0.0
    %1093 = vmatpush1.msra.mxu0 %v144
    %1094 = vmatprep.subr.mxu0 0.0
    %1095 = vmatpush1.msra.mxu0 0.0
    %1096 = vmatprep.subr.mxu0 0.0
    %1097 = vmatpush1.msra.mxu0 0.0
    %1098 = vmatprep.subr.mxu0 0.0
    %1099 = vmatpush1.msra.mxu0 0.0
    %1100 = vmatprep.subr.mxu0 0.0
    %1101 = vmatpush1.msra.mxu0 0.0
    %1102 = vmatprep.subr.mxu0 0.0
    %1103 = vmatpush1.msra.mxu0 0.0
    %1104 = vmatprep.subr.mxu0 0.0
    %1105 = vmatpush1.msra.mxu0 0.0
    %1106 = vmatprep.subr.mxu0 0.0
    %1107 = vmatpush1.msra.mxu0 0.0
    %1108 = vmatprep.subr.mxu0 0.0
    %1109 = vmatpush1.msra.mxu0 0.0
    %1110 = vmatprep.subr.mxu0 0.0
    %1111 = vmatpush1.msra.mxu0 0.0
    %1112 = vmatprep.subr.mxu0 0.0
    %1113 = vmatpush1.msra.mxu0 0.0
    %1114 = vmatprep.subr.mxu0 0.0
    %1115 = vmatpush1.msra.mxu0 0.0
    %1116 = vmatprep.subr.mxu0 0.0
    %1117 = vmatpush1.msra.mxu0 0.0
    %1118 = vmatprep.subr.mxu0 0.0
    %1119 = vmatpush1.msra.mxu0 0.0
    %1120 = vmatprep.subr.mxu0 0.0
    %1121 = vmatpush1.msra.mxu0 0.0
    %1122 = vmatprep.subr.mxu0 0.0
    %1123 = vmatpush1.msra.mxu0 0.0
    %1124 = vmatprep.subr.mxu0 0.0
    %1125 = vmatpush1.msra.mxu0 0.0
    %1126 = vmatprep.subr.mxu0 0.0
    %1127 = vmatpush1.msra.mxu0 0.0
    %1128 = vmatprep.subr.mxu0 0.0
    %1129 = vmatpush1.msra.mxu0 0.0
    %1130 = vmatprep.subr.mxu0 0.0
    %1131 = vmatpush1.msra.mxu0 0.0
    %1132 = vmatprep.subr.mxu0 0.0
    %1133 = vmatpush1.msra.mxu0 0.0
    %1134 = vmatprep.subr.mxu0 0.0
    %1135 = vmatpush1.msra.mxu0 0.0
    %1136 = vmatprep.subr.mxu0 0.0
    %1137 = vmatpush1.msra.mxu0 0.0
    %1138 = vmatprep.subr.mxu0 0.0
    %1139 = vmatpush1.msra.mxu0 0.0
    %1140 = vmatprep.subr.mxu0 0.0
    %1141 = vmatpush1.msra.mxu0 0.0
    %1142 = vmatprep.subr.mxu0 0.0
    %1143 = vmatpush1.msra.mxu0 0.0
    %1144 = vmatprep.subr.mxu0 0.0
    %1145 = vmatpush1.msra.mxu0 0.0
    %1146 = vmatprep.subr.mxu0 0.0
    %1147 = vmatpush1.msra.mxu0 0.0
    %1148 = vmatprep.subr.mxu0 0.0
    %1149 = vmatpush1.msra.mxu0 0.0
    %1150 = vmatprep.mubr.f32.mxu0 0.0
    %1151 = vmatmul.mubr.f32.gmra.mrb[0].mxu0 %v1084
    %v1152 = vpop.f32.mrb[0].mxu0
    %v1153 = vadd.f32 0.0, %v1152
    %v1154 = vpop.f32.mrb[0].mxu0
    %1155 = vdwg.mxu0
    %v1156 = vadd.f32 %v1083, %v1153
    %v1157 = vxor.u32 %v1156, 2147483648
    %v1158 = vmul.f32 %v1157, 1.442695
    %v1159 = vpow.pop %v1158
    %v1160 = vadd.f32 %v1159, 1.0
    %v1161 = vrcp.pop %v1160
    %v1162 = vmul.f32 1.0, %v1161
    %v1163 = vtanh.pop %v1156
    %v1164 = vsel %vm422, %v1162, %v1163
    %v1165 = vmul.f32 %v1164, %v963
    %1167 = vrot.lane.b32.xlu0 %v1164, 32
    %v1168 = vpop.permute.xlu0 %1167
    %v1170 = vmul.f32 %v1164, %v1168
    %1172 = vrot.lane.b32.xlu0 %v1170, 32
    %v1173 = vpop.permute.xlu0 %1172
    %v1175 = vadd.f32 %v1165, %v1173
    %v1176 = vtanh.pop %v1175
    %1178 = vrot.lane.b32.xlu0 %v1176, 32
    %v1179 = vpop.permute.xlu0 %1178
    %v1181 = vmul.f32 %v1164, %v1179
    %1183 = vrot.lane.b32.xlu0 %v1181, 64
    %v1184 = vpop.permute.xlu0 %1183
    %1186 = vrot.lane.b32.xlu0 %v1075, 96
    %v1187 = vpop.permute.xlu0 %1186
    %v1189 = vsel %vm173, %v1184, %v1187
    %v1191 = vsel %vm548, %v1189, 0
    %1193 = vmatprep.subr.mxu0 0.0
    %1194 = vmatpush1.msra.mxu0 %v145
    %1195 = vmatprep.subr.mxu0 0.0
    %1196 = vmatpush1.msra.mxu0 %v146
    %1197 = vmatprep.subr.mxu0 0.0
    %1198 = vmatpush1.msra.mxu0 %v147
    %1199 = vmatprep.subr.mxu0 0.0
    %1200 = vmatpush1.msra.mxu0 %v148
    %1201 = vmatprep.subr.mxu0 0.0
    %1202 = vmatpush1.msra.mxu0 %v149
    %1203 = vmatprep.subr.mxu0 0.0
    %1204 = vmatpush1.msra.mxu0 %v150
    %1205 = vmatprep.subr.mxu0 0.0
    %1206 = vmatpush1.msra.mxu0 %v151
    %1207 = vmatprep.subr.mxu0 0.0
    %1208 = vmatpush1.msra.mxu0 %v152
    %1209 = vmatprep.subr.mxu0 0.0
    %1210 = vmatpush1.msra.mxu0 0.0
    %1211 = vmatprep.subr.mxu0 0.0
    %1212 = vmatpush1.msra.mxu0 0.0
    %1213 = vmatprep.subr.mxu0 0.0
    %1214 = vmatpush1.msra.mxu0 0.0
    %1215 = vmatprep.subr.mxu0 0.0
    %1216 = vmatpush1.msra.mxu0 0.0
    %1217 = vmatprep.subr.mxu0 0.0
    %1218 = vmatpush1.msra.mxu0 0.0
    %1219 = vmatprep.subr.mxu0 0.0
    %1220 = vmatpush1.msra.mxu0 0.0
    %1221 = vmatprep.subr.mxu0 0.0
    %1222 = vmatpush1.msra.mxu0 0.0
    %1223 = vmatprep.subr.mxu0 0.0
    %1224 = vmatpush1.msra.mxu0 0.0
    %1225 = vmatprep.subr.mxu0 0.0
    %1226 = vmatpush1.msra.mxu0 0.0
    %1227 = vmatprep.subr.mxu0 0.0
    %1228 = vmatpush1.msra.mxu0 0.0
    %1229 = vmatprep.subr.mxu0 0.0
    %1230 = vmatpush1.msra.mxu0 0.0
    %1231 = vmatprep.subr.mxu0 0.0
    %1232 = vmatpush1.msra.mxu0 0.0
    %1233 = vmatprep.subr.mxu0 0.0
    %1234 = vmatpush1.msra.mxu0 0.0
    %1235 = vmatprep.subr.mxu0 0.0
    %1236 = vmatpush1.msra.mxu0 0.0
    %1237 = vmatprep.subr.mxu0 0.0
    %1238 = vmatpush1.msra.mxu0 0.0
    %1239 = vmatprep.subr.mxu0 0.0
    %1240 = vmatpush1.msra.mxu0 0.0
    %1241 = vmatprep.subr.mxu0 0.0
    %1242 = vmatpush1.msra.mxu0 0.0
    %1243 = vmatprep.subr.mxu0 0.0
    %1244 = vmatpush1.msra.mxu0 0.0
    %1245 = vmatprep.subr.mxu0 0.0
    %1246 = vmatpush1.msra.mxu0 0.0
    %1247 = vmatprep.subr.mxu0 0.0
    %1248 = vmatpush1.msra.mxu0 0.0
    %1249 = vmatprep.subr.mxu0 0.0
    %1250 = vmatpush1.msra.mxu0 0.0
    %1251 = vmatprep.subr.mxu0 0.0
    %1252 = vmatpush1.msra.mxu0 0.0
    %1253 = vmatprep.subr.mxu0 0.0
    %1254 = vmatpush1.msra.mxu0 0.0
    %1255 = vmatprep.subr.mxu0 0.0
    %1256 = vmatpush1.msra.mxu0 0.0
    %1257 = vmatprep.mubr.f32.mxu0 0.0
    %1258 = vmatmul.mubr.f32.gmra.mrb[0].mxu0 %v1191
    %v1259 = vpop.f32.mrb[0].mxu0
    %v1260 = vadd.f32 %v158, %v1259
    %v1261 = vpop.f32.mrb[0].mxu0
    %1262 = vdwg.mxu0
    %v1263 = vxor.u32 %v1260, 2147483648
    %v1264 = vmul.f32 %v1263, 1.442695
    %v1265 = vpow.pop %v1264
    %v1266 = vadd.f32 %v1265, 1.0
    %v1267 = vrcp.pop %v1266
    %v1268 = vmul.f32 1.0, %v1267
    %v1269 = vtanh.pop %v1260
    %v1270 = vsel %vm422, %v1268, %v1269
    %v1271 = vmul.f32 %v1270, %v1069
    %1273 = vrot.lane.b32.xlu0 %v1270, 32
    %v1274 = vpop.permute.xlu0 %1273
    %v1276 = vmul.f32 %v1270, %v1274
    %1278 = vrot.lane.b32.xlu0 %v1276, 32
    %v1279 = vpop.permute.xlu0 %1278
    %v1281 = vadd.f32 %v1271, %v1279
    %v1282 = vtanh.pop %v1281
    %1284 = vrot.lane.b32.xlu0 %v1282, 32
    %v1285 = vpop.permute.xlu0 %1284
    %v1287 = vmul.f32 %v1270, %v1285
    %1289 = vrot.lane.b32.xlu0 %v1287, 64
    %v1290 = vpop.permute.xlu0 %1289
    %s1292 = scalar_lea.vmem [#allocation3], 6
    %1293 = vst.msk [vmem:[%s1292] sm:$0x3] %vm656, %v1290
    %s1294 = scalar_lea.vmem [#allocation2], 8
    %v1295 = vld [vmem:[%s1294] sm:$0x3]
    %v1296 = vsel %vm173, %v1184, 0
    %1298 = vmatprep.subr.mxu0 0.0
    %1299 = vmatpush1.msra.mxu0 %v141
    %1300 = vmatprep.subr.mxu0 0.0
    %1301 = vmatpush1.msra.mxu0 %v142
    %1302 = vmatprep.subr.mxu0 0.0
    %1303 = vmatpush1.msra.mxu0 %v143
    %1304 = vmatprep.subr.mxu0 0.0
    %1305 = vmatpush1.msra.mxu0 %v144
    %1306 = vmatprep.subr.mxu0 0.0
    %1307 = vmatpush1.msra.mxu0 0.0
    %1308 = vmatprep.subr.mxu0 0.0
    %1309 = vmatpush1.msra.mxu0 0.0
    %1310 = vmatprep.subr.mxu0 0.0
    %1311 = vmatpush1.msra.mxu0 0.0
    %1312 = vmatprep.subr.mxu0 0.0
    %1313 = vmatpush1.msra.mxu0 0.0
    %1314 = vmatprep.subr.mxu0 0.0
    %1315 = vmatpush1.msra.mxu0 0.0
    %1316 = vmatprep.subr.mxu0 0.0
    %1317 = vmatpush1.msra.mxu0 0.0
    %1318 = vmatprep.subr.mxu0 0.0
    %1319 = vmatpush1.msra.mxu0 0.0
    %1320 = vmatprep.subr.mxu0 0.0
    %1321 = vmatpush1.msra.mxu0 0.0
    %1322 = vmatprep.subr.mxu0 0.0
    %1323 = vmatpush1.msra.mxu0 0.0
    %1324 = vmatprep.subr.mxu0 0.0
    %1325 = vmatpush1.msra.mxu0 0.0
    %1326 = vmatprep.subr.mxu0 0.0
    %1327 = vmatpush1.msra.mxu0 0.0
    %1328 = vmatprep.subr.mxu0 0.0
    %1329 = vmatpush1.msra.mxu0 0.0
    %1330 = vmatprep.subr.mxu0 0.0
    %1331 = vmatpush1.msra.mxu0 0.0
    %1332 = vmatprep.subr.mxu0 0.0
    %1333 = vmatpush1.msra.mxu0 0.0
    %1334 = vmatprep.subr.mxu0 0.0
    %1335 = vmatpush1.msra.mxu0 0.0
    %1336 = vmatprep.subr.mxu0 0.0
    %1337 = vmatpush1.msra.mxu0 0.0
    %1338 = vmatprep.subr.mxu0 0.0
    %1339 = vmatpush1.msra.mxu0 0.0
    %1340 = vmatprep.subr.mxu0 0.0
    %1341 = vmatpush1.msra.mxu0 0.0
    %1342 = vmatprep.subr.mxu0 0.0
    %1343 = vmatpush1.msra.mxu0 0.0
    %1344 = vmatprep.subr.mxu0 0.0
    %1345 = vmatpush1.msra.mxu0 0.0
    %1346 = vmatprep.subr.mxu0 0.0
    %1347 = vmatpush1.msra.mxu0 0.0
    %1348 = vmatprep.subr.mxu0 0.0
    %1349 = vmatpush1.msra.mxu0 0.0
    %1350 = vmatprep.subr.mxu0 0.0
    %1351 = vmatpush1.msra.mxu0 0.0
    %1352 = vmatprep.subr.mxu0 0.0
    %1353 = vmatpush1.msra.mxu0 0.0
    %1354 = vmatprep.subr.mxu0 0.0
    %1355 = vmatpush1.msra.mxu0 0.0
    %1356 = vmatprep.subr.mxu0 0.0
    %1357 = vmatpush1.msra.mxu0 0.0
    %1358 = vmatprep.subr.mxu0 0.0
    %1359 = vmatpush1.msra.mxu0 0.0
    %1360 = vmatprep.subr.mxu0 0.0
    %1361 = vmatpush1.msra.mxu0 0.0
    %1362 = vmatprep.mubr.f32.mxu0 0.0
    %1363 = vmatmul.mubr.f32.gmra.mrb[0].mxu0 %v1296
    %v1364 = vpop.f32.mrb[0].mxu0
    %v1365 = vadd.f32 0.0, %v1364
    %v1366 = vpop.f32.mrb[0].mxu0
    %1367 = vdwg.mxu0
    %v1368 = vadd.f32 %v1295, %v1365
    %v1369 = vxor.u32 %v1368, 2147483648
    %v1370 = vmul.f32 %v1369, 1.442695
    %v1371 = vpow.pop %v1370
    %v1372 = vadd.f32 %v1371, 1.0
    %v1373 = vrcp.pop %v1372
    %v1374 = vmul.f32 1.0, %v1373
    %v1375 = vtanh.pop %v1368
    %v1376 = vsel %vm422, %v1374, %v1375
    %v1377 = vmul.f32 %v1376, %v1175
    %1379 = vrot.lane.b32.xlu0 %v1376, 32
    %v1380 = vpop.permute.xlu0 %1379
    %v1382 = vmul.f32 %v1376, %v1380
    %1384 = vrot.lane.b32.xlu0 %v1382, 32
    %v1385 = vpop.permute.xlu0 %1384
    %v1387 = vadd.f32 %v1377, %v1385
    %v1388 = vtanh.pop %v1387
    %1390 = vrot.lane.b32.xlu0 %v1388, 32
    %v1391 = vpop.permute.xlu0 %1390
    %v1393 = vmul.f32 %v1376, %v1391
    %1395 = vrot.lane.b32.xlu0 %v1393, 64
    %v1396 = vpop.permute.xlu0 %1395
    %1398 = vrot.lane.b32.xlu0 %v1287, 96
    %v1399 = vpop.permute.xlu0 %1398
    %v1401 = vsel %vm173, %v1396, %v1399
    %v1403 = vsel %vm548, %v1401, 0
    %1405 = vmatprep.subr.mxu0 0.0
    %1406 = vmatpush1.msra.mxu0 %v145
    %1407 = vmatprep.subr.mxu0 0.0
    %1408 = vmatpush1.msra.mxu0 %v146
    %1409 = vmatprep.subr.mxu0 0.0
    %1410 = vmatpush1.msra.mxu0 %v147
    %1411 = vmatprep.subr.mxu0 0.0
    %1412 = vmatpush1.msra.mxu0 %v148
    %1413 = vmatprep.subr.mxu0 0.0
    %1414 = vmatpush1.msra.mxu0 %v149
    %1415 = vmatprep.subr.mxu0 0.0
    %1416 = vmatpush1.msra.mxu0 %v150
    %1417 = vmatprep.subr.mxu0 0.0
    %1418 = vmatpush1.msra.mxu0 %v151
    %1419 = vmatprep.subr.mxu0 0.0
    %1420 = vmatpush1.msra.mxu0 %v152
    %1421 = vmatprep.subr.mxu0 0.0
    %1422 = vmatpush1.msra.mxu0 0.0
    %1423 = vmatprep.subr.mxu0 0.0
    %1424 = vmatpush1.msra.mxu0 0.0
    %1425 = vmatprep.subr.mxu0 0.0
    %1426 = vmatpush1.msra.mxu0 0.0
    %1427 = vmatprep.subr.mxu0 0.0
    %1428 = vmatpush1.msra.mxu0 0.0
    %1429 = vmatprep.subr.mxu0 0.0
    %1430 = vmatpush1.msra.mxu0 0.0
    %1431 = vmatprep.subr.mxu0 0.0
    %1432 = vmatpush1.msra.mxu0 0.0
    %1433 = vmatprep.subr.mxu0 0.0
    %1434 = vmatpush1.msra.mxu0 0.0
    %1435 = vmatprep.subr.mxu0 0.0
    %1436 = vmatpush1.msra.mxu0 0.0
    %1437 = vmatprep.subr.mxu0 0.0
    %1438 = vmatpush1.msra.mxu0 0.0
    %1439 = vmatprep.subr.mxu0 0.0
    %1440 = vmatpush1.msra.mxu0 0.0
    %1441 = vmatprep.subr.mxu0 0.0
    %1442 = vmatpush1.msra.mxu0 0.0
    %1443 = vmatprep.subr.mxu0 0.0
    %1444 = vmatpush1.msra.mxu0 0.0
    %1445 = vmatprep.subr.mxu0 0.0
    %1446 = vmatpush1.msra.mxu0 0.0
    %1447 = vmatprep.subr.mxu0 0.0
    %1448 = vmatpush1.msra.mxu0 0.0
    %1449 = vmatprep.subr.mxu0 0.0
    %1450 = vmatpush1.msra.mxu0 0.0
    %1451 = vmatprep.subr.mxu0 0.0
    %1452 = vmatpush1.msra.mxu0 0.0
    %1453 = vmatprep.subr.mxu0 0.0
    %1454 = vmatpush1.msra.mxu0 0.0
    %1455 = vmatprep.subr.mxu0 0.0
    %1456 = vmatpush1.msra.mxu0 0.0
    %1457 = vmatprep.subr.mxu0 0.0
    %1458 = vmatpush1.msra.mxu0 0.0
    %1459 = vmatprep.subr.mxu0 0.0
    %1460 = vmatpush1.msra.mxu0 0.0
    %1461 = vmatprep.subr.mxu0 0.0
    %1462 = vmatpush1.msra.mxu0 0.0
    %1463 = vmatprep.subr.mxu0 0.0
    %1464 = vmatpush1.msra.mxu0 0.0
    %1465 = vmatprep.subr.mxu0 0.0
    %1466 = vmatpush1.msra.mxu0 0.0
    %1467 = vmatprep.subr.mxu0 0.0
    %1468 = vmatpush1.msra.mxu0 0.0
    %1469 = vmatprep.mubr.f32.mxu0 0.0
    %1470 = vmatmul.mubr.f32.gmra.mrb[0].mxu0 %v1403
    %v1471 = vpop.f32.mrb[0].mxu0
    %v1472 = vadd.f32 %v158, %v1471
    %v1473 = vpop.f32.mrb[0].mxu0
    %1474 = vdwg.mxu0
    %v1475 = vxor.u32 %v1472, 2147483648
    %v1476 = vmul.f32 %v1475, 1.442695
    %v1477 = vpow.pop %v1476
    %v1478 = vadd.f32 %v1477, 1.0
    %v1479 = vrcp.pop %v1478
    %v1480 = vmul.f32 1.0, %v1479
    %v1481 = vtanh.pop %v1472
    %v1482 = vsel %vm422, %v1480, %v1481
    %v1483 = vmul.f32 %v1482, %v1281
    %1485 = vrot.lane.b32.xlu0 %v1482, 32
    %v1486 = vpop.permute.xlu0 %1485
    %v1488 = vmul.f32 %v1482, %v1486
    %1490 = vrot.lane.b32.xlu0 %v1488, 32
    %v1491 = vpop.permute.xlu0 %1490
    %v1493 = vadd.f32 %v1483, %v1491
    %v1494 = vtanh.pop %v1493
    %1496 = vrot.lane.b32.xlu0 %v1494, 32
    %v1497 = vpop.permute.xlu0 %1496
    %v1499 = vmul.f32 %v1482, %v1497
    %1501 = vrot.lane.b32.xlu0 %v1499, 64
    %v1502 = vpop.permute.xlu0 %1501
    %s1504 = scalar_lea.vmem [#allocation3], 8
    %1505 = vst.msk [vmem:[%s1504] sm:$0x3] %vm656, %v1502
    %s1506 = scalar_lea.vmem [#allocation2], 10
    %v1507 = vld [vmem:[%s1506] sm:$0x3]
    %v1508 = vsel %vm173, %v1396, 0
    %1510 = vmatprep.subr.mxu0 0.0
    %1511 = vmatpush1.msra.mxu0 %v141
    %1512 = vmatprep.subr.mxu0 0.0
    %1513 = vmatpush1.msra.mxu0 %v142
    %1514 = vmatprep.subr.mxu0 0.0
    %1515 = vmatpush1.msra.mxu0 %v143
    %1516 = vmatprep.subr.mxu0 0.0
    %1517 = vmatpush1.msra.mxu0 %v144
    %1518 = vmatprep.subr.mxu0 0.0
    %1519 = vmatpush1.msra.mxu0 0.0
    %1520 = vmatprep.subr.mxu0 0.0
    %1521 = vmatpush1.msra.mxu0 0.0
    %1522 = vmatprep.subr.mxu0 0.0
    %1523 = vmatpush1.msra.mxu0 0.0
    %1524 = vmatprep.subr.mxu0 0.0
    %1525 = vmatpush1.msra.mxu0 0.0
    %1526 = vmatprep.subr.mxu0 0.0
    %1527 = vmatpush1.msra.mxu0 0.0
    %1528 = vmatprep.subr.mxu0 0.0
    %1529 = vmatpush1.msra.mxu0 0.0
    %1530 = vmatprep.subr.mxu0 0.0
    %1531 = vmatpush1.msra.mxu0 0.0
    %1532 = vmatprep.subr.mxu0 0.0
    %1533 = vmatpush1.msra.mxu0 0.0
    %1534 = vmatprep.subr.mxu0 0.0
    %1535 = vmatpush1.msra.mxu0 0.0
    %1536 = vmatprep.subr.mxu0 0.0
    %1537 = vmatpush1.msra.mxu0 0.0
    %1538 = vmatprep.subr.mxu0 0.0
    %1539 = vmatpush1.msra.mxu0 0.0
    %1540 = vmatprep.subr.mxu0 0.0
    %1541 = vmatpush1.msra.mxu0 0.0
    %1542 = vmatprep.subr.mxu0 0.0
    %1543 = vmatpush1.msra.mxu0 0.0
    %1544 = vmatprep.subr.mxu0 0.0
    %1545 = vmatpush1.msra.mxu0 0.0
    %1546 = vmatprep.subr.mxu0 0.0
    %1547 = vmatpush1.msra.mxu0 0.0
    %1548 = vmatprep.subr.mxu0 0.0
    %1549 = vmatpush1.msra.mxu0 0.0
    %1550 = vmatprep.subr.mxu0 0.0
    %1551 = vmatpush1.msra.mxu0 0.0
    %1552 = vmatprep.subr.mxu0 0.0
    %1553 = vmatpush1.msra.mxu0 0.0
    %1554 = vmatprep.subr.mxu0 0.0
    %1555 = vmatpush1.msra.mxu0 0.0
    %1556 = vmatprep.subr.mxu0 0.0
    %1557 = vmatpush1.msra.mxu0 0.0
    %1558 = vmatprep.subr.mxu0 0.0
    %1559 = vmatpush1.msra.mxu0 0.0
    %1560 = vmatprep.subr.mxu0 0.0
    %1561 = vmatpush1.msra.mxu0 0.0
    %1562 = vmatprep.subr.mxu0 0.0
    %1563 = vmatpush1.msra.mxu0 0.0
    %1564 = vmatprep.subr.mxu0 0.0
    %1565 = vmatpush1.msra.mxu0 0.0
    %1566 = vmatprep.subr.mxu0 0.0
    %1567 = vmatpush1.msra.mxu0 0.0
    %1568 = vmatprep.subr.mxu0 0.0
    %1569 = vmatpush1.msra.mxu0 0.0
    %1570 = vmatprep.subr.mxu0 0.0
    %1571 = vmatpush1.msra.mxu0 0.0
    %1572 = vmatprep.subr.mxu0 0.0
    %1573 = vmatpush1.msra.mxu0 0.0
    %1574 = vmatprep.mubr.f32.mxu0 0.0
    %1575 = vmatmul.mubr.f32.gmra.mrb[0].mxu0 %v1508
    %v1576 = vpop.f32.mrb[0].mxu0
    %v1577 = vadd.f32 0.0, %v1576
    %v1578 = vpop.f32.mrb[0].mxu0
    %1579 = vdwg.mxu0
    %v1580 = vadd.f32 %v1507, %v1577
    %v1581 = vxor.u32 %v1580, 2147483648
    %v1582 = vmul.f32 %v1581, 1.442695
    %v1583 = vpow.pop %v1582
    %v1584 = vadd.f32 %v1583, 1.0
    %v1585 = vrcp.pop %v1584
    %v1586 = vmul.f32 1.0, %v1585
    %v1587 = vtanh.pop %v1580
    %v1588 = vsel %vm422, %v1586, %v1587
    %v1589 = vmul.f32 %v1588, %v1387
    %1591 = vrot.lane.b32.xlu0 %v1588, 32
    %v1592 = vpop.permute.xlu0 %1591
    %v1594 = vmul.f32 %v1588, %v1592
    %1596 = vrot.lane.b32.xlu0 %v1594, 32
    %v1597 = vpop.permute.xlu0 %1596
    %v1599 = vadd.f32 %v1589, %v1597
    %v1600 = vtanh.pop %v1599
    %1602 = vrot.lane.b32.xlu0 %v1600, 32
    %v1603 = vpop.permute.xlu0 %1602
    %v1605 = vmul.f32 %v1588, %v1603
    %1607 = vrot.lane.b32.xlu0 %v1605, 64
    %v1608 = vpop.permute.xlu0 %1607
    %1610 = vrot.lane.b32.xlu0 %v1499, 96
    %v1611 = vpop.permute.xlu0 %1610
    %v1613 = vsel %vm173, %v1608, %v1611
    %v1615 = vsel %vm548, %v1613, 0
    %1617 = vmatprep.subr.mxu0 0.0
    %1618 = vmatpush1.msra.mxu0 %v145
    %1619 = vmatprep.subr.mxu0 0.0
    %1620 = vmatpush1.msra.mxu0 %v146
    %1621 = vmatprep.subr.mxu0 0.0
    %1622 = vmatpush1.msra.mxu0 %v147
    %1623 = vmatprep.subr.mxu0 0.0
    %1624 = vmatpush1.msra.mxu0 %v148
    %1625 = vmatprep.subr.mxu0 0.0
    %1626 = vmatpush1.msra.mxu0 %v149
    %1627 = vmatprep.subr.mxu0 0.0
    %1628 = vmatpush1.msra.mxu0 %v150
    %1629 = vmatprep.subr.mxu0 0.0
    %1630 = vmatpush1.msra.mxu0 %v151
    %1631 = vmatprep.subr.mxu0 0.0
    %1632 = vmatpush1.msra.mxu0 %v152
    %1633 = vmatprep.subr.mxu0 0.0
    %1634 = vmatpush1.msra.mxu0 0.0
    %1635 = vmatprep.subr.mxu0 0.0
    %1636 = vmatpush1.msra.mxu0 0.0
    %1637 = vmatprep.subr.mxu0 0.0
    %1638 = vmatpush1.msra.mxu0 0.0
    %1639 = vmatprep.subr.mxu0 0.0
    %1640 = vmatpush1.msra.mxu0 0.0
    %1641 = vmatprep.subr.mxu0 0.0
    %1642 = vmatpush1.msra.mxu0 0.0
    %1643 = vmatprep.subr.mxu0 0.0
    %1644 = vmatpush1.msra.mxu0 0.0
    %1645 = vmatprep.subr.mxu0 0.0
    %1646 = vmatpush1.msra.mxu0 0.0
    %1647 = vmatprep.subr.mxu0 0.0
    %1648 = vmatpush1.msra.mxu0 0.0
    %1649 = vmatprep.subr.mxu0 0.0
    %1650 = vmatpush1.msra.mxu0 0.0
    %1651 = vmatprep.subr.mxu0 0.0
    %1652 = vmatpush1.msra.mxu0 0.0
    %1653 = vmatprep.subr.mxu0 0.0
    %1654 = vmatpush1.msra.mxu0 0.0
    %1655 = vmatprep.subr.mxu0 0.0
    %1656 = vmatpush1.msra.mxu0 0.0
    %1657 = vmatprep.subr.mxu0 0.0
    %1658 = vmatpush1.msra.mxu0 0.0
    %1659 = vmatprep.subr.mxu0 0.0
    %1660 = vmatpush1.msra.mxu0 0.0
    %1661 = vmatprep.subr.mxu0 0.0
    %1662 = vmatpush1.msra.mxu0 0.0
    %1663 = vmatprep.subr.mxu0 0.0
    %1664 = vmatpush1.msra.mxu0 0.0
    %1665 = vmatprep.subr.mxu0 0.0
    %1666 = vmatpush1.msra.mxu0 0.0
    %1667 = vmatprep.subr.mxu0 0.0
    %1668 = vmatpush1.msra.mxu0 0.0
    %1669 = vmatprep.subr.mxu0 0.0
    %1670 = vmatpush1.msra.mxu0 0.0
    %1671 = vmatprep.subr.mxu0 0.0
    %1672 = vmatpush1.msra.mxu0 0.0
    %1673 = vmatprep.subr.mxu0 0.0
    %1674 = vmatpush1.msra.mxu0 0.0
    %1675 = vmatprep.subr.mxu0 0.0
    %1676 = vmatpush1.msra.mxu0 0.0
    %1677 = vmatprep.subr.mxu0 0.0
    %1678 = vmatpush1.msra.mxu0 0.0
    %1679 = vmatprep.subr.mxu0 0.0
    %1680 = vmatpush1.msra.mxu0 0.0
    %1681 = vmatprep.mubr.f32.mxu0 0.0
    %1682 = vmatmul.mubr.f32.gmra.mrb[0].mxu0 %v1615
    %v1683 = vpop.f32.mrb[0].mxu0
    %v1684 = vadd.f32 %v158, %v1683
    %v1685 = vpop.f32.mrb[0].mxu0
    %1686 = vdwg.mxu0
    %v1687 = vxor.u32 %v1684, 2147483648
    %v1688 = vmul.f32 %v1687, 1.442695
    %v1689 = vpow.pop %v1688
    %v1690 = vadd.f32 %v1689, 1.0
    %v1691 = vrcp.pop %v1690
    %v1692 = vmul.f32 1.0, %v1691
    %v1693 = vtanh.pop %v1684
    %v1694 = vsel %vm422, %v1692, %v1693
    %v1695 = vmul.f32 %v1694, %v1493
    %1697 = vrot.lane.b32.xlu0 %v1694, 32
    %v1698 = vpop.permute.xlu0 %1697
    %v1700 = vmul.f32 %v1694, %v1698
    %1702 = vrot.lane.b32.xlu0 %v1700, 32
    %v1703 = vpop.permute.xlu0 %1702
    %v1705 = vadd.f32 %v1695, %v1703
    %v1706 = vtanh.pop %v1705
    %1708 = vrot.lane.b32.xlu0 %v1706, 32
    %v1709 = vpop.permute.xlu0 %1708
    %v1711 = vmul.f32 %v1694, %v1709
    %1713 = vrot.lane.b32.xlu0 %v1711, 64
    %v1714 = vpop.permute.xlu0 %1713
    %s1716 = scalar_lea.vmem [#allocation3], 10
    %1717 = vst.msk [vmem:[%s1716] sm:$0x3] %vm656, %v1714
    %s1718 = scalar_lea.vmem [#allocation2], 12
    %v1719 = vld [vmem:[%s1718] sm:$0x3]
    %v1720 = vsel %vm173, %v1608, 0
    %1722 = vmatprep.subr.mxu0 0.0
    %1723 = vmatpush1.msra.mxu0 %v141
    %1724 = vmatprep.subr.mxu0 0.0
    %1725 = vmatpush1.msra.mxu0 %v142
    %1726 = vmatprep.subr.mxu0 0.0
    %1727 = vmatpush1.msra.mxu0 %v143
    %1728 = vmatprep.subr.mxu0 0.0
    %1729 = vmatpush1.msra.mxu0 %v144
    %1730 = vmatprep.subr.mxu0 0.0
    %1731 = vmatpush1.msra.mxu0 0.0
    %1732 = vmatprep.subr.mxu0 0.0
    %1733 = vmatpush1.msra.mxu0 0.0
    %1734 = vmatprep.subr.mxu0 0.0
    %1735 = vmatpush1.msra.mxu0 0.0
    %1736 = vmatprep.subr.mxu0 0.0
    %1737 = vmatpush1.msra.mxu0 0.0
    %1738 = vmatprep.subr.mxu0 0.0
    %1739 = vmatpush1.msra.mxu0 0.0
    %1740 = vmatprep.subr.mxu0 0.0
    %1741 = vmatpush1.msra.mxu0 0.0
    %1742 = vmatprep.subr.mxu0 0.0
    %1743 = vmatpush1.msra.mxu0 0.0
    %1744 = vmatprep.subr.mxu0 0.0
    %1745 = vmatpush1.msra.mxu0 0.0
    %1746 = vmatprep.subr.mxu0 0.0
    %1747 = vmatpush1.msra.mxu0 0.0
    %1748 = vmatprep.subr.mxu0 0.0
    %1749 = vmatpush1.msra.mxu0 0.0
    %1750 = vmatprep.subr.mxu0 0.0
    %1751 = vmatpush1.msra.mxu0 0.0
    %1752 = vmatprep.subr.mxu0 0.0
    %1753 = vmatpush1.msra.mxu0 0.0
    %1754 = vmatprep.subr.mxu0 0.0
    %1755 = vmatpush1.msra.mxu0 0.0
    %1756 = vmatprep.subr.mxu0 0.0
    %1757 = vmatpush1.msra.mxu0 0.0
    %1758 = vmatprep.subr.mxu0 0.0
    %1759 = vmatpush1.msra.mxu0 0.0
    %1760 = vmatprep.subr.mxu0 0.0
    %1761 = vmatpush1.msra.mxu0 0.0
    %1762 = vmatprep.subr.mxu0 0.0
    %1763 = vmatpush1.msra.mxu0 0.0
    %1764 = vmatprep.subr.mxu0 0.0
    %1765 = vmatpush1.msra.mxu0 0.0
    %1766 = vmatprep.subr.mxu0 0.0
    %1767 = vmatpush1.msra.mxu0 0.0
    %1768 = vmatprep.subr.mxu0 0.0
    %1769 = vmatpush1.msra.mxu0 0.0
    %1770 = vmatprep.subr.mxu0 0.0
    %1771 = vmatpush1.msra.mxu0 0.0
    %1772 = vmatprep.subr.mxu0 0.0
    %1773 = vmatpush1.msra.mxu0 0.0
    %1774 = vmatprep.subr.mxu0 0.0
    %1775 = vmatpush1.msra.mxu0 0.0
    %1776 = vmatprep.subr.mxu0 0.0
    %1777 = vmatpush1.msra.mxu0 0.0
    %1778 = vmatprep.subr.mxu0 0.0
    %1779 = vmatpush1.msra.mxu0 0.0
    %1780 = vmatprep.subr.mxu0 0.0
    %1781 = vmatpush1.msra.mxu0 0.0
    %1782 = vmatprep.subr.mxu0 0.0
    %1783 = vmatpush1.msra.mxu0 0.0
    %1784 = vmatprep.subr.mxu0 0.0
    %1785 = vmatpush1.msra.mxu0 0.0
    %1786 = vmatprep.mubr.f32.mxu0 0.0
    %1787 = vmatmul.mubr.f32.gmra.mrb[0].mxu0 %v1720
    %v1788 = vpop.f32.mrb[0].mxu0
    %v1789 = vadd.f32 0.0, %v1788
    %v1790 = vpop.f32.mrb[0].mxu0
    %1791 = vdwg.mxu0
    %v1792 = vadd.f32 %v1719, %v1789
    %v1793 = vxor.u32 %v1792, 2147483648
    %v1794 = vmul.f32 %v1793, 1.442695
    %v1795 = vpow.pop %v1794
    %v1796 = vadd.f32 %v1795, 1.0
    %v1797 = vrcp.pop %v1796
    %v1798 = vmul.f32 1.0, %v1797
    %v1799 = vtanh.pop %v1792
    %v1800 = vsel %vm422, %v1798, %v1799
    %v1801 = vmul.f32 %v1800, %v1599
    %1803 = vrot.lane.b32.xlu0 %v1800, 32
    %v1804 = vpop.permute.xlu0 %1803
    %v1806 = vmul.f32 %v1800, %v1804
    %1808 = vrot.lane.b32.xlu0 %v1806, 32
    %v1809 = vpop.permute.xlu0 %1808
    %v1811 = vadd.f32 %v1801, %v1809
    %v1812 = vtanh.pop %v1811
    %1814 = vrot.lane.b32.xlu0 %v1812, 32
    %v1815 = vpop.permute.xlu0 %1814
    %v1817 = vmul.f32 %v1800, %v1815
    %1819 = vrot.lane.b32.xlu0 %v1817, 64
    %v1820 = vpop.permute.xlu0 %1819
    %1822 = vrot.lane.b32.xlu0 %v1711, 96
    %v1823 = vpop.permute.xlu0 %1822
    %v1825 = vsel %vm173, %v1820, %v1823
    %v1827 = vsel %vm548, %v1825, 0
    %1829 = vmatprep.subr.mxu0 0.0
    %1830 = vmatpush1.msra.mxu0 %v145
    %1831 = vmatprep.subr.mxu0 0.0
    %1832 = vmatpush1.msra.mxu0 %v146
    %1833 = vmatprep.subr.mxu0 0.0
    %1834 = vmatpush1.msra.mxu0 %v147
    %1835 = vmatprep.subr.mxu0 0.0
    %1836 = vmatpush1.msra.mxu0 %v148
    %1837 = vmatprep.subr.mxu0 0.0
    %1838 = vmatpush1.msra.mxu0 %v149
    %1839 = vmatprep.subr.mxu0 0.0
    %1840 = vmatpush1.msra.mxu0 %v150
    %1841 = vmatprep.subr.mxu0 0.0
    %1842 = vmatpush1.msra.mxu0 %v151
    %1843 = vmatprep.subr.mxu0 0.0
    %1844 = vmatpush1.msra.mxu0 %v152
    %1845 = vmatprep.subr.mxu0 0.0
    %1846 = vmatpush1.msra.mxu0 0.0
    %1847 = vmatprep.subr.mxu0 0.0
    %1848 = vmatpush1.msra.mxu0 0.0
    %1849 = vmatprep.subr.mxu0 0.0
    %1850 = vmatpush1.msra.mxu0 0.0
    %1851 = vmatprep.subr.mxu0 0.0
    %1852 = vmatpush1.msra.mxu0 0.0
    %1853 = vmatprep.subr.mxu0 0.0
    %1854 = vmatpush1.msra.mxu0 0.0
    %1855 = vmatprep.subr.mxu0 0.0
    %1856 = vmatpush1.msra.mxu0 0.0
    %1857 = vmatprep.subr.mxu0 0.0
    %1858 = vmatpush1.msra.mxu0 0.0
    %1859 = vmatprep.subr.mxu0 0.0
    %1860 = vmatpush1.msra.mxu0 0.0
    %1861 = vmatprep.subr.mxu0 0.0
    %1862 = vmatpush1.msra.mxu0 0.0
    %1863 = vmatprep.subr.mxu0 0.0
    %1864 = vmatpush1.msra.mxu0 0.0
    %1865 = vmatprep.subr.mxu0 0.0
    %1866 = vmatpush1.msra.mxu0 0.0
    %1867 = vmatprep.subr.mxu0 0.0
    %1868 = vmatpush1.msra.mxu0 0.0
    %1869 = vmatprep.subr.mxu0 0.0
    %1870 = vmatpush1.msra.mxu0 0.0
    %1871 = vmatprep.subr.mxu0 0.0
    %1872 = vmatpush1.msra.mxu0 0.0
    %1873 = vmatprep.subr.mxu0 0.0
    %1874 = vmatpush1.msra.mxu0 0.0
    %1875 = vmatprep.subr.mxu0 0.0
    %1876 = vmatpush1.msra.mxu0 0.0
    %1877 = vmatprep.subr.mxu0 0.0
    %1878 = vmatpush1.msra.mxu0 0.0
    %1879 = vmatprep.subr.mxu0 0.0
    %1880 = vmatpush1.msra.mxu0 0.0
    %1881 = vmatprep.subr.mxu0 0.0
    %1882 = vmatpush1.msra.mxu0 0.0
    %1883 = vmatprep.subr.mxu0 0.0
    %1884 = vmatpush1.msra.mxu0 0.0
    %1885 = vmatprep.subr.mxu0 0.0
    %1886 = vmatpush1.msra.mxu0 0.0
    %1887 = vmatprep.subr.mxu0 0.0
    %1888 = vmatpush1.msra.mxu0 0.0
    %1889 = vmatprep.subr.mxu0 0.0
    %1890 = vmatpush1.msra.mxu0 0.0
    %1891 = vmatprep.subr.mxu0 0.0
    %1892 = vmatpush1.msra.mxu0 0.0
    %1893 = vmatprep.mubr.f32.mxu0 0.0
    %1894 = vmatmul.mubr.f32.gmra.mrb[0].mxu0 %v1827
    %v1895 = vpop.f32.mrb[0].mxu0
    %v1896 = vadd.f32 %v158, %v1895
    %v1897 = vpop.f32.mrb[0].mxu0
    %1898 = vdwg.mxu0
    %v1899 = vxor.u32 %v1896, 2147483648
    %v1900 = vmul.f32 %v1899, 1.442695
    %v1901 = vpow.pop %v1900
    %v1902 = vadd.f32 %v1901, 1.0
    %v1903 = vrcp.pop %v1902
    %v1904 = vmul.f32 1.0, %v1903
    %v1905 = vtanh.pop %v1896
    %v1906 = vsel %vm422, %v1904, %v1905
    %v1907 = vmul.f32 %v1906, %v1705
    %1909 = vrot.lane.b32.xlu0 %v1906, 32
    %v1910 = vpop.permute.xlu0 %1909
    %v1912 = vmul.f32 %v1906, %v1910
    %1914 = vrot.lane.b32.xlu0 %v1912, 32
    %v1915 = vpop.permute.xlu0 %1914
    %v1917 = vadd.f32 %v1907, %v1915
    %v1918 = vtanh.pop %v1917
    %1920 = vrot.lane.b32.xlu0 %v1918, 32
    %v1921 = vpop.permute.xlu0 %1920
    %v1923 = vmul.f32 %v1906, %v1921
    %1925 = vrot.lane.b32.xlu0 %v1923, 64
    %v1926 = vpop.permute.xlu0 %1925
    %s1928 = scalar_lea.vmem [#allocation3], 12
    %1929 = vst.msk [vmem:[%s1928] sm:$0x3] %vm656, %v1926
    %s1930 = scalar_lea.vmem [#allocation2], 14
    %v1931 = vld [vmem:[%s1930] sm:$0x3]
    %v1932 = vsel %vm173, %v1820, 0
    %1934 = vmatprep.subr.mxu0 0.0
    %1935 = vmatpush1.msra.mxu0 %v141
    %1936 = vmatprep.subr.mxu0 0.0
    %1937 = vmatpush1.msra.mxu0 %v142
    %1938 = vmatprep.subr.mxu0 0.0
    %1939 = vmatpush1.msra.mxu0 %v143
    %1940 = vmatprep.subr.mxu0 0.0
    %1941 = vmatpush1.msra.mxu0 %v144
    %1942 = vmatprep.subr.mxu0 0.0
    %1943 = vmatpush1.msra.mxu0 0.0
    %1944 = vmatprep.subr.mxu0 0.0
    %1945 = vmatpush1.msra.mxu0 0.0
    %1946 = vmatprep.subr.mxu0 0.0
    %1947 = vmatpush1.msra.mxu0 0.0
    %1948 = vmatprep.subr.mxu0 0.0
    %1949 = vmatpush1.msra.mxu0 0.0
    %1950 = vmatprep.subr.mxu0 0.0
    %1951 = vmatpush1.msra.mxu0 0.0
    %1952 = vmatprep.subr.mxu0 0.0
    %1953 = vmatpush1.msra.mxu0 0.0
    %1954 = vmatprep.subr.mxu0 0.0
    %1955 = vmatpush1.msra.mxu0 0.0
    %1956 = vmatprep.subr.mxu0 0.0
    %1957 = vmatpush1.msra.mxu0 0.0
    %1958 = vmatprep.subr.mxu0 0.0
    %1959 = vmatpush1.msra.mxu0 0.0
    %1960 = vmatprep.subr.mxu0 0.0
    %1961 = vmatpush1.msra.mxu0 0.0
    %1962 = vmatprep.subr.mxu0 0.0
    %1963 = vmatpush1.msra.mxu0 0.0
    %1964 = vmatprep.subr.mxu0 0.0
    %1965 = vmatpush1.msra.mxu0 0.0
    %1966 = vmatprep.subr.mxu0 0.0
    %1967 = vmatpush1.msra.mxu0 0.0
    %1968 = vmatprep.subr.mxu0 0.0
    %1969 = vmatpush1.msra.mxu0 0.0
    %1970 = vmatprep.subr.mxu0 0.0
    %1971 = vmatpush1.msra.mxu0 0.0
    %1972 = vmatprep.subr.mxu0 0.0
    %1973 = vmatpush1.msra.mxu0 0.0
    %1974 = vmatprep.subr.mxu0 0.0
    %1975 = vmatpush1.msra.mxu0 0.0
    %1976 = vmatprep.subr.mxu0 0.0
    %1977 = vmatpush1.msra.mxu0 0.0
    %1978 = vmatprep.subr.mxu0 0.0
    %1979 = vmatpush1.msra.mxu0 0.0
    %1980 = vmatprep.subr.mxu0 0.0
    %1981 = vmatpush1.msra.mxu0 0.0
    %1982 = vmatprep.subr.mxu0 0.0
    %1983 = vmatpush1.msra.mxu0 0.0
    %1984 = vmatprep.subr.mxu0 0.0
    %1985 = vmatpush1.msra.mxu0 0.0
    %1986 = vmatprep.subr.mxu0 0.0
    %1987 = vmatpush1.msra.mxu0 0.0
    %1988 = vmatprep.subr.mxu0 0.0
    %1989 = vmatpush1.msra.mxu0 0.0
    %1990 = vmatprep.subr.mxu0 0.0
    %1991 = vmatpush1.msra.mxu0 0.0
    %1992 = vmatprep.subr.mxu0 0.0
    %1993 = vmatpush1.msra.mxu0 0.0
    %1994 = vmatprep.subr.mxu0 0.0
    %1995 = vmatpush1.msra.mxu0 0.0
    %1996 = vmatprep.subr.mxu0 0.0
    %1997 = vmatpush1.msra.mxu0 0.0
    %1998 = vmatprep.mubr.f32.mxu0 0.0
    %1999 = vmatmul.mubr.f32.gmra.mrb[0].mxu0 %v1932
    %v2000 = vpop.f32.mrb[0].mxu0
    %v2001 = vadd.f32 0.0, %v2000
    %v2002 = vpop.f32.mrb[0].mxu0
    %2003 = vdwg.mxu0
    %v2004 = vadd.f32 %v1931, %v2001
    %v2005 = vxor.u32 %v2004, 2147483648
    %v2006 = vmul.f32 %v2005, 1.442695
    %v2007 = vpow.pop %v2006
    %v2008 = vadd.f32 %v2007, 1.0
    %v2009 = vrcp.pop %v2008
    %v2010 = vmul.f32 1.0, %v2009
    %v2011 = vtanh.pop %v2004
    %v2012 = vsel %vm422, %v2010, %v2011
    %v2013 = vmul.f32 %v2012, %v1811
    %2015 = vrot.lane.b32.xlu0 %v2012, 32
    %v2016 = vpop.permute.xlu0 %2015
    %v2018 = vmul.f32 %v2012, %v2016
    %2020 = vrot.lane.b32.xlu0 %v2018, 32
    %v2021 = vpop.permute.xlu0 %2020
    %v2023 = vadd.f32 %v2013, %v2021
    %v2024 = vtanh.pop %v2023
    %2026 = vrot.lane.b32.xlu0 %v2024, 32
    %v2027 = vpop.permute.xlu0 %2026
    %v2029 = vmul.f32 %v2012, %v2027
    %2031 = vrot.lane.b32.xlu0 %v2029, 64
    %v2032 = vpop.permute.xlu0 %2031
    %2034 = vrot.lane.b32.xlu0 %v1923, 96
    %v2035 = vpop.permute.xlu0 %2034
    %v2037 = vsel %vm173, %v2032, %v2035
    %v2039 = vsel %vm548, %v2037, 0
    %2041 = vmatprep.subr.mxu0 0.0
    %2042 = vmatpush1.msra.mxu0 %v145
    %2043 = vmatprep.subr.mxu0 0.0
    %2044 = vmatpush1.msra.mxu0 %v146
    %2045 = vmatprep.subr.mxu0 0.0
    %2046 = vmatpush1.msra.mxu0 %v147
    %2047 = vmatprep.subr.mxu0 0.0
    %2048 = vmatpush1.msra.mxu0 %v148
    %2049 = vmatprep.subr.mxu0 0.0
    %2050 = vmatpush1.msra.mxu0 %v149
    %2051 = vmatprep.subr.mxu0 0.0
    %2052 = vmatpush1.msra.mxu0 %v150
    %2053 = vmatprep.subr.mxu0 0.0
    %2054 = vmatpush1.msra.mxu0 %v151
    %2055 = vmatprep.subr.mxu0 0.0
    %2056 = vmatpush1.msra.mxu0 %v152
    %2057 = vmatprep.subr.mxu0 0.0
    %2058 = vmatpush1.msra.mxu0 0.0
    %2059 = vmatprep.subr.mxu0 0.0
    %2060 = vmatpush1.msra.mxu0 0.0
    %2061 = vmatprep.subr.mxu0 0.0
    %2062 = vmatpush1.msra.mxu0 0.0
    %2063 = vmatprep.subr.mxu0 0.0
    %2064 = vmatpush1.msra.mxu0 0.0
    %2065 = vmatprep.subr.mxu0 0.0
    %2066 = vmatpush1.msra.mxu0 0.0
    %2067 = vmatprep.subr.mxu0 0.0
    %2068 = vmatpush1.msra.mxu0 0.0
    %2069 = vmatprep.subr.mxu0 0.0
    %2070 = vmatpush1.msra.mxu0 0.0
    %2071 = vmatprep.subr.mxu0 0.0
    %2072 = vmatpush1.msra.mxu0 0.0
    %2073 = vmatprep.subr.mxu0 0.0
    %2074 = vmatpush1.msra.mxu0 0.0
    %2075 = vmatprep.subr.mxu0 0.0
    %2076 = vmatpush1.msra.mxu0 0.0
    %2077 = vmatprep.subr.mxu0 0.0
    %2078 = vmatpush1.msra.mxu0 0.0
    %2079 = vmatprep.subr.mxu0 0.0
    %2080 = vmatpush1.msra.mxu0 0.0
    %2081 = vmatprep.subr.mxu0 0.0
    %2082 = vmatpush1.msra.mxu0 0.0
    %2083 = vmatprep.subr.mxu0 0.0
    %2084 = vmatpush1.msra.mxu0 0.0
    %2085 = vmatprep.subr.mxu0 0.0
    %2086 = vmatpush1.msra.mxu0 0.0
    %2087 = vmatprep.subr.mxu0 0.0
    %2088 = vmatpush1.msra.mxu0 0.0
    %2089 = vmatprep.subr.mxu0 0.0
    %2090 = vmatpush1.msra.mxu0 0.0
    %2091 = vmatprep.subr.mxu0 0.0
    %2092 = vmatpush1.msra.mxu0 0.0
    %2093 = vmatprep.subr.mxu0 0.0
    %2094 = vmatpush1.msra.mxu0 0.0
    %2095 = vmatprep.subr.mxu0 0.0
    %2096 = vmatpush1.msra.mxu0 0.0
    %2097 = vmatprep.subr.mxu0 0.0
    %2098 = vmatpush1.msra.mxu0 0.0
    %2099 = vmatprep.subr.mxu0 0.0
    %2100 = vmatpush1.msra.mxu0 0.0
    %2101 = vmatprep.subr.mxu0 0.0
    %2102 = vmatpush1.msra.mxu0 0.0
    %2103 = vmatprep.subr.mxu0 0.0
    %2104 = vmatpush1.msra.mxu0 0.0
    %2105 = vmatprep.mubr.f32.mxu0 0.0
    %2106 = vmatmul.mubr.f32.gmra.mrb[0].mxu0 %v2039
    %v2107 = vpop.f32.mrb[0].mxu0
    %v2108 = vadd.f32 %v158, %v2107
    %v2109 = vpop.f32.mrb[0].mxu0
    %2110 = vdwg.mxu0
    %v2111 = vxor.u32 %v2108, 2147483648
    %v2112 = vmul.f32 %v2111, 1.442695
    %v2113 = vpow.pop %v2112
    %v2114 = vadd.f32 %v2113, 1.0
    %v2115 = vrcp.pop %v2114
    %v2116 = vmul.f32 1.0, %v2115
    %v2117 = vtanh.pop %v2108
    %v2118 = vsel %vm422, %v2116, %v2117
    %v2119 = vmul.f32 %v2118, %v1917
    %2121 = vrot.lane.b32.xlu0 %v2118, 32
    %v2122 = vpop.permute.xlu0 %2121
    %v2124 = vmul.f32 %v2118, %v2122
    %2126 = vrot.lane.b32.xlu0 %v2124, 32
    %v2127 = vpop.permute.xlu0 %2126
    %v2129 = vadd.f32 %v2119, %v2127
    %v2130 = vtanh.pop %v2129
    %2132 = vrot.lane.b32.xlu0 %v2130, 32
    %v2133 = vpop.permute.xlu0 %2132
    %v2135 = vmul.f32 %v2118, %v2133
    %2137 = vrot.lane.b32.xlu0 %v2135, 64
    %v2138 = vpop.permute.xlu0 %2137
    %s2140 = scalar_lea.vmem [#allocation3], 14
    %2141 = vst.msk [vmem:[%s2140] sm:$0x3] %vm656, %v2138
    %v2143 = vunpack.c.l.s4 1966171168
    %v2144 = vunpack.c.0.s8 %v2143
    %v2145 = vlaneseq
    %v2146 = vshrl.u32 %v2145, 7
    %v2147 = vsub.s32 %v2144, %v2146
    %v2148 = vrot.slane %v2029, %v2147
    %v2149 = vcombine.high %v2148, %v2148
    %v2151 = vunpack.c.l.s4 1966171168
    %v2152 = vunpack.c.0.s8 %v2151
    %v2153 = vlaneseq
    %v2154 = vshrl.u32 %v2153, 7
    %v2155 = vsub.s32 %v2152, %v2154
    %v2156 = vrot.slane %v2148, %v2155
    %v2158 = vunpack.c.l.s4 1966171168
    %v2159 = vunpack.c.0.s8 %v2158
    %v2160 = vlaneseq
    %v2161 = vshrl.u32 %v2160, 7
    %v2162 = vsub.s32 %v2159, %v2161
    %v2163 = vrot.slane %v2149, %v2162
    %v2167 = vunpack.c.l.s4 1966171168
    %v2168 = vunpack.c.0.s8 %v2167
    %v2169 = vlaneseq
    %v2170 = vshrl.u32 %v2169, 7
    %v2171 = vsub.s32 %v2168, %v2170
    %v2172 = vrot.slane %v2135, %v2171
    %v2173 = vcombine.high %v2172, %v2172
    %v2175 = vunpack.c.l.s4 1966171168
    %v2176 = vunpack.c.0.s8 %v2175
    %v2177 = vlaneseq
    %v2178 = vshrl.u32 %v2177, 7
    %v2179 = vsub.s32 %v2176, %v2178
    %v2180 = vrot.slane %v2172, %v2179
    %v2182 = vunpack.c.l.s4 1966171168
    %v2183 = vunpack.c.0.s8 %v2182
    %v2184 = vlaneseq
    %v2185 = vshrl.u32 %v2184, 7
    %v2186 = vsub.s32 %v2183, %v2185
    %v2187 = vrot.slane %v2173, %v2186
    %v2188 = vlaneseq
    %v2189 = vshrl.u32 %v2188, 7
    %v2190 = vsub.s32 0, %v2189
    %v2191 = vrot.slane %v2180, %v2190
    %v2192 = vlaneseq
    %v2193 = vshrl.u32 %v2192, 7
    %v2194 = vsub.s32 0, %v2193
    %v2195 = vrot.slane %v2187, %v2194
    %v2198 = vsel %vm403, %v2156, %v2191
    %v2199 = vsel %vm403, %v2163, %v2195
    %2202 = vrot.lane.b32.xlu0 %v2198, 64
    %v2203 = vpop.permute.xlu0 %2202
    %2204 = vrot.lane.b32.xlu0 %v2199, 64
    %v2205 = vpop.permute.xlu0 %2204
    %2208 = vst.msk [vmem:[#allocation17] sm:$0x3] %vm656, %v2203
    %2209 = vst.msk [vmem:[#allocation17 + $0x2] sm:$0x3] %vm656, %v2205
    %v2212 = vunpack.c.l.s4 1966171168
    %v2213 = vunpack.c.0.s8 %v2212
    %v2214 = vlaneseq
    %v2215 = vshrl.u32 %v2214, 7
    %v2216 = vsub.s32 %v2213, %v2215
    %v2217 = vrot.slane %v2023, %v2216
    %v2218 = vcombine.high %v2217, %v2217
    %v2220 = vunpack.c.l.s4 1966171168
    %v2221 = vunpack.c.0.s8 %v2220
    %v2222 = vlaneseq
    %v2223 = vshrl.u32 %v2222, 7
    %v2224 = vsub.s32 %v2221, %v2223
    %v2225 = vrot.slane %v2217, %v2224
    %v2227 = vunpack.c.l.s4 1966171168
    %v2228 = vunpack.c.0.s8 %v2227
    %v2229 = vlaneseq
    %v2230 = vshrl.u32 %v2229, 7
    %v2231 = vsub.s32 %v2228, %v2230
    %v2232 = vrot.slane %v2218, %v2231
    %v2237 = vunpack.c.l.s4 1966171168
    %v2238 = vunpack.c.0.s8 %v2237
    %v2239 = vlaneseq
    %v2240 = vshrl.u32 %v2239, 7
    %v2241 = vsub.s32 %v2238, %v2240
    %v2242 = vrot.slane %v2129, %v2241
    %v2243 = vcombine.high %v2242, %v2242
    %v2245 = vunpack.c.l.s4 1966171168
    %v2246 = vunpack.c.0.s8 %v2245
    %v2247 = vlaneseq
    %v2248 = vshrl.u32 %v2247, 7
    %v2249 = vsub.s32 %v2246, %v2248
    %v2250 = vrot.slane %v2242, %v2249
    %v2252 = vunpack.c.l.s4 1966171168
    %v2253 = vunpack.c.0.s8 %v2252
    %v2254 = vlaneseq
    %v2255 = vshrl.u32 %v2254, 7
    %v2256 = vsub.s32 %v2253, %v2255
    %v2257 = vrot.slane %v2243, %v2256
    %v2258 = vlaneseq
    %v2259 = vshrl.u32 %v2258, 7
    %v2260 = vsub.s32 0, %v2259
    %v2261 = vrot.slane %v2250, %v2260
    %v2262 = vlaneseq
    %v2263 = vshrl.u32 %v2262, 7
    %v2264 = vsub.s32 0, %v2263
    %v2265 = vrot.slane %v2257, %v2264
    %v2268 = vsel %vm403, %v2225, %v2261
    %v2269 = vsel %vm403, %v2232, %v2265
    %2272 = vrot.lane.b32.xlu0 %v2268, 96
    %v2273 = vpop.permute.xlu0 %2272
    %2274 = vrot.lane.b32.xlu0 %v2269, 96
    %v2275 = vpop.permute.xlu0 %2274
    %2278 = vst.msk [vmem:[#allocation19] sm:$0x3] %vm656, %v2273
    %2279 = vst.msk [vmem:[#allocation19 + $0x2] sm:$0x3] %vm656, %v2275
    %v2280 = vld [vmem:[#allocation3] sm:$0x3]
    %v2281 = vld [vmem:[#allocation3 + $0x2] sm:$0x3]
    %v2282 = vld [vmem:[#allocation3 + $0x4] sm:$0x3]
    %v2283 = vld [vmem:[#allocation3 + $0x6] sm:$0x3]
    %v2284 = vld [vmem:[#allocation3 + $0x8] sm:$0x3]
    %v2285 = vld [vmem:[#allocation3 + $0xa] sm:$0x3]
    %v2286 = vld [vmem:[#allocation3 + $0xc] sm:$0x3]
    %v2287 = vld [vmem:[#allocation3 + $0xe] sm:$0x3]
    %v2296 = vrot.slane %v2281, 7
    %v2297 = vsel %vm431, %v2296, %v2280
    %v2298 = vrot.slane %v2282, 6
    %vm2299 = vcmask 1042434
    %v2300 = vsel %vm2299, %v2298, %v2297
    %v2301 = vrot.slane %v2283, 5
    %vm2302 = vcmask 1043459
    %v2303 = vsel %vm2302, %v2301, %v2300
    %v2304 = vrot.slane %v2284, 4
    %vm2305 = vcmask 1044484
    %v2306 = vsel %vm2305, %v2304, %v2303
    %v2307 = vrot.slane %v2285, 3
    %vm2308 = vcmask 1045509
    %v2309 = vsel %vm2308, %v2307, %v2306
    %v2310 = vrot.slane %v2286, 2
    %vm2311 = vcmask 1046534
    %v2312 = vsel %vm2311, %v2310, %v2309
    %v2313 = vrot.slane %v2287, 1
    %vm2314 = vcmask 1047559
    %v2315 = vsel %vm2314, %v2313, %v2312
    %v2316 = vrot.slane %v2280, 1
    %v2317 = vsel %vm431, %v2281, %v2316
    %v2318 = vrot.slane %v2282, 7
    %v2319 = vsel %vm2299, %v2318, %v2317
    %v2320 = vrot.slane %v2283, 6
    %v2321 = vsel %vm2302, %v2320, %v2319
    %v2322 = vrot.slane %v2284, 5
    %v2323 = vsel %vm2305, %v2322, %v2321
    %v2324 = vrot.slane %v2285, 4
    %v2325 = vsel %vm2308, %v2324, %v2323
    %v2326 = vrot.slane %v2286, 3
    %v2327 = vsel %vm2311, %v2326, %v2325
    %v2328 = vrot.slane %v2287, 2
    %v2329 = vsel %vm2314, %v2328, %v2327
    %v2330 = vld [vmem:[#allocation13] sm:$0xff]
    %v2331 = vld [vmem:[#allocation13 + $0x8] sm:$0xff]
    %v2332 = vld [vmem:[#allocation13 + $0x10] sm:$0xff]
    %v2333 = vld [vmem:[#allocation13 + $0x18] sm:$0xff]
    %v2334 = vld [vmem:[#allocation13 + $0x20] sm:$0xff]
    %v2335 = vld [vmem:[#allocation13 + $0x28] sm:$0xff]
    %v2336 = vld [vmem:[#allocation13 + $0x30] sm:$0xff]
    %v2337 = vld [vmem:[#allocation13 + $0x38] sm:$0xff]
    %v2338 = vld [vmem:[%s9] sm:$0x3]
    %v2340 = vlaneseq
    %v2341 = vshrl.u32 %v2340, 7
    %v2342 = vsub.s32 0, %v2341
    %v2343 = vrot.slane %v2338, %v2342
    %v2344 = vlaneseq
    %v2345 = vshrl.u32 %v2344, 7
    %v2346 = vsub.s32 1, %v2345
    %v2347 = vrot.slane %v2338, %v2346
    %v2350 = vsel %vm173, %v2315, 0
    %v2352 = vsel %vm173, %v2329, 0
    %2354 = vmatprep.subr.mxu0 %v2331
    %2355 = vmatpush1.msra.mxu0 %v2330
    %2356 = vmatprep.subr.mxu0 %v2333
    %2357 = vmatpush1.msra.mxu0 %v2332
    %2358 = vmatprep.subr.mxu0 %v2335
    %2359 = vmatpush1.msra.mxu0 %v2334
    %2360 = vmatprep.subr.mxu0 %v2337
    %2361 = vmatpush1.msra.mxu0 %v2336
    %2362 = vmatprep.subr.mxu0 0.0
    %2363 = vmatpush1.msra.mxu0 0.0
    %2364 = vmatprep.subr.mxu0 0.0
    %2365 = vmatpush1.msra.mxu0 0.0
    %2366 = vmatprep.subr.mxu0 0.0
    %2367 = vmatpush1.msra.mxu0 0.0
    %2368 = vmatprep.subr.mxu0 0.0
    %2369 = vmatpush1.msra.mxu0 0.0
    %2370 = vmatprep.subr.mxu0 0.0
    %2371 = vmatpush1.msra.mxu0 0.0
    %2372 = vmatprep.subr.mxu0 0.0
    %2373 = vmatpush1.msra.mxu0 0.0
    %2374 = vmatprep.subr.mxu0 0.0
    %2375 = vmatpush1.msra.mxu0 0.0
    %2376 = vmatprep.subr.mxu0 0.0
    %2377 = vmatpush1.msra.mxu0 0.0
    %2378 = vmatprep.subr.mxu0 0.0
    %2379 = vmatpush1.msra.mxu0 0.0
    %2380 = vmatprep.subr.mxu0 0.0
    %2381 = vmatpush1.msra.mxu0 0.0
    %2382 = vmatprep.subr.mxu0 0.0
    %2383 = vmatpush1.msra.mxu0 0.0
    %2384 = vmatprep.subr.mxu0 0.0
    %2385 = vmatpush1.msra.mxu0 0.0
    %2386 = vmatprep.subr.mxu0 0.0
    %2387 = vmatpush1.msra.mxu0 0.0
    %2388 = vmatprep.subr.mxu0 0.0
    %2389 = vmatpush1.msra.mxu0 0.0
    %2390 = vmatprep.subr.mxu0 0.0
    %2391 = vmatpush1.msra.mxu0 0.0
    %2392 = vmatprep.subr.mxu0 0.0
    %2393 = vmatpush1.msra.mxu0 0.0
    %2394 = vmatprep.subr.mxu0 0.0
    %2395 = vmatpush1.msra.mxu0 0.0
    %2396 = vmatprep.subr.mxu0 0.0
    %2397 = vmatpush1.msra.mxu0 0.0
    %2398 = vmatprep.subr.mxu0 0.0
    %2399 = vmatpush1.msra.mxu0 0.0
    %2400 = vmatprep.subr.mxu0 0.0
    %2401 = vmatpush1.msra.mxu0 0.0
    %2402 = vmatprep.subr.mxu0 0.0
    %2403 = vmatpush1.msra.mxu0 0.0
    %2404 = vmatprep.subr.mxu0 0.0
    %2405 = vmatpush1.msra.mxu0 0.0
    %2406 = vmatprep.subr.mxu0 0.0
    %2407 = vmatpush1.msra.mxu0 0.0
    %2408 = vmatprep.subr.mxu0 0.0
    %2409 = vmatpush1.msra.mxu0 0.0
    %2410 = vmatprep.subr.mxu0 0.0
    %2411 = vmatpush1.msra.mxu0 0.0
    %2412 = vmatprep.subr.mxu0 0.0
    %2413 = vmatpush1.msra.mxu0 0.0
    %2414 = vmatprep.subr.mxu0 0.0
    %2415 = vmatpush1.msra.mxu0 0.0
    %2416 = vmatprep.subr.mxu0 0.0
    %2417 = vmatpush1.msra.mxu0 0.0
    %2418 = vmatprep.mubr.f32.mxu0 0.0
    %2419 = vmatmul.mubr.f32.gmra.mrb[0].mxu0 %v2350
    %v2420 = vpop.f32.mrb[0].mxu0
    %v2421 = vadd.f32 %v2343, %v2420
    %v2422 = vpop.f32.mrb[0].mxu0
    %v2423 = vadd.f32 %v2347, %v2422
    %2424 = vmatprep.mubr.f32.mxu0 0.0
    %2425 = vmatmul.mubr.f32.gmra.mrb[0].mxu0 %v2352
    %v2426 = vpop.f32.mrb[0].mxu0
    %v2427 = vadd.f32 %v2343, %v2426
    %v2428 = vpop.f32.mrb[0].mxu0
    %v2429 = vadd.f32 %v2347, %v2428
    %2430 = vdwg.mxu0
    %vm2431 = vcmp.gt.f32.partialorder %v2421, 0.0
    %vm2432 = vcmp.gt.f32.partialorder %v2423, 0.0
    %vm2433 = vcmp.gt.f32.partialorder %v2427, 0.0
    %vm2434 = vcmp.gt.f32.partialorder %v2429, 0.0
    %v2435 = vmul.f32 %v2421, 0.1
    %v2436 = vmul.f32 %v2423, 0.1
    %v2437 = vmul.f32 %v2427, 0.1
    %v2438 = vmul.f32 %v2429, 0.1
    %v2439 = vsel %vm2431, %v2421, %v2435
    %v2440 = vsel %vm2432, %v2423, %v2436
    %v2441 = vsel %vm2433, %v2427, %v2437
    %v2442 = vsel %vm2434, %v2429, %v2438
    %v2443 = vld [vmem:[#allocation15] sm:$0xff]
    %v2444 = vld [vmem:[#allocation15 + $0x8] sm:$0xff]
    %v2445 = vld [vmem:[#allocation15 + $0x10] sm:$0xff]
    %v2446 = vld [vmem:[#allocation15 + $0x18] sm:$0xff]
    %v2447 = vld [vmem:[#allocation15 + $0x20] sm:$0xff]
    %v2448 = vld [vmem:[#allocation15 + $0x28] sm:$0xff]
    %v2449 = vld [vmem:[#allocation15 + $0x30] sm:$0xff]
    %v2450 = vld [vmem:[#allocation15 + $0x38] sm:$0xff]
    %v2451 = vld [vmem:[#allocation15 + $0x40] sm:$0xff]
    %v2452 = vld [vmem:[#allocation15 + $0x48] sm:$0xff]
    %v2453 = vld [vmem:[#allocation15 + $0x50] sm:$0xff]
    %v2454 = vld [vmem:[#allocation15 + $0x58] sm:$0xff]
    %v2455 = vld [vmem:[#allocation15 + $0x60] sm:$0xff]
    %v2456 = vld [vmem:[#allocation15 + $0x68] sm:$0xff]
    %v2457 = vld [vmem:[#allocation15 + $0x70] sm:$0xff]
    %v2458 = vld [vmem:[#allocation15 + $0x78] sm:$0xff]
    %v2459 = vld [vmem:[#allocation15 + $0x80] sm:$0xff]
    %v2460 = vld [vmem:[#allocation15 + $0x88] sm:$0xff]
    %v2461 = vld [vmem:[#allocation15 + $0x90] sm:$0xff]
    %v2462 = vld [vmem:[#allocation15 + $0x98] sm:$0xff]
    %v2463 = vld [vmem:[#allocation15 + $0xa0] sm:$0xff]
    %v2464 = vld [vmem:[#allocation15 + $0xa8] sm:$0xff]
    %v2465 = vld [vmem:[#allocation15 + $0xb0] sm:$0xff]
    %v2466 = vld [vmem:[#allocation15 + $0xb8] sm:$0xff]
    %v2467 = vld [vmem:[#allocation15 + $0xc0] sm:$0xff]
    %v2468 = vld [vmem:[#allocation15 + $0xc8] sm:$0xff]
    %v2469 = vld [vmem:[#allocation15 + $0xd0] sm:$0xff]
    %v2470 = vld [vmem:[#allocation15 + $0xd8] sm:$0xff]
    %v2471 = vld [vmem:[#allocation15 + $0xe0] sm:$0xff]
    %v2472 = vld [vmem:[#allocation15 + $0xe8] sm:$0xff]
    %v2473 = vld [vmem:[#allocation15 + $0xf0] sm:$0xff]
    %v2474 = vld [vmem:[#allocation15 + $0xf8] sm:$0xff]
    %v2475 = vld [vmem:[%s11] sm:$0x1]
    %v2477 = vlaneseq
    %v2478 = vshrl.u32 %v2477, 7
    %v2479 = vsub.s32 0, %v2478
    %v2480 = vrot.slane %v2475, %v2479
    %2482 = vmatprep.subr.mxu0 0.0
    %2483 = vmatpush1.msra.mxu0 %v2443
    %2484 = vmatprep.subr.mxu0 0.0
    %2485 = vmatpush1.msra.mxu0 %v2444
    %2486 = vmatprep.subr.mxu0 0.0
    %2487 = vmatpush1.msra.mxu0 %v2445
    %2488 = vmatprep.subr.mxu0 0.0
    %2489 = vmatpush1.msra.mxu0 %v2446
    %2490 = vmatprep.subr.mxu0 0.0
    %2491 = vmatpush1.msra.mxu0 %v2447
    %2492 = vmatprep.subr.mxu0 0.0
    %2493 = vmatpush1.msra.mxu0 %v2448
    %2494 = vmatprep.subr.mxu0 0.0
    %2495 = vmatpush1.msra.mxu0 %v2449
    %2496 = vmatprep.subr.mxu0 0.0
    %2497 = vmatpush1.msra.mxu0 %v2450
    %2498 = vmatprep.subr.mxu0 0.0
    %2499 = vmatpush1.msra.mxu0 %v2451
    %2500 = vmatprep.subr.mxu0 0.0
    %2501 = vmatpush1.msra.mxu0 %v2452
    %2502 = vmatprep.subr.mxu0 0.0
    %2503 = vmatpush1.msra.mxu0 %v2453
    %2504 = vmatprep.subr.mxu0 0.0
    %2505 = vmatpush1.msra.mxu0 %v2454
    %2506 = vmatprep.subr.mxu0 0.0
    %2507 = vmatpush1.msra.mxu0 %v2455
    %2508 = vmatprep.subr.mxu0 0.0
    %2509 = vmatpush1.msra.mxu0 %v2456
    %2510 = vmatprep.subr.mxu0 0.0
    %2511 = vmatpush1.msra.mxu0 %v2457
    %2512 = vmatprep.subr.mxu0 0.0
    %2513 = vmatpush1.msra.mxu0 %v2458
    %2514 = vmatprep.subr.mxu0 0.0
    %2515 = vmatpush1.msra.mxu0 %v2459
    %2516 = vmatprep.subr.mxu0 0.0
    %2517 = vmatpush1.msra.mxu0 %v2460
    %2518 = vmatprep.subr.mxu0 0.0
    %2519 = vmatpush1.msra.mxu0 %v2461
    %2520 = vmatprep.subr.mxu0 0.0
    %2521 = vmatpush1.msra.mxu0 %v2462
    %2522 = vmatprep.subr.mxu0 0.0
    %2523 = vmatpush1.msra.mxu0 %v2463
    %2524 = vmatprep.subr.mxu0 0.0
    %2525 = vmatpush1.msra.mxu0 %v2464
    %2526 = vmatprep.subr.mxu0 0.0
    %2527 = vmatpush1.msra.mxu0 %v2465
    %2528 = vmatprep.subr.mxu0 0.0
    %2529 = vmatpush1.msra.mxu0 %v2466
    %2530 = vmatprep.subr.mxu0 0.0
    %2531 = vmatpush1.msra.mxu0 %v2467
    %2532 = vmatprep.subr.mxu0 0.0
    %2533 = vmatpush1.msra.mxu0 %v2468
    %2534 = vmatprep.subr.mxu0 0.0
    %2535 = vmatpush1.msra.mxu0 %v2469
    %2536 = vmatprep.subr.mxu0 0.0
    %2537 = vmatpush1.msra.mxu0 %v2470
    %2538 = vmatprep.subr.mxu0 0.0
    %2539 = vmatpush1.msra.mxu0 %v2471
    %2540 = vmatprep.subr.mxu0 0.0
    %2541 = vmatpush1.msra.mxu0 %v2472
    %2542 = vmatprep.subr.mxu0 0.0
    %2543 = vmatpush1.msra.mxu0 %v2473
    %2544 = vmatprep.subr.mxu0 0.0
    %2545 = vmatpush1.msra.mxu0 %v2474
    %2546 = vmatprep.mubr.f32.mxu0 %v2440
    %2547 = vmatmul.mubr.f32.gmra.mrb[0].mxu0 %v2439
    %v2548 = vpop.f32.mrb[0].mxu0
    %v2549 = vadd.f32 %v2480, %v2548
    %v2550 = vpop.f32.mrb[0].mxu0
    %2551 = vmatprep.mubr.f32.mxu0 %v2442
    %2552 = vmatmul.mubr.f32.gmra.mrb[0].mxu0 %v2441
    %v2553 = vpop.f32.mrb[0].mxu0
    %v2554 = vadd.f32 %v2480, %v2553
    %v2555 = vpop.f32.mrb[0].mxu0
    %2556 = vdwg.mxu0
    %2557 = vst [vmem:[#allocation16] sm:$0xff] %v2549
    %2558 = vst [vmem:[#allocation16 + $0x8] sm:$0xff] %v2554
    // Predicated region
    $region78: #{tpu_custom_call.1} parent=1 // pred_check
      _
    $region79: #{tpu_custom_call.1} parent=1 // pred_check_branch
      %2560 = sbr.rel (0) target = $region81
    $region80: #{tpu_custom_call.1} parent=1 // pred_region
      %s2562 = ssub.s32 256, 256
      %2563 = vsyncadd [#allocation6], %s2562
      %s2564 = sshll.u32 [#allocation16], 4
      %s2565 = int_to_ptr.vmem [resolvable:$true] %s2564
      %2570 = dma.vmem_to_hbm [thread:$0]  %s2565, 256, %s12, [#allocation6], 128, 128, 8
    $region81: #{tpu_custom_call.1} parent=1 // pred_fallthru
      _
    // Predicated region
    $region82: #{tpu_custom_call.1} parent=1 // pred_check
      _
    $region83: #{tpu_custom_call.1} parent=1 // pred_check_branch
      %2572 = sbr.rel (0) target = $region85
    $region84: #{tpu_custom_call.1} parent=1 // pred_region
      %s2574 = ssub.s32 64, 64
      %2575 = vsyncadd [#allocation18], %s2574
      %s2576 = sshll.u32 [#allocation17], 4
      %s2577 = int_to_ptr.vmem [resolvable:$true] %s2576
      %2582 = dma.vmem_to_hbm [thread:$0]  %s2577, 64, %s13, [#allocation18], 32, 32, 2
    $region85: #{tpu_custom_call.1} parent=1 // pred_fallthru
      _
    // Predicated region
    $region86: #{tpu_custom_call.1} parent=1 // pred_check
      _
    $region87: #{tpu_custom_call.1} parent=1 // pred_check_branch
      %2584 = sbr.rel (0) target = $region89
    $region88: #{tpu_custom_call.1} parent=1 // pred_region
      %s2586 = ssub.s32 64, 64
      %2587 = vsyncadd [#allocation18], %s2586
      %s2588 = sshll.u32 [#allocation19], 4
      %s2589 = int_to_ptr.vmem [resolvable:$true] %s2588
      %2594 = dma.vmem_to_hbm [thread:$0]  %s2589, 64, %s14, [#allocation18], 32, 32, 2
    $region89: #{tpu_custom_call.1} parent=1 // pred_fallthru
      _
    // Predicated region
    $region90: #{tpu_custom_call.1} parent=1 // pred_check
      _
    $region91: #{tpu_custom_call.1} parent=1 // pred_check_branch
      %2596 = sbr.rel (0) target = $region93
    $region92: #{tpu_custom_call.1} parent=1 // pred_region
      %2597 = dma.done [#allocation6], 256
    $region93: #{tpu_custom_call.1} parent=1 // pred_fallthru
      _
    // Predicated region
    $region94: #{tpu_custom_call.1} parent=1 // pred_check
      _
    $region95: #{tpu_custom_call.1} parent=1 // pred_check_branch
      %2599 = sbr.rel (0) target = $region97
    $region96: #{tpu_custom_call.1} parent=1 // pred_region
      %2600 = dma.done [#allocation18], 64
    $region97: #{tpu_custom_call.1} parent=1 // pred_fallthru
      _
    // Predicated region
    $region98: #{tpu_custom_call.1} parent=1 // pred_check
      _
    $region99: #{tpu_custom_call.1} parent=1 // pred_check_branch
      %2602 = sbr.rel (0) target = $region101
    $region100: #{tpu_custom_call.1} parent=1 // pred_region
      %2603 = dma.done [#allocation18], 64
    $region101: #{tpu_custom_call.1} parent=1 // pred_fallthru
      _
    %2604 = vsyncpa [#allocation5], 1
    %2605 = vsyncpa [#allocation8], 1
    %2606 = vsyncpa [#allocation11], 1
    %2607 = vsyncpa [#allocation14], 1
    %2608 = vsyncpa [#allocation6], 1
    %2609 = vsyncpa [#allocation18], 1

</llo_original>
